<compile_context>
chip_gen: v7x
topology: tpu7x:2x2x1
jax: 0.10.0
libtpu: 0.0.40
codegen_flags: <defaults>
</compile_context>

<pallas_src>
import math
from functools import partial

import jax
import jax.numpy as jnp
from jax.experimental import pallas as pl
from jax.experimental.pallas import tpu as pltpu

_VMEM = pl.BlockSpec(memory_space=pltpu.MemorySpace.VMEM)


# ------------------------------------------------------------ fused kernel --

def _fused_transformer_kernel(
    x_ref, pe_bias_ref, mask_ref, emb_w_ref,
    qkv_w_ref, qkv_b_ref, out_w_ref, out_b_ref,
    ff1_w_ref, ff1_b_ref, ff2_w_ref, ff2_b_ref,
    ln1_g_ref, ln1_b_ref, ln2_g_ref, ln2_b_ref,
    fc_w_ref, fc_b_ref,
    o_ref,
    *, num_layers, nhead, seq_len, batch, d_model, eps=1e-5):
    S, B, D, H = seq_len, batch, d_model, nhead
    Dh = D // H
    scale = 1.0 / math.sqrt(Dh)

    # ---- embedding + (bias + positional encoding), one matmul + one add ----
    h = (jnp.dot(x_ref[...], emb_w_ref[...], preferred_element_type=jnp.float32)
         + pe_bias_ref[...])                                   # (B*S, D)
    # TODO(synk): dropout omitted (eval-mode forward => identity)

    # Block-diagonal additive mask: attention only within the same batch elem.
    neg_mask = mask_ref[...]                                   # (B*S, B*S)

    def layer_norm(y, g, b):
        mean = jnp.mean(y, axis=-1, keepdims=True)
        var = jnp.mean(jnp.square(y - mean), axis=-1, keepdims=True)
        return (y - mean) * jax.lax.rsqrt(var + eps) * g + b

    for l in range(num_layers):                 # static unroll (num_layers=2)
        # ---- multi-head self-attention (post-LN encoder layer) ------------
        qkv = (jnp.dot(h, qkv_w_ref[l], preferred_element_type=jnp.float32)
               + qkv_b_ref[l])                                 # (B*S, 3D)
        out_w_l = out_w_ref[l]                                 # (D, D)
        acc = None
        for hh in range(H):                     # static unroll over heads
            q = qkv[:, hh * Dh:(hh + 1) * Dh] * scale          # (B*S, Dh)
            k = qkv[:, D + hh * Dh:D + (hh + 1) * Dh]
            v = qkv[:, 2 * D + hh * Dh:2 * D + (hh + 1) * Dh]
            # scores = q @ k.T (NT matmul, no explicit transpose op)
            s = jax.lax.dot_general(q, k, (((1,), (1,)), ((), ())),
                                    preferred_element_type=jnp.float32)
            s = s + neg_mask                                   # (B*S, B*S)
            m = jnp.max(s, axis=-1, keepdims=True)
            p = jnp.exp(s - m)
            attn = p * pl.reciprocal(jnp.sum(p, axis=-1, keepdims=True),
                                     approx=True)
            ho = jnp.dot(attn, v, preferred_element_type=jnp.float32)  # (B*S, Dh)
            # Fold this head straight into the output projection:
            # concat(heads) @ W_out == sum_h head_h @ W_out[h*Dh:(h+1)*Dh, :]
            proj = jnp.dot(ho, out_w_l[hh * Dh:(hh + 1) * Dh, :],
                           preferred_element_type=jnp.float32)         # (B*S, D)
            acc = proj if acc is None else acc + proj
        ao = acc + out_b_ref[l]
        h = layer_norm(h + ao, ln1_g_ref[l], ln1_b_ref[l])

        # ---- feed-forward: linear -> relu -> linear ------------------------
        ff = jnp.maximum(
            jnp.dot(h, ff1_w_ref[l], preferred_element_type=jnp.float32)
            + ff1_b_ref[l], 0.0)
        ff = (jnp.dot(ff, ff2_w_ref[l], preferred_element_type=jnp.float32)
              + ff2_b_ref[l])
        h = layer_norm(h + ff, ln2_g_ref[l], ln2_b_ref[l])

    # ---- x[:, -1, :] in seq-first layout == last batch element ------------
    last = h[(B - 1) * S:, :]                                  # (S, D)
    o_ref[...] = (jnp.dot(last, fc_w_ref[...],
                          preferred_element_type=jnp.float32)
                  + fc_b_ref[...])                             # (S, 1)


# ------------------------------------------------------------- parameters ---

def init_params(key, input_dim, d_model, num_layers, dim_ff):
    def dense(k, fi, fo):
        w = jax.random.normal(k, (fi, fo), jnp.float32) / math.sqrt(fi)
        return w, jnp.zeros((fo,), jnp.float32)

    keys = jax.random.split(key, 2 + num_layers)
    params = {}
    params['emb_w'], params['emb_b'] = dense(keys[0], input_dim, d_model)
    params['fc_w'], params['fc_b'] = dense(keys[1], d_model, 1)
    layers = []
    for i in range(num_layers):
        lk = jax.random.split(keys[2 + i], 4)
        layer = {}
        layer['qkv_w'], layer['qkv_b'] = dense(lk[0], d_model, 3 * d_model)
        layer['out_w'], layer['out_b'] = dense(lk[1], d_model, d_model)
        layer['ff1_w'], layer['ff1_b'] = dense(lk[2], d_model, dim_ff)
        layer['ff2_w'], layer['ff2_b'] = dense(lk[3], dim_ff, d_model)
        layer['ln1_g'] = jnp.ones((d_model,), jnp.float32)
        layer['ln1_b'] = jnp.zeros((d_model,), jnp.float32)
        layer['ln2_g'] = jnp.ones((d_model,), jnp.float32)
        layer['ln2_b'] = jnp.zeros((d_model,), jnp.float32)
        layers.append(layer)
    params['layers'] = layers
    return params


# ----------------------------------------------------------------- forward --

def _stack(layers, name):
    return jnp.stack([lp[name] for lp in layers], axis=0)


def transformer_forward(params, x, *, d_model, nhead):
    S, B, F = x.shape
    D = d_model
    L = len(params['layers'])
    Dff = params['layers'][0]['ff1_w'].shape[1]
    n = B * S

    # Batch-first flattened activations: row b*S + s (attention per batch is a
    # contiguous row block -> no per-layer transposes anywhere).
    x_bf = jnp.transpose(x, (1, 0, 2)).reshape(n, F)

    # Positional encoding (same formula as PositionalEncoding._create_pe),
    # pre-broadcast to the batch-first row order and pre-folded with the
    # embedding bias.
    position = jnp.arange(S, dtype=jnp.float32)[:, None]
    div_term = jnp.exp(jnp.arange(0, D, 2, dtype=jnp.float32)
                       * (-math.log(10000.0) / D))
    pe = jnp.zeros((S, D), jnp.float32)
    pe = pe.at[:, 0::2].set(jnp.sin(position * div_term))
    pe = pe.at[:, 1::2].set(jnp.cos(position * div_term))
    pe_bias = jnp.tile(pe, (B, 1)) + params['emb_b'][None, :]   # (B*S, D)

    # Block-diagonal additive mask (constant-folded by XLA): rows/cols of the
    # same batch element attend, everything else gets -1e30.
    row_b = jnp.arange(n, dtype=jnp.int32)[:, None] // S
    col_b = jnp.arange(n, dtype=jnp.int32)[None, :] // S
    neg_mask = jnp.where(row_b == col_b, 0.0, -1e30).astype(jnp.float32)

    layers = params['layers']
    args = (
        x_bf, pe_bias, neg_mask,
        params['emb_w'],
        _stack(layers, 'qkv_w'), _stack(layers, 'qkv_b').reshape(L, 1, 3 * D),
        _stack(layers, 'out_w'), _stack(layers, 'out_b').reshape(L, 1, D),
        _stack(layers, 'ff1_w'), _stack(layers, 'ff1_b').reshape(L, 1, Dff),
        _stack(layers, 'ff2_w'), _stack(layers, 'ff2_b').reshape(L, 1, D),
        _stack(layers, 'ln1_g').reshape(L, 1, D),
        _stack(layers, 'ln1_b').reshape(L, 1, D),
        _stack(layers, 'ln2_g').reshape(L, 1, D),
        _stack(layers, 'ln2_b').reshape(L, 1, D),
        params['fc_w'], params['fc_b'].reshape(1, 1),
    )

    kernel = partial(_fused_transformer_kernel, num_layers=L, nhead=nhead,
                     seq_len=S, batch=B, d_model=D)
    return pl.pallas_call(
        kernel,
        out_shape=jax.ShapeDtypeStruct((S, 1), jnp.float32),
        in_specs=[_VMEM] * len(args),
        out_specs=_VMEM,
    )(*args)


# -------------------------------------------------------------------- main --

if __name__ == "__main__":
    # Module hyper-params: TransformerModel(input_dim=16, d_model=32, nhead=4,
    #   num_encoder_layers=2, dim_feedforward=64, dropout=0.1, activation='relu')
    input_dim, d_model, nhead, num_layers, dim_ff = 16, 32, 4, 2, 64
    S, B = 8, 2   # seq-first input: (S, B, input_dim)

    key = jax.random.PRNGKey(0)
    kx, kp = jax.random.split(key)
    x = jax.random.normal(kx, (S, B, input_dim), jnp.float32)
    params = init_params(kp, input_dim, d_model, num_layers, dim_ff)

    fwd = jax.jit(partial(transformer_forward, d_model=d_model, nhead=nhead))
    out = fwd(params, x)
    jax.block_until_ready(out)
    assert out.shape == (S, 1), out.shape
    assert bool(jnp.all(jnp.isfinite(out))), "non-finite output"
    print("KERNEL_OK")
</pallas_src>

<mosaic_0001>
module attributes {stable_mosaic.version = 11 : i64} {
  func.func @_fused_transformer_kernel(%arg0: memref<16x16xf32, #tpu.memory_space<vmem>>, %arg1: memref<16x32xf32, #tpu.memory_space<vmem>>, %arg2: memref<16x16xf32, #tpu.memory_space<vmem>>, %arg3: memref<16x32xf32, #tpu.memory_space<vmem>>, %arg4: memref<2x32x96xf32, #tpu.memory_space<vmem>>, %arg5: memref<2x1x96xf32, #tpu.memory_space<vmem>>, %arg6: memref<2x32x32xf32, #tpu.memory_space<vmem>>, %arg7: memref<2x1x32xf32, #tpu.memory_space<vmem>>, %arg8: memref<2x32x64xf32, #tpu.memory_space<vmem>>, %arg9: memref<2x1x64xf32, #tpu.memory_space<vmem>>, %arg10: memref<2x64x32xf32, #tpu.memory_space<vmem>>, %arg11: memref<2x1x32xf32, #tpu.memory_space<vmem>>, %arg12: memref<2x1x32xf32, #tpu.memory_space<vmem>>, %arg13: memref<2x1x32xf32, #tpu.memory_space<vmem>>, %arg14: memref<2x1x32xf32, #tpu.memory_space<vmem>>, %arg15: memref<2x1x32xf32, #tpu.memory_space<vmem>>, %arg16: memref<32x1xf32, #tpu.memory_space<vmem>>, %arg17: memref<1x1xf32, #tpu.memory_space<vmem>>, %arg18: memref<8x1xf32, #tpu.memory_space<vmem>>) attributes {dimension_semantics = [], scalar_prefetch = 0 : i64, scratch_operands = 0 : i64, tpu.core_type = #tpu.core_type<tc>} {
    %c0 = arith.constant 0 : index
    %c0_0 = arith.constant 0 : index
    %0 = vector.load %arg0[%c0, %c0_0] : memref<16x16xf32, #tpu.memory_space<vmem>>, vector<16x16xf32>
    %c0_1 = arith.constant 0 : index
    %c0_2 = arith.constant 0 : index
    %1 = vector.load %arg3[%c0_1, %c0_2] : memref<16x32xf32, #tpu.memory_space<vmem>>, vector<16x32xf32>
    %cst = arith.constant dense<0.000000e+00> : vector<16x32xf32>
    %2 = tpu.matmul %0, %1, %cst {dimension_numbers = #tpu.dot_dimension_numbers<[1], [0], [0], [1], [0, 0, 1, 1], [], []>} : vector<16x16xf32>, vector<16x32xf32>, vector<16x32xf32> -> vector<16x32xf32>
    %c0_3 = arith.constant 0 : index
    %c0_4 = arith.constant 0 : index
    %3 = vector.load %arg1[%c0_3, %c0_4] : memref<16x32xf32, #tpu.memory_space<vmem>>, vector<16x32xf32>
    %4 = arith.addf %2, %3 : vector<16x32xf32>
    %c0_5 = arith.constant 0 : index
    %c0_6 = arith.constant 0 : index
    %5 = vector.load %arg2[%c0_5, %c0_6] : memref<16x16xf32, #tpu.memory_space<vmem>>, vector<16x16xf32>
    %c0_7 = arith.constant 0 : index
    %c0_8 = arith.constant 0 : index
    %c0_9 = arith.constant 0 : index
    %6 = vector.load %arg4[%c0_7, %c0_8, %c0_9] : memref<2x32x96xf32, #tpu.memory_space<vmem>>, vector<1x32x96xf32>
    %7 = vector.shape_cast %6 : vector<1x32x96xf32> to vector<32x96xf32>
    %cst_10 = arith.constant dense<0.000000e+00> : vector<16x96xf32>
    %8 = tpu.matmul %4, %7, %cst_10 {dimension_numbers = #tpu.dot_dimension_numbers<[1], [0], [0], [1], [0, 0, 1, 1], [], []>} : vector<16x32xf32>, vector<32x96xf32>, vector<16x96xf32> -> vector<16x96xf32>
    %c0_11 = arith.constant 0 : index
    %c0_12 = arith.constant 0 : index
    %c0_13 = arith.constant 0 : index
    %9 = vector.load %arg5[%c0_11, %c0_12, %c0_13] : memref<2x1x96xf32, #tpu.memory_space<vmem>>, vector<1x1x96xf32>
    %10 = vector.shape_cast %9 : vector<1x1x96xf32> to vector<1x96xf32>
    %11 = vector.broadcast %10 : vector<1x96xf32> to vector<16x96xf32>
    %12 = arith.addf %8, %11 : vector<16x96xf32>
    %c0_14 = arith.constant 0 : index
    %c0_15 = arith.constant 0 : index
    %c0_16 = arith.constant 0 : index
    %13 = vector.load %arg6[%c0_14, %c0_15, %c0_16] : memref<2x32x32xf32, #tpu.memory_space<vmem>>, vector<1x32x32xf32>
    %14 = vector.shape_cast %13 : vector<1x32x32xf32> to vector<32x32xf32>
    %15 = vector.extract_strided_slice %12 {offsets = [0, 0], sizes = [16, 8], strides = [1, 1]} : vector<16x96xf32> to vector<16x8xf32>
    %cst_17 = arith.constant 0.353553385 : f32
    %16 = vector.broadcast %cst_17 : f32 to vector<16x8xf32>
    %17 = arith.mulf %15, %16 : vector<16x8xf32>
    %18 = vector.extract_strided_slice %12 {offsets = [0, 32], sizes = [16, 8], strides = [1, 1]} : vector<16x96xf32> to vector<16x8xf32>
    %19 = vector.extract_strided_slice %12 {offsets = [0, 64], sizes = [16, 8], strides = [1, 1]} : vector<16x96xf32> to vector<16x8xf32>
    %cst_18 = arith.constant dense<0.000000e+00> : vector<16x16xf32>
    %20 = tpu.matmul %17, %18, %cst_18 {dimension_numbers = #tpu.dot_dimension_numbers<[1], [1], [0], [0], [0, 0, 1, 0], [], []>} : vector<16x8xf32>, vector<16x8xf32>, vector<16x16xf32> -> vector<16x16xf32>
    %21 = arith.addf %20, %5 : vector<16x16xf32>
    %cst_19 = arith.constant dense<0xFF800000> : vector<16xf32>
    %22 = vector.multi_reduction <maximumf>, %21, %cst_19 [1] : vector<16x16xf32> to vector<16xf32>
    %23 = vector.shape_cast %22 : vector<16xf32> to vector<16x1xf32>
    %24 = vector.broadcast %23 : vector<16x1xf32> to vector<16x16xf32>
    %25 = arith.subf %21, %24 : vector<16x16xf32>
    %26 = math.exp %25 : vector<16x16xf32>
    %cst_20 = arith.constant dense<0.000000e+00> : vector<16xf32>
    %27 = vector.multi_reduction <add>, %26, %cst_20 [1] : vector<16x16xf32> to vector<16xf32>
    %28 = vector.shape_cast %27 : vector<16xf32> to vector<16x1xf32>
    %29 = tpu.reciprocal %28 {approx = true} : vector<16x1xf32> -> vector<16x1xf32>
    %30 = vector.broadcast %29 : vector<16x1xf32> to vector<16x16xf32>
    %31 = arith.mulf %26, %30 : vector<16x16xf32>
    %cst_21 = arith.constant dense<0.000000e+00> : vector<16x8xf32>
    %32 = tpu.matmul %31, %19, %cst_21 {dimension_numbers = #tpu.dot_dimension_numbers<[1], [0], [0], [1], [0, 0, 1, 1], [], []>} : vector<16x16xf32>, vector<16x8xf32>, vector<16x8xf32> -> vector<16x8xf32>
    %33 = vector.extract_strided_slice %14 {offsets = [0, 0], sizes = [8, 32], strides = [1, 1]} : vector<32x32xf32> to vector<8x32xf32>
    %cst_22 = arith.constant dense<0.000000e+00> : vector<16x32xf32>
    %34 = tpu.matmul %32, %33, %cst_22 {dimension_numbers = #tpu.dot_dimension_numbers<[1], [0], [0], [1], [0, 0, 1, 1], [], []>} : vector<16x8xf32>, vector<8x32xf32>, vector<16x32xf32> -> vector<16x32xf32>
    %35 = vector.extract_strided_slice %12 {offsets = [0, 8], sizes = [16, 8], strides = [1, 1]} : vector<16x96xf32> to vector<16x8xf32>
    %cst_23 = arith.constant 0.353553385 : f32
    %36 = vector.broadcast %cst_23 : f32 to vector<16x8xf32>
    %37 = arith.mulf %35, %36 : vector<16x8xf32>
    %38 = vector.extract_strided_slice %12 {offsets = [0, 40], sizes = [16, 8], strides = [1, 1]} : vector<16x96xf32> to vector<16x8xf32>
    %39 = vector.extract_strided_slice %12 {offsets = [0, 72], sizes = [16, 8], strides = [1, 1]} : vector<16x96xf32> to vector<16x8xf32>
    %cst_24 = arith.constant dense<0.000000e+00> : vector<16x16xf32>
    %40 = tpu.matmul %37, %38, %cst_24 {dimension_numbers = #tpu.dot_dimension_numbers<[1], [1], [0], [0], [0, 0, 1, 0], [], []>} : vector<16x8xf32>, vector<16x8xf32>, vector<16x16xf32> -> vector<16x16xf32>
    %41 = arith.addf %40, %5 : vector<16x16xf32>
    %cst_25 = arith.constant dense<0xFF800000> : vector<16xf32>
    %42 = vector.multi_reduction <maximumf>, %41, %cst_25 [1] : vector<16x16xf32> to vector<16xf32>
    %43 = vector.shape_cast %42 : vector<16xf32> to vector<16x1xf32>
    %44 = vector.broadcast %43 : vector<16x1xf32> to vector<16x16xf32>
    %45 = arith.subf %41, %44 : vector<16x16xf32>
    %46 = math.exp %45 : vector<16x16xf32>
    %cst_26 = arith.constant dense<0.000000e+00> : vector<16xf32>
    %47 = vector.multi_reduction <add>, %46, %cst_26 [1] : vector<16x16xf32> to vector<16xf32>
    %48 = vector.shape_cast %47 : vector<16xf32> to vector<16x1xf32>
    %49 = tpu.reciprocal %48 {approx = true} : vector<16x1xf32> -> vector<16x1xf32>
    %50 = vector.broadcast %49 : vector<16x1xf32> to vector<16x16xf32>
    %51 = arith.mulf %46, %50 : vector<16x16xf32>
    %cst_27 = arith.constant dense<0.000000e+00> : vector<16x8xf32>
    %52 = tpu.matmul %51, %39, %cst_27 {dimension_numbers = #tpu.dot_dimension_numbers<[1], [0], [0], [1], [0, 0, 1, 1], [], []>} : vector<16x16xf32>, vector<16x8xf32>, vector<16x8xf32> -> vector<16x8xf32>
    %53 = vector.extract_strided_slice %14 {offsets = [8, 0], sizes = [8, 32], strides = [1, 1]} : vector<32x32xf32> to vector<8x32xf32>
    %cst_28 = arith.constant dense<0.000000e+00> : vector<16x32xf32>
    %54 = tpu.matmul %52, %53, %cst_28 {dimension_numbers = #tpu.dot_dimension_numbers<[1], [0], [0], [1], [0, 0, 1, 1], [], []>} : vector<16x8xf32>, vector<8x32xf32>, vector<16x32xf32> -> vector<16x32xf32>
    %55 = arith.addf %34, %54 : vector<16x32xf32>
    %56 = vector.extract_strided_slice %12 {offsets = [0, 16], sizes = [16, 8], strides = [1, 1]} : vector<16x96xf32> to vector<16x8xf32>
    %cst_29 = arith.constant 0.353553385 : f32
    %57 = vector.broadcast %cst_29 : f32 to vector<16x8xf32>
    %58 = arith.mulf %56, %57 : vector<16x8xf32>
    %59 = vector.extract_strided_slice %12 {offsets = [0, 48], sizes = [16, 8], strides = [1, 1]} : vector<16x96xf32> to vector<16x8xf32>
    %60 = vector.extract_strided_slice %12 {offsets = [0, 80], sizes = [16, 8], strides = [1, 1]} : vector<16x96xf32> to vector<16x8xf32>
    %cst_30 = arith.constant dense<0.000000e+00> : vector<16x16xf32>
    %61 = tpu.matmul %58, %59, %cst_30 {dimension_numbers = #tpu.dot_dimension_numbers<[1], [1], [0], [0], [0, 0, 1, 0], [], []>} : vector<16x8xf32>, vector<16x8xf32>, vector<16x16xf32> -> vector<16x16xf32>
    %62 = arith.addf %61, %5 : vector<16x16xf32>
    %cst_31 = arith.constant dense<0xFF800000> : vector<16xf32>
    %63 = vector.multi_reduction <maximumf>, %62, %cst_31 [1] : vector<16x16xf32> to vector<16xf32>
    %64 = vector.shape_cast %63 : vector<16xf32> to vector<16x1xf32>
    %65 = vector.broadcast %64 : vector<16x1xf32> to vector<16x16xf32>
    %66 = arith.subf %62, %65 : vector<16x16xf32>
    %67 = math.exp %66 : vector<16x16xf32>
    %cst_32 = arith.constant dense<0.000000e+00> : vector<16xf32>
    %68 = vector.multi_reduction <add>, %67, %cst_32 [1] : vector<16x16xf32> to vector<16xf32>
    %69 = vector.shape_cast %68 : vector<16xf32> to vector<16x1xf32>
    %70 = tpu.reciprocal %69 {approx = true} : vector<16x1xf32> -> vector<16x1xf32>
    %71 = vector.broadcast %70 : vector<16x1xf32> to vector<16x16xf32>
    %72 = arith.mulf %67, %71 : vector<16x16xf32>
    %cst_33 = arith.constant dense<0.000000e+00> : vector<16x8xf32>
    %73 = tpu.matmul %72, %60, %cst_33 {dimension_numbers = #tpu.dot_dimension_numbers<[1], [0], [0], [1], [0, 0, 1, 1], [], []>} : vector<16x16xf32>, vector<16x8xf32>, vector<16x8xf32> -> vector<16x8xf32>
    %74 = vector.extract_strided_slice %14 {offsets = [16, 0], sizes = [8, 32], strides = [1, 1]} : vector<32x32xf32> to vector<8x32xf32>
    %cst_34 = arith.constant dense<0.000000e+00> : vector<16x32xf32>
    %75 = tpu.matmul %73, %74, %cst_34 {dimension_numbers = #tpu.dot_dimension_numbers<[1], [0], [0], [1], [0, 0, 1, 1], [], []>} : vector<16x8xf32>, vector<8x32xf32>, vector<16x32xf32> -> vector<16x32xf32>
    %76 = arith.addf %55, %75 : vector<16x32xf32>
    %77 = vector.extract_strided_slice %12 {offsets = [0, 24], sizes = [16, 8], strides = [1, 1]} : vector<16x96xf32> to vector<16x8xf32>
    %cst_35 = arith.constant 0.353553385 : f32
    %78 = vector.broadcast %cst_35 : f32 to vector<16x8xf32>
    %79 = arith.mulf %77, %78 : vector<16x8xf32>
    %80 = vector.extract_strided_slice %12 {offsets = [0, 56], sizes = [16, 8], strides = [1, 1]} : vector<16x96xf32> to vector<16x8xf32>
    %81 = vector.extract_strided_slice %12 {offsets = [0, 88], sizes = [16, 8], strides = [1, 1]} : vector<16x96xf32> to vector<16x8xf32>
    %cst_36 = arith.constant dense<0.000000e+00> : vector<16x16xf32>
    %82 = tpu.matmul %79, %80, %cst_36 {dimension_numbers = #tpu.dot_dimension_numbers<[1], [1], [0], [0], [0, 0, 1, 0], [], []>} : vector<16x8xf32>, vector<16x8xf32>, vector<16x16xf32> -> vector<16x16xf32>
    %83 = arith.addf %82, %5 : vector<16x16xf32>
    %cst_37 = arith.constant dense<0xFF800000> : vector<16xf32>
    %84 = vector.multi_reduction <maximumf>, %83, %cst_37 [1] : vector<16x16xf32> to vector<16xf32>
    %85 = vector.shape_cast %84 : vector<16xf32> to vector<16x1xf32>
    %86 = vector.broadcast %85 : vector<16x1xf32> to vector<16x16xf32>
    %87 = arith.subf %83, %86 : vector<16x16xf32>
    %88 = math.exp %87 : vector<16x16xf32>
    %cst_38 = arith.constant dense<0.000000e+00> : vector<16xf32>
    %89 = vector.multi_reduction <add>, %88, %cst_38 [1] : vector<16x16xf32> to vector<16xf32>
    %90 = vector.shape_cast %89 : vector<16xf32> to vector<16x1xf32>
    %91 = tpu.reciprocal %90 {approx = true} : vector<16x1xf32> -> vector<16x1xf32>
    %92 = vector.broadcast %91 : vector<16x1xf32> to vector<16x16xf32>
    %93 = arith.mulf %88, %92 : vector<16x16xf32>
    %cst_39 = arith.constant dense<0.000000e+00> : vector<16x8xf32>
    %94 = tpu.matmul %93, %81, %cst_39 {dimension_numbers = #tpu.dot_dimension_numbers<[1], [0], [0], [1], [0, 0, 1, 1], [], []>} : vector<16x16xf32>, vector<16x8xf32>, vector<16x8xf32> -> vector<16x8xf32>
    %95 = vector.extract_strided_slice %14 {offsets = [24, 0], sizes = [8, 32], strides = [1, 1]} : vector<32x32xf32> to vector<8x32xf32>
    %cst_40 = arith.constant dense<0.000000e+00> : vector<16x32xf32>
    %96 = tpu.matmul %94, %95, %cst_40 {dimension_numbers = #tpu.dot_dimension_numbers<[1], [0], [0], [1], [0, 0, 1, 1], [], []>} : vector<16x8xf32>, vector<8x32xf32>, vector<16x32xf32> -> vector<16x32xf32>
    %97 = arith.addf %76, %96 : vector<16x32xf32>
    %c0_41 = arith.constant 0 : index
    %c0_42 = arith.constant 0 : index
    %c0_43 = arith.constant 0 : index
    %98 = vector.load %arg7[%c0_41, %c0_42, %c0_43] : memref<2x1x32xf32, #tpu.memory_space<vmem>>, vector<1x1x32xf32>
    %99 = vector.shape_cast %98 : vector<1x1x32xf32> to vector<1x32xf32>
    %100 = vector.broadcast %99 : vector<1x32xf32> to vector<16x32xf32>
    %101 = arith.addf %97, %100 : vector<16x32xf32>
    %102 = arith.addf %4, %101 : vector<16x32xf32>
    %c0_44 = arith.constant 0 : index
    %c0_45 = arith.constant 0 : index
    %c0_46 = arith.constant 0 : index
    %103 = vector.load %arg12[%c0_44, %c0_45, %c0_46] : memref<2x1x32xf32, #tpu.memory_space<vmem>>, vector<1x1x32xf32>
    %104 = vector.shape_cast %103 : vector<1x1x32xf32> to vector<1x32xf32>
    %c0_47 = arith.constant 0 : index
    %c0_48 = arith.constant 0 : index
    %c0_49 = arith.constant 0 : index
    %105 = vector.load %arg13[%c0_47, %c0_48, %c0_49] : memref<2x1x32xf32, #tpu.memory_space<vmem>>, vector<1x1x32xf32>
    %106 = vector.shape_cast %105 : vector<1x1x32xf32> to vector<1x32xf32>
    %cst_50 = arith.constant dense<0.000000e+00> : vector<16xf32>
    %107 = vector.multi_reduction <add>, %102, %cst_50 [1] : vector<16x32xf32> to vector<16xf32>
    %108 = vector.shape_cast %107 : vector<16xf32> to vector<16x1xf32>
    %cst_51 = arith.constant 3.200000e+01 : f32
    %109 = vector.broadcast %cst_51 : f32 to vector<16x1xf32>
    %110 = arith.divf %108, %109 : vector<16x1xf32>
    %111 = vector.broadcast %110 : vector<16x1xf32> to vector<16x32xf32>
    %112 = arith.subf %102, %111 : vector<16x32xf32>
    %113 = arith.mulf %112, %112 : vector<16x32xf32>
    %cst_52 = arith.constant dense<0.000000e+00> : vector<16xf32>
    %114 = vector.multi_reduction <add>, %113, %cst_52 [1] : vector<16x32xf32> to vector<16xf32>
    %115 = vector.shape_cast %114 : vector<16xf32> to vector<16x1xf32>
    %cst_53 = arith.constant 3.200000e+01 : f32
    %116 = vector.broadcast %cst_53 : f32 to vector<16x1xf32>
    %117 = arith.divf %115, %116 : vector<16x1xf32>
    %118 = vector.broadcast %110 : vector<16x1xf32> to vector<16x32xf32>
    %119 = arith.subf %102, %118 : vector<16x32xf32>
    %cst_54 = arith.constant 9.99999974E-6 : f32
    %120 = vector.broadcast %cst_54 : f32 to vector<16x1xf32>
    %121 = arith.addf %117, %120 : vector<16x1xf32>
    %122 = math.rsqrt %121 : vector<16x1xf32>
    %123 = vector.broadcast %122 : vector<16x1xf32> to vector<16x32xf32>
    %124 = arith.mulf %119, %123 : vector<16x32xf32>
    %125 = vector.broadcast %104 : vector<1x32xf32> to vector<16x32xf32>
    %126 = arith.mulf %124, %125 : vector<16x32xf32>
    %127 = vector.broadcast %106 : vector<1x32xf32> to vector<16x32xf32>
    %128 = arith.addf %126, %127 : vector<16x32xf32>
    %c0_55 = arith.constant 0 : index
    %c0_56 = arith.constant 0 : index
    %c0_57 = arith.constant 0 : index
    %129 = vector.load %arg8[%c0_55, %c0_56, %c0_57] : memref<2x32x64xf32, #tpu.memory_space<vmem>>, vector<1x32x64xf32>
    %130 = vector.shape_cast %129 : vector<1x32x64xf32> to vector<32x64xf32>
    %cst_58 = arith.constant dense<0.000000e+00> : vector<16x64xf32>
    %131 = tpu.matmul %128, %130, %cst_58 {dimension_numbers = #tpu.dot_dimension_numbers<[1], [0], [0], [1], [0, 0, 1, 1], [], []>} : vector<16x32xf32>, vector<32x64xf32>, vector<16x64xf32> -> vector<16x64xf32>
    %c0_59 = arith.constant 0 : index
    %c0_60 = arith.constant 0 : index
    %c0_61 = arith.constant 0 : index
    %132 = vector.load %arg9[%c0_59, %c0_60, %c0_61] : memref<2x1x64xf32, #tpu.memory_space<vmem>>, vector<1x1x64xf32>
    %133 = vector.shape_cast %132 : vector<1x1x64xf32> to vector<1x64xf32>
    %134 = vector.broadcast %133 : vector<1x64xf32> to vector<16x64xf32>
    %135 = arith.addf %131, %134 : vector<16x64xf32>
    %cst_62 = arith.constant 0.000000e+00 : f32
    %136 = vector.broadcast %cst_62 : f32 to vector<16x64xf32>
    %137 = arith.maximumf %135, %136 : vector<16x64xf32>
    %c0_63 = arith.constant 0 : index
    %c0_64 = arith.constant 0 : index
    %c0_65 = arith.constant 0 : index
    %138 = vector.load %arg10[%c0_63, %c0_64, %c0_65] : memref<2x64x32xf32, #tpu.memory_space<vmem>>, vector<1x64x32xf32>
    %139 = vector.shape_cast %138 : vector<1x64x32xf32> to vector<64x32xf32>
    %cst_66 = arith.constant dense<0.000000e+00> : vector<16x32xf32>
    %140 = tpu.matmul %137, %139, %cst_66 {dimension_numbers = #tpu.dot_dimension_numbers<[1], [0], [0], [1], [0, 0, 1, 1], [], []>} : vector<16x64xf32>, vector<64x32xf32>, vector<16x32xf32> -> vector<16x32xf32>
    %c0_67 = arith.constant 0 : index
    %c0_68 = arith.constant 0 : index
    %c0_69 = arith.constant 0 : index
    %141 = vector.load %arg11[%c0_67, %c0_68, %c0_69] : memref<2x1x32xf32, #tpu.memory_space<vmem>>, vector<1x1x32xf32>
    %142 = vector.shape_cast %141 : vector<1x1x32xf32> to vector<1x32xf32>
    %143 = vector.broadcast %142 : vector<1x32xf32> to vector<16x32xf32>
    %144 = arith.addf %140, %143 : vector<16x32xf32>
    %145 = arith.addf %128, %144 : vector<16x32xf32>
    %c0_70 = arith.constant 0 : index
    %c0_71 = arith.constant 0 : index
    %c0_72 = arith.constant 0 : index
    %146 = vector.load %arg14[%c0_70, %c0_71, %c0_72] : memref<2x1x32xf32, #tpu.memory_space<vmem>>, vector<1x1x32xf32>
    %147 = vector.shape_cast %146 : vector<1x1x32xf32> to vector<1x32xf32>
    %c0_73 = arith.constant 0 : index
    %c0_74 = arith.constant 0 : index
    %c0_75 = arith.constant 0 : index
    %148 = vector.load %arg15[%c0_73, %c0_74, %c0_75] : memref<2x1x32xf32, #tpu.memory_space<vmem>>, vector<1x1x32xf32>
    %149 = vector.shape_cast %148 : vector<1x1x32xf32> to vector<1x32xf32>
    %cst_76 = arith.constant dense<0.000000e+00> : vector<16xf32>
    %150 = vector.multi_reduction <add>, %145, %cst_76 [1] : vector<16x32xf32> to vector<16xf32>
    %151 = vector.shape_cast %150 : vector<16xf32> to vector<16x1xf32>
    %cst_77 = arith.constant 3.200000e+01 : f32
    %152 = vector.broadcast %cst_77 : f32 to vector<16x1xf32>
    %153 = arith.divf %151, %152 : vector<16x1xf32>
    %154 = vector.broadcast %153 : vector<16x1xf32> to vector<16x32xf32>
    %155 = arith.subf %145, %154 : vector<16x32xf32>
    %156 = arith.mulf %155, %155 : vector<16x32xf32>
    %cst_78 = arith.constant dense<0.000000e+00> : vector<16xf32>
    %157 = vector.multi_reduction <add>, %156, %cst_78 [1] : vector<16x32xf32> to vector<16xf32>
    %158 = vector.shape_cast %157 : vector<16xf32> to vector<16x1xf32>
    %cst_79 = arith.constant 3.200000e+01 : f32
    %159 = vector.broadcast %cst_79 : f32 to vector<16x1xf32>
    %160 = arith.divf %158, %159 : vector<16x1xf32>
    %161 = vector.broadcast %153 : vector<16x1xf32> to vector<16x32xf32>
    %162 = arith.subf %145, %161 : vector<16x32xf32>
    %cst_80 = arith.constant 9.99999974E-6 : f32
    %163 = vector.broadcast %cst_80 : f32 to vector<16x1xf32>
    %164 = arith.addf %160, %163 : vector<16x1xf32>
    %165 = math.rsqrt %164 : vector<16x1xf32>
    %166 = vector.broadcast %165 : vector<16x1xf32> to vector<16x32xf32>
    %167 = arith.mulf %162, %166 : vector<16x32xf32>
    %168 = vector.broadcast %147 : vector<1x32xf32> to vector<16x32xf32>
    %169 = arith.mulf %167, %168 : vector<16x32xf32>
    %170 = vector.broadcast %149 : vector<1x32xf32> to vector<16x32xf32>
    %171 = arith.addf %169, %170 : vector<16x32xf32>
    %c1 = arith.constant 1 : index
    %c0_81 = arith.constant 0 : index
    %c0_82 = arith.constant 0 : index
    %172 = vector.load %arg4[%c1, %c0_81, %c0_82] : memref<2x32x96xf32, #tpu.memory_space<vmem>>, vector<1x32x96xf32>
    %173 = vector.shape_cast %172 : vector<1x32x96xf32> to vector<32x96xf32>
    %cst_83 = arith.constant dense<0.000000e+00> : vector<16x96xf32>
    %174 = tpu.matmul %171, %173, %cst_83 {dimension_numbers = #tpu.dot_dimension_numbers<[1], [0], [0], [1], [0, 0, 1, 1], [], []>} : vector<16x32xf32>, vector<32x96xf32>, vector<16x96xf32> -> vector<16x96xf32>
    %c1_84 = arith.constant 1 : index
    %c0_85 = arith.constant 0 : index
    %c0_86 = arith.constant 0 : index
    %175 = vector.load %arg5[%c1_84, %c0_85, %c0_86] : memref<2x1x96xf32, #tpu.memory_space<vmem>>, vector<1x1x96xf32>
    %176 = vector.shape_cast %175 : vector<1x1x96xf32> to vector<1x96xf32>
    %177 = vector.broadcast %176 : vector<1x96xf32> to vector<16x96xf32>
    %178 = arith.addf %174, %177 : vector<16x96xf32>
    %c1_87 = arith.constant 1 : index
    %c0_88 = arith.constant 0 : index
    %c0_89 = arith.constant 0 : index
    %179 = vector.load %arg6[%c1_87, %c0_88, %c0_89] : memref<2x32x32xf32, #tpu.memory_space<vmem>>, vector<1x32x32xf32>
    %180 = vector.shape_cast %179 : vector<1x32x32xf32> to vector<32x32xf32>
    %181 = vector.extract_strided_slice %178 {offsets = [0, 0], sizes = [16, 8], strides = [1, 1]} : vector<16x96xf32> to vector<16x8xf32>
    %cst_90 = arith.constant 0.353553385 : f32
    %182 = vector.broadcast %cst_90 : f32 to vector<16x8xf32>
    %183 = arith.mulf %181, %182 : vector<16x8xf32>
    %184 = vector.extract_strided_slice %178 {offsets = [0, 32], sizes = [16, 8], strides = [1, 1]} : vector<16x96xf32> to vector<16x8xf32>
    %185 = vector.extract_strided_slice %178 {offsets = [0, 64], sizes = [16, 8], strides = [1, 1]} : vector<16x96xf32> to vector<16x8xf32>
    %cst_91 = arith.constant dense<0.000000e+00> : vector<16x16xf32>
    %186 = tpu.matmul %183, %184, %cst_91 {dimension_numbers = #tpu.dot_dimension_numbers<[1], [1], [0], [0], [0, 0, 1, 0], [], []>} : vector<16x8xf32>, vector<16x8xf32>, vector<16x16xf32> -> vector<16x16xf32>
    %187 = arith.addf %186, %5 : vector<16x16xf32>
    %cst_92 = arith.constant dense<0xFF800000> : vector<16xf32>
    %188 = vector.multi_reduction <maximumf>, %187, %cst_92 [1] : vector<16x16xf32> to vector<16xf32>
    %189 = vector.shape_cast %188 : vector<16xf32> to vector<16x1xf32>
    %190 = vector.broadcast %189 : vector<16x1xf32> to vector<16x16xf32>
    %191 = arith.subf %187, %190 : vector<16x16xf32>
    %192 = math.exp %191 : vector<16x16xf32>
    %cst_93 = arith.constant dense<0.000000e+00> : vector<16xf32>
    %193 = vector.multi_reduction <add>, %192, %cst_93 [1] : vector<16x16xf32> to vector<16xf32>
    %194 = vector.shape_cast %193 : vector<16xf32> to vector<16x1xf32>
    %195 = tpu.reciprocal %194 {approx = true} : vector<16x1xf32> -> vector<16x1xf32>
    %196 = vector.broadcast %195 : vector<16x1xf32> to vector<16x16xf32>
    %197 = arith.mulf %192, %196 : vector<16x16xf32>
    %cst_94 = arith.constant dense<0.000000e+00> : vector<16x8xf32>
    %198 = tpu.matmul %197, %185, %cst_94 {dimension_numbers = #tpu.dot_dimension_numbers<[1], [0], [0], [1], [0, 0, 1, 1], [], []>} : vector<16x16xf32>, vector<16x8xf32>, vector<16x8xf32> -> vector<16x8xf32>
    %199 = vector.extract_strided_slice %180 {offsets = [0, 0], sizes = [8, 32], strides = [1, 1]} : vector<32x32xf32> to vector<8x32xf32>
    %cst_95 = arith.constant dense<0.000000e+00> : vector<16x32xf32>
    %200 = tpu.matmul %198, %199, %cst_95 {dimension_numbers = #tpu.dot_dimension_numbers<[1], [0], [0], [1], [0, 0, 1, 1], [], []>} : vector<16x8xf32>, vector<8x32xf32>, vector<16x32xf32> -> vector<16x32xf32>
    %201 = vector.extract_strided_slice %178 {offsets = [0, 8], sizes = [16, 8], strides = [1, 1]} : vector<16x96xf32> to vector<16x8xf32>
    %cst_96 = arith.constant 0.353553385 : f32
    %202 = vector.broadcast %cst_96 : f32 to vector<16x8xf32>
    %203 = arith.mulf %201, %202 : vector<16x8xf32>
    %204 = vector.extract_strided_slice %178 {offsets = [0, 40], sizes = [16, 8], strides = [1, 1]} : vector<16x96xf32> to vector<16x8xf32>
    %205 = vector.extract_strided_slice %178 {offsets = [0, 72], sizes = [16, 8], strides = [1, 1]} : vector<16x96xf32> to vector<16x8xf32>
    %cst_97 = arith.constant dense<0.000000e+00> : vector<16x16xf32>
    %206 = tpu.matmul %203, %204, %cst_97 {dimension_numbers = #tpu.dot_dimension_numbers<[1], [1], [0], [0], [0, 0, 1, 0], [], []>} : vector<16x8xf32>, vector<16x8xf32>, vector<16x16xf32> -> vector<16x16xf32>
    %207 = arith.addf %206, %5 : vector<16x16xf32>
    %cst_98 = arith.constant dense<0xFF800000> : vector<16xf32>
    %208 = vector.multi_reduction <maximumf>, %207, %cst_98 [1] : vector<16x16xf32> to vector<16xf32>
    %209 = vector.shape_cast %208 : vector<16xf32> to vector<16x1xf32>
    %210 = vector.broadcast %209 : vector<16x1xf32> to vector<16x16xf32>
    %211 = arith.subf %207, %210 : vector<16x16xf32>
    %212 = math.exp %211 : vector<16x16xf32>
    %cst_99 = arith.constant dense<0.000000e+00> : vector<16xf32>
    %213 = vector.multi_reduction <add>, %212, %cst_99 [1] : vector<16x16xf32> to vector<16xf32>
    %214 = vector.shape_cast %213 : vector<16xf32> to vector<16x1xf32>
    %215 = tpu.reciprocal %214 {approx = true} : vector<16x1xf32> -> vector<16x1xf32>
    %216 = vector.broadcast %215 : vector<16x1xf32> to vector<16x16xf32>
    %217 = arith.mulf %212, %216 : vector<16x16xf32>
    %cst_100 = arith.constant dense<0.000000e+00> : vector<16x8xf32>
    %218 = tpu.matmul %217, %205, %cst_100 {dimension_numbers = #tpu.dot_dimension_numbers<[1], [0], [0], [1], [0, 0, 1, 1], [], []>} : vector<16x16xf32>, vector<16x8xf32>, vector<16x8xf32> -> vector<16x8xf32>
    %219 = vector.extract_strided_slice %180 {offsets = [8, 0], sizes = [8, 32], strides = [1, 1]} : vector<32x32xf32> to vector<8x32xf32>
    %cst_101 = arith.constant dense<0.000000e+00> : vector<16x32xf32>
    %220 = tpu.matmul %218, %219, %cst_101 {dimension_numbers = #tpu.dot_dimension_numbers<[1], [0], [0], [1], [0, 0, 1, 1], [], []>} : vector<16x8xf32>, vector<8x32xf32>, vector<16x32xf32> -> vector<16x32xf32>
    %221 = arith.addf %200, %220 : vector<16x32xf32>
    %222 = vector.extract_strided_slice %178 {offsets = [0, 16], sizes = [16, 8], strides = [1, 1]} : vector<16x96xf32> to vector<16x8xf32>
    %cst_102 = arith.constant 0.353553385 : f32
    %223 = vector.broadcast %cst_102 : f32 to vector<16x8xf32>
    %224 = arith.mulf %222, %223 : vector<16x8xf32>
    %225 = vector.extract_strided_slice %178 {offsets = [0, 48], sizes = [16, 8], strides = [1, 1]} : vector<16x96xf32> to vector<16x8xf32>
    %226 = vector.extract_strided_slice %178 {offsets = [0, 80], sizes = [16, 8], strides = [1, 1]} : vector<16x96xf32> to vector<16x8xf32>
    %cst_103 = arith.constant dense<0.000000e+00> : vector<16x16xf32>
    %227 = tpu.matmul %224, %225, %cst_103 {dimension_numbers = #tpu.dot_dimension_numbers<[1], [1], [0], [0], [0, 0, 1, 0], [], []>} : vector<16x8xf32>, vector<16x8xf32>, vector<16x16xf32> -> vector<16x16xf32>
    %228 = arith.addf %227, %5 : vector<16x16xf32>
    %cst_104 = arith.constant dense<0xFF800000> : vector<16xf32>
    %229 = vector.multi_reduction <maximumf>, %228, %cst_104 [1] : vector<16x16xf32> to vector<16xf32>
    %230 = vector.shape_cast %229 : vector<16xf32> to vector<16x1xf32>
    %231 = vector.broadcast %230 : vector<16x1xf32> to vector<16x16xf32>
    %232 = arith.subf %228, %231 : vector<16x16xf32>
    %233 = math.exp %232 : vector<16x16xf32>
    %cst_105 = arith.constant dense<0.000000e+00> : vector<16xf32>
    %234 = vector.multi_reduction <add>, %233, %cst_105 [1] : vector<16x16xf32> to vector<16xf32>
    %235 = vector.shape_cast %234 : vector<16xf32> to vector<16x1xf32>
    %236 = tpu.reciprocal %235 {approx = true} : vector<16x1xf32> -> vector<16x1xf32>
    %237 = vector.broadcast %236 : vector<16x1xf32> to vector<16x16xf32>
    %238 = arith.mulf %233, %237 : vector<16x16xf32>
    %cst_106 = arith.constant dense<0.000000e+00> : vector<16x8xf32>
    %239 = tpu.matmul %238, %226, %cst_106 {dimension_numbers = #tpu.dot_dimension_numbers<[1], [0], [0], [1], [0, 0, 1, 1], [], []>} : vector<16x16xf32>, vector<16x8xf32>, vector<16x8xf32> -> vector<16x8xf32>
    %240 = vector.extract_strided_slice %180 {offsets = [16, 0], sizes = [8, 32], strides = [1, 1]} : vector<32x32xf32> to vector<8x32xf32>
    %cst_107 = arith.constant dense<0.000000e+00> : vector<16x32xf32>
    %241 = tpu.matmul %239, %240, %cst_107 {dimension_numbers = #tpu.dot_dimension_numbers<[1], [0], [0], [1], [0, 0, 1, 1], [], []>} : vector<16x8xf32>, vector<8x32xf32>, vector<16x32xf32> -> vector<16x32xf32>
    %242 = arith.addf %221, %241 : vector<16x32xf32>
    %243 = vector.extract_strided_slice %178 {offsets = [0, 24], sizes = [16, 8], strides = [1, 1]} : vector<16x96xf32> to vector<16x8xf32>
    %cst_108 = arith.constant 0.353553385 : f32
    %244 = vector.broadcast %cst_108 : f32 to vector<16x8xf32>
    %245 = arith.mulf %243, %244 : vector<16x8xf32>
    %246 = vector.extract_strided_slice %178 {offsets = [0, 56], sizes = [16, 8], strides = [1, 1]} : vector<16x96xf32> to vector<16x8xf32>
    %247 = vector.extract_strided_slice %178 {offsets = [0, 88], sizes = [16, 8], strides = [1, 1]} : vector<16x96xf32> to vector<16x8xf32>
    %cst_109 = arith.constant dense<0.000000e+00> : vector<16x16xf32>
    %248 = tpu.matmul %245, %246, %cst_109 {dimension_numbers = #tpu.dot_dimension_numbers<[1], [1], [0], [0], [0, 0, 1, 0], [], []>} : vector<16x8xf32>, vector<16x8xf32>, vector<16x16xf32> -> vector<16x16xf32>
    %249 = arith.addf %248, %5 : vector<16x16xf32>
    %cst_110 = arith.constant dense<0xFF800000> : vector<16xf32>
    %250 = vector.multi_reduction <maximumf>, %249, %cst_110 [1] : vector<16x16xf32> to vector<16xf32>
    %251 = vector.shape_cast %250 : vector<16xf32> to vector<16x1xf32>
    %252 = vector.broadcast %251 : vector<16x1xf32> to vector<16x16xf32>
    %253 = arith.subf %249, %252 : vector<16x16xf32>
    %254 = math.exp %253 : vector<16x16xf32>
    %cst_111 = arith.constant dense<0.000000e+00> : vector<16xf32>
    %255 = vector.multi_reduction <add>, %254, %cst_111 [1] : vector<16x16xf32> to vector<16xf32>
    %256 = vector.shape_cast %255 : vector<16xf32> to vector<16x1xf32>
    %257 = tpu.reciprocal %256 {approx = true} : vector<16x1xf32> -> vector<16x1xf32>
    %258 = vector.broadcast %257 : vector<16x1xf32> to vector<16x16xf32>
    %259 = arith.mulf %254, %258 : vector<16x16xf32>
    %cst_112 = arith.constant dense<0.000000e+00> : vector<16x8xf32>
    %260 = tpu.matmul %259, %247, %cst_112 {dimension_numbers = #tpu.dot_dimension_numbers<[1], [0], [0], [1], [0, 0, 1, 1], [], []>} : vector<16x16xf32>, vector<16x8xf32>, vector<16x8xf32> -> vector<16x8xf32>
    %261 = vector.extract_strided_slice %180 {offsets = [24, 0], sizes = [8, 32], strides = [1, 1]} : vector<32x32xf32> to vector<8x32xf32>
    %cst_113 = arith.constant dense<0.000000e+00> : vector<16x32xf32>
    %262 = tpu.matmul %260, %261, %cst_113 {dimension_numbers = #tpu.dot_dimension_numbers<[1], [0], [0], [1], [0, 0, 1, 1], [], []>} : vector<16x8xf32>, vector<8x32xf32>, vector<16x32xf32> -> vector<16x32xf32>
    %263 = arith.addf %242, %262 : vector<16x32xf32>
    %c1_114 = arith.constant 1 : index
    %c0_115 = arith.constant 0 : index
    %c0_116 = arith.constant 0 : index
    %264 = vector.load %arg7[%c1_114, %c0_115, %c0_116] : memref<2x1x32xf32, #tpu.memory_space<vmem>>, vector<1x1x32xf32>
    %265 = vector.shape_cast %264 : vector<1x1x32xf32> to vector<1x32xf32>
    %266 = vector.broadcast %265 : vector<1x32xf32> to vector<16x32xf32>
    %267 = arith.addf %263, %266 : vector<16x32xf32>
    %268 = arith.addf %171, %267 : vector<16x32xf32>
    %c1_117 = arith.constant 1 : index
    %c0_118 = arith.constant 0 : index
    %c0_119 = arith.constant 0 : index
    %269 = vector.load %arg12[%c1_117, %c0_118, %c0_119] : memref<2x1x32xf32, #tpu.memory_space<vmem>>, vector<1x1x32xf32>
    %270 = vector.shape_cast %269 : vector<1x1x32xf32> to vector<1x32xf32>
    %c1_120 = arith.constant 1 : index
    %c0_121 = arith.constant 0 : index
    %c0_122 = arith.constant 0 : index
    %271 = vector.load %arg13[%c1_120, %c0_121, %c0_122] : memref<2x1x32xf32, #tpu.memory_space<vmem>>, vector<1x1x32xf32>
    %272 = vector.shape_cast %271 : vector<1x1x32xf32> to vector<1x32xf32>
    %cst_123 = arith.constant dense<0.000000e+00> : vector<16xf32>
    %273 = vector.multi_reduction <add>, %268, %cst_123 [1] : vector<16x32xf32> to vector<16xf32>
    %274 = vector.shape_cast %273 : vector<16xf32> to vector<16x1xf32>
    %cst_124 = arith.constant 3.200000e+01 : f32
    %275 = vector.broadcast %cst_124 : f32 to vector<16x1xf32>
    %276 = arith.divf %274, %275 : vector<16x1xf32>
    %277 = vector.broadcast %276 : vector<16x1xf32> to vector<16x32xf32>
    %278 = arith.subf %268, %277 : vector<16x32xf32>
    %279 = arith.mulf %278, %278 : vector<16x32xf32>
    %cst_125 = arith.constant dense<0.000000e+00> : vector<16xf32>
    %280 = vector.multi_reduction <add>, %279, %cst_125 [1] : vector<16x32xf32> to vector<16xf32>
    %281 = vector.shape_cast %280 : vector<16xf32> to vector<16x1xf32>
    %cst_126 = arith.constant 3.200000e+01 : f32
    %282 = vector.broadcast %cst_126 : f32 to vector<16x1xf32>
    %283 = arith.divf %281, %282 : vector<16x1xf32>
    %284 = vector.broadcast %276 : vector<16x1xf32> to vector<16x32xf32>
    %285 = arith.subf %268, %284 : vector<16x32xf32>
    %cst_127 = arith.constant 9.99999974E-6 : f32
    %286 = vector.broadcast %cst_127 : f32 to vector<16x1xf32>
    %287 = arith.addf %283, %286 : vector<16x1xf32>
    %288 = math.rsqrt %287 : vector<16x1xf32>
    %289 = vector.broadcast %288 : vector<16x1xf32> to vector<16x32xf32>
    %290 = arith.mulf %285, %289 : vector<16x32xf32>
    %291 = vector.broadcast %270 : vector<1x32xf32> to vector<16x32xf32>
    %292 = arith.mulf %290, %291 : vector<16x32xf32>
    %293 = vector.broadcast %272 : vector<1x32xf32> to vector<16x32xf32>
    %294 = arith.addf %292, %293 : vector<16x32xf32>
    %c1_128 = arith.constant 1 : index
    %c0_129 = arith.constant 0 : index
    %c0_130 = arith.constant 0 : index
    %295 = vector.load %arg8[%c1_128, %c0_129, %c0_130] : memref<2x32x64xf32, #tpu.memory_space<vmem>>, vector<1x32x64xf32>
    %296 = vector.shape_cast %295 : vector<1x32x64xf32> to vector<32x64xf32>
    %cst_131 = arith.constant dense<0.000000e+00> : vector<16x64xf32>
    %297 = tpu.matmul %294, %296, %cst_131 {dimension_numbers = #tpu.dot_dimension_numbers<[1], [0], [0], [1], [0, 0, 1, 1], [], []>} : vector<16x32xf32>, vector<32x64xf32>, vector<16x64xf32> -> vector<16x64xf32>
    %c1_132 = arith.constant 1 : index
    %c0_133 = arith.constant 0 : index
    %c0_134 = arith.constant 0 : index
    %298 = vector.load %arg9[%c1_132, %c0_133, %c0_134] : memref<2x1x64xf32, #tpu.memory_space<vmem>>, vector<1x1x64xf32>
    %299 = vector.shape_cast %298 : vector<1x1x64xf32> to vector<1x64xf32>
    %300 = vector.broadcast %299 : vector<1x64xf32> to vector<16x64xf32>
    %301 = arith.addf %297, %300 : vector<16x64xf32>
    %cst_135 = arith.constant 0.000000e+00 : f32
    %302 = vector.broadcast %cst_135 : f32 to vector<16x64xf32>
    %303 = arith.maximumf %301, %302 : vector<16x64xf32>
    %c1_136 = arith.constant 1 : index
    %c0_137 = arith.constant 0 : index
    %c0_138 = arith.constant 0 : index
    %304 = vector.load %arg10[%c1_136, %c0_137, %c0_138] : memref<2x64x32xf32, #tpu.memory_space<vmem>>, vector<1x64x32xf32>
    %305 = vector.shape_cast %304 : vector<1x64x32xf32> to vector<64x32xf32>
    %cst_139 = arith.constant dense<0.000000e+00> : vector<16x32xf32>
    %306 = tpu.matmul %303, %305, %cst_139 {dimension_numbers = #tpu.dot_dimension_numbers<[1], [0], [0], [1], [0, 0, 1, 1], [], []>} : vector<16x64xf32>, vector<64x32xf32>, vector<16x32xf32> -> vector<16x32xf32>
    %c1_140 = arith.constant 1 : index
    %c0_141 = arith.constant 0 : index
    %c0_142 = arith.constant 0 : index
    %307 = vector.load %arg11[%c1_140, %c0_141, %c0_142] : memref<2x1x32xf32, #tpu.memory_space<vmem>>, vector<1x1x32xf32>
    %308 = vector.shape_cast %307 : vector<1x1x32xf32> to vector<1x32xf32>
    %309 = vector.broadcast %308 : vector<1x32xf32> to vector<16x32xf32>
    %310 = arith.addf %306, %309 : vector<16x32xf32>
    %311 = arith.addf %294, %310 : vector<16x32xf32>
    %c1_143 = arith.constant 1 : index
    %c0_144 = arith.constant 0 : index
    %c0_145 = arith.constant 0 : index
    %312 = vector.load %arg14[%c1_143, %c0_144, %c0_145] : memref<2x1x32xf32, #tpu.memory_space<vmem>>, vector<1x1x32xf32>
    %313 = vector.shape_cast %312 : vector<1x1x32xf32> to vector<1x32xf32>
    %c1_146 = arith.constant 1 : index
    %c0_147 = arith.constant 0 : index
    %c0_148 = arith.constant 0 : index
    %314 = vector.load %arg15[%c1_146, %c0_147, %c0_148] : memref<2x1x32xf32, #tpu.memory_space<vmem>>, vector<1x1x32xf32>
    %315 = vector.shape_cast %314 : vector<1x1x32xf32> to vector<1x32xf32>
    %cst_149 = arith.constant dense<0.000000e+00> : vector<16xf32>
    %316 = vector.multi_reduction <add>, %311, %cst_149 [1] : vector<16x32xf32> to vector<16xf32>
    %317 = vector.shape_cast %316 : vector<16xf32> to vector<16x1xf32>
    %cst_150 = arith.constant 3.200000e+01 : f32
    %318 = vector.broadcast %cst_150 : f32 to vector<16x1xf32>
    %319 = arith.divf %317, %318 : vector<16x1xf32>
    %320 = vector.broadcast %319 : vector<16x1xf32> to vector<16x32xf32>
    %321 = arith.subf %311, %320 : vector<16x32xf32>
    %322 = arith.mulf %321, %321 : vector<16x32xf32>
    %cst_151 = arith.constant dense<0.000000e+00> : vector<16xf32>
    %323 = vector.multi_reduction <add>, %322, %cst_151 [1] : vector<16x32xf32> to vector<16xf32>
    %324 = vector.shape_cast %323 : vector<16xf32> to vector<16x1xf32>
    %cst_152 = arith.constant 3.200000e+01 : f32
    %325 = vector.broadcast %cst_152 : f32 to vector<16x1xf32>
    %326 = arith.divf %324, %325 : vector<16x1xf32>
    %327 = vector.broadcast %319 : vector<16x1xf32> to vector<16x32xf32>
    %328 = arith.subf %311, %327 : vector<16x32xf32>
    %cst_153 = arith.constant 9.99999974E-6 : f32
    %329 = vector.broadcast %cst_153 : f32 to vector<16x1xf32>
    %330 = arith.addf %326, %329 : vector<16x1xf32>
    %331 = math.rsqrt %330 : vector<16x1xf32>
    %332 = vector.broadcast %331 : vector<16x1xf32> to vector<16x32xf32>
    %333 = arith.mulf %328, %332 : vector<16x32xf32>
    %334 = vector.broadcast %313 : vector<1x32xf32> to vector<16x32xf32>
    %335 = arith.mulf %333, %334 : vector<16x32xf32>
    %336 = vector.broadcast %315 : vector<1x32xf32> to vector<16x32xf32>
    %337 = arith.addf %335, %336 : vector<16x32xf32>
    %338 = vector.extract_strided_slice %337 {offsets = [8, 0], sizes = [8, 32], strides = [1, 1]} : vector<16x32xf32> to vector<8x32xf32>
    %c0_154 = arith.constant 0 : index
    %c0_155 = arith.constant 0 : index
    %339 = vector.load %arg16[%c0_154, %c0_155] : memref<32x1xf32, #tpu.memory_space<vmem>>, vector<32x1xf32>
    %cst_156 = arith.constant dense<0.000000e+00> : vector<8x1xf32>
    %340 = tpu.matmul %338, %339, %cst_156 {dimension_numbers = #tpu.dot_dimension_numbers<[1], [0], [0], [1], [0, 0, 1, 1], [], []>} : vector<8x32xf32>, vector<32x1xf32>, vector<8x1xf32> -> vector<8x1xf32>
    %c0_157 = arith.constant 0 : index
    %c0_158 = arith.constant 0 : index
    %341 = vector.load %arg17[%c0_157, %c0_158] : memref<1x1xf32, #tpu.memory_space<vmem>>, vector<1x1xf32>
    %342 = vector.broadcast %341 : vector<1x1xf32> to vector<8x1xf32>
    %343 = arith.addf %340, %342 : vector<8x1xf32>
    %c0_159 = arith.constant 0 : index
    %c0_160 = arith.constant 0 : index
    %344 = vector.load %arg18[%c0_159, %c0_160] : memref<8x1xf32, #tpu.memory_space<vmem>>, vector<8x1xf32>
    tpu.vector_store %arg18[%c0_159, %c0_160], %343 {strides = array<i32>} : memref<8x1xf32, #tpu.memory_space<vmem>>, vector<8x1xf32>,
    return
  }
}

</mosaic_0001>

<llo_original>
// kernel: transformer_forward.1
$region0: #{transformer_forward.1}
  #allocation0 [shape = 'u32[]', space=smem, size = 0x4, offset = 0x4, fixed_abs, tag = 'smem constant byte address 0x4 - core index']
  #allocation1 [shape = 'u32[144,128]{1,0:T(1,128)}', space=vmem, size = 0x12000, scoped, tag = 'internal scratch']
  #allocation2 [shape = 'f32[1,1]{1,0:T(1,128)S(1)}', space=vmem, size = 0x200, scoped, tag = 'scoped memory for transformer_forward.1']
  %s0 = inlined_call_operand.vmem [shape: f32[16,16], index: 0, kind: input, shape index: {}]
  %s1 = inlined_call_operand.vmem [shape: f32[16,32], index: 1, kind: input, shape index: {}]
  %s2 = inlined_call_operand.vmem [shape: f32[16,16], index: 2, kind: input, shape index: {}]
  %s3 = inlined_call_operand.vmem [shape: f32[16,32], index: 3, kind: input, shape index: {}]
  %s4 = inlined_call_operand.vmem [shape: f32[2,32,96], index: 4, kind: input, shape index: {}]
  %s5 = inlined_call_operand.vmem [shape: f32[2,1,96], index: 5, kind: input, shape index: {}]
  %s6 = inlined_call_operand.vmem [shape: f32[2,32,32], index: 6, kind: input, shape index: {}]
  %s7 = inlined_call_operand.vmem [shape: f32[2,1,32], index: 7, kind: input, shape index: {}]
  %s8 = inlined_call_operand.vmem [shape: f32[2,32,64], index: 8, kind: input, shape index: {}]
  %s9 = inlined_call_operand.vmem [shape: f32[2,1,64], index: 9, kind: input, shape index: {}]
  %s10 = inlined_call_operand.vmem [shape: f32[2,64,32], index: 10, kind: input, shape index: {}]
  %s11 = inlined_call_operand.vmem [shape: f32[2,1,32], index: 11, kind: input, shape index: {}]
  %s12 = inlined_call_operand.vmem [shape: f32[2,1,32], index: 12, kind: input, shape index: {}]
  %s13 = inlined_call_operand.vmem [shape: f32[2,1,32], index: 13, kind: input, shape index: {}]
  %s14 = inlined_call_operand.vmem [shape: f32[2,1,32], index: 14, kind: input, shape index: {}]
  %s15 = inlined_call_operand.vmem [shape: f32[2,1,32], index: 15, kind: input, shape index: {}]
  %s16 = inlined_call_operand.vmem [shape: f32[32,1], index: 16, kind: input, shape index: {}]
  %s17 = inlined_call_operand.<no memory space> [shape: f32[1,1], index: 17, kind: input, shape index: {}]
  %s18 = inlined_call_operand.vmem [shape: f32[8,1], index: 18, kind: output, shape index: {}]
  %s19 = sld [smem:[#allocation0]]
  $region82: #{transformer_forward.1} parent=0
    _
  %s21 = ssub.s32 1, %s19
  %s22 = scalar_select 0, %s21, %s19
  %v23 = vstv %s17
  %24 = vst [vmem:[#allocation2] sm:$0x1] %v23
  // Predicated region
  $region2: #{transformer_forward.1} parent=0 // pred_check
    _
  $region3: #{transformer_forward.1} parent=0 // pred_check_branch
    %26 = sbr.rel (0) target = $region5
  $region4: #{transformer_forward.1} parent=0 // pred_region
    _
  $region5: #{transformer_forward.1} parent=0 // pred_fallthru
    _
  // Predicated region
  $region6: #{transformer_forward.1} parent=0 // pred_check
    _
  $region7: #{transformer_forward.1} parent=0 // pred_check_branch
    %28 = sbr.rel (0) target = $region9
  $region8: #{transformer_forward.1} parent=0 // pred_region
    _
  $region9: #{transformer_forward.1} parent=0 // pred_fallthru
    _
  // Predicated region
  $region10: #{transformer_forward.1} parent=0 // pred_check
    _
  $region11: #{transformer_forward.1} parent=0 // pred_check_branch
    %30 = sbr.rel (0) target = $region13
  $region12: #{transformer_forward.1} parent=0 // pred_region
    _
  $region13: #{transformer_forward.1} parent=0 // pred_fallthru
    _
  // Predicated region
  $region14: #{transformer_forward.1} parent=0 // pred_check
    _
  $region15: #{transformer_forward.1} parent=0 // pred_check_branch
    %32 = sbr.rel (0) target = $region17
  $region16: #{transformer_forward.1} parent=0 // pred_region
    _
  $region17: #{transformer_forward.1} parent=0 // pred_fallthru
    _
  // Predicated region
  $region18: #{transformer_forward.1} parent=0 // pred_check
    _
  $region19: #{transformer_forward.1} parent=0 // pred_check_branch
    %34 = sbr.rel (0) target = $region21
  $region20: #{transformer_forward.1} parent=0 // pred_region
    _
  $region21: #{transformer_forward.1} parent=0 // pred_fallthru
    _
  // Predicated region
  $region22: #{transformer_forward.1} parent=0 // pred_check
    _
  $region23: #{transformer_forward.1} parent=0 // pred_check_branch
    %36 = sbr.rel (0) target = $region25
  $region24: #{transformer_forward.1} parent=0 // pred_region
    _
  $region25: #{transformer_forward.1} parent=0 // pred_fallthru
    _
  // Predicated region
  $region26: #{transformer_forward.1} parent=0 // pred_check
    _
  $region27: #{transformer_forward.1} parent=0 // pred_check_branch
    %38 = sbr.rel (0) target = $region29
  $region28: #{transformer_forward.1} parent=0 // pred_region
    _
  $region29: #{transformer_forward.1} parent=0 // pred_fallthru
    _
  // Predicated region
  $region30: #{transformer_forward.1} parent=0 // pred_check
    _
  $region31: #{transformer_forward.1} parent=0 // pred_check_branch
    %40 = sbr.rel (0) target = $region33
  $region32: #{transformer_forward.1} parent=0 // pred_region
    _
  $region33: #{transformer_forward.1} parent=0 // pred_fallthru
    _
  // Predicated region
  $region34: #{transformer_forward.1} parent=0 // pred_check
    _
  $region35: #{transformer_forward.1} parent=0 // pred_check_branch
    %42 = sbr.rel (0) target = $region37
  $region36: #{transformer_forward.1} parent=0 // pred_region
    _
  $region37: #{transformer_forward.1} parent=0 // pred_fallthru
    _
  // Predicated region
  $region38: #{transformer_forward.1} parent=0 // pred_check
    _
  $region39: #{transformer_forward.1} parent=0 // pred_check_branch
    %44 = sbr.rel (0) target = $region41
  $region40: #{transformer_forward.1} parent=0 // pred_region
    _
  $region41: #{transformer_forward.1} parent=0 // pred_fallthru
    _
  // Predicated region
  $region42: #{transformer_forward.1} parent=0 // pred_check
    _
  $region43: #{transformer_forward.1} parent=0 // pred_check_branch
    %46 = sbr.rel (0) target = $region45
  $region44: #{transformer_forward.1} parent=0 // pred_region
    _
  $region45: #{transformer_forward.1} parent=0 // pred_fallthru
    _
  // Predicated region
  $region46: #{transformer_forward.1} parent=0 // pred_check
    _
  $region47: #{transformer_forward.1} parent=0 // pred_check_branch
    %48 = sbr.rel (0) target = $region49
  $region48: #{transformer_forward.1} parent=0 // pred_region
    _
  $region49: #{transformer_forward.1} parent=0 // pred_fallthru
    _
  // Predicated region
  $region50: #{transformer_forward.1} parent=0 // pred_check
    _
  $region51: #{transformer_forward.1} parent=0 // pred_check_branch
    %50 = sbr.rel (0) target = $region53
  $region52: #{transformer_forward.1} parent=0 // pred_region
    _
  $region53: #{transformer_forward.1} parent=0 // pred_fallthru
    _
  // Predicated region
  $region54: #{transformer_forward.1} parent=0 // pred_check
    _
  $region55: #{transformer_forward.1} parent=0 // pred_check_branch
    %52 = sbr.rel (0) target = $region57
  $region56: #{transformer_forward.1} parent=0 // pred_region
    _
  $region57: #{transformer_forward.1} parent=0 // pred_fallthru
    _
  // Predicated region
  $region58: #{transformer_forward.1} parent=0 // pred_check
    _
  $region59: #{transformer_forward.1} parent=0 // pred_check_branch
    %54 = sbr.rel (0) target = $region61
  $region60: #{transformer_forward.1} parent=0 // pred_region
    _
  $region61: #{transformer_forward.1} parent=0 // pred_fallthru
    _
  // Predicated region
  $region62: #{transformer_forward.1} parent=0 // pred_check
    _
  $region63: #{transformer_forward.1} parent=0 // pred_check_branch
    %56 = sbr.rel (0) target = $region65
  $region64: #{transformer_forward.1} parent=0 // pred_region
    _
  $region65: #{transformer_forward.1} parent=0 // pred_fallthru
    _
  // Predicated region
  $region66: #{transformer_forward.1} parent=0 // pred_check
    _
  $region67: #{transformer_forward.1} parent=0 // pred_check_branch
    %58 = sbr.rel (0) target = $region69
  $region68: #{transformer_forward.1} parent=0 // pred_region
    _
  $region69: #{transformer_forward.1} parent=0 // pred_fallthru
    _
  // Predicated region
  $region70: #{transformer_forward.1} parent=0 // pred_check
    _
  $region71: #{transformer_forward.1} parent=0 // pred_check_branch
    %60 = sbr.rel (0) target = $region73
  $region72: #{transformer_forward.1} parent=0 // pred_region
    _
  $region73: #{transformer_forward.1} parent=0 // pred_fallthru
    _
  %v61 = vld [vmem:[%s0] sm:$0xff]
  %v62 = vld [vmem:[%s0 + $0x8] sm:$0xff]
  %v63 = vld [vmem:[%s3] sm:$0xff]
  %v64 = vld [vmem:[%s3 + $0x8] sm:$0xff]
  %v65 = vld [vmem:[%s1] sm:$0xff]
  %v66 = vld [vmem:[%s1 + $0x8] sm:$0xff]
  %vm67 = vcmask 130048
  %v69 = vsel %vm67, %v61, 0
  %v72 = vsel %vm67, %v62, 0
  %74 = vmatprep.subr.mxu0 0.0
  %75 = vmatpush1.msra.mxu0 %v63
  %76 = vmatprep.subr.mxu0 0.0
  %77 = vmatpush1.msra.mxu0 %v64
  %78 = vmatprep.subr.mxu0 0.0
  %79 = vmatpush1.msra.mxu0 0.0
  %80 = vmatprep.subr.mxu0 0.0
  %81 = vmatpush1.msra.mxu0 0.0
  %82 = vmatprep.subr.mxu0 0.0
  %83 = vmatpush1.msra.mxu0 0.0
  %84 = vmatprep.subr.mxu0 0.0
  %85 = vmatpush1.msra.mxu0 0.0
  %86 = vmatprep.subr.mxu0 0.0
  %87 = vmatpush1.msra.mxu0 0.0
  %88 = vmatprep.subr.mxu0 0.0
  %89 = vmatpush1.msra.mxu0 0.0
  %90 = vmatprep.subr.mxu0 0.0
  %91 = vmatpush1.msra.mxu0 0.0
  %92 = vmatprep.subr.mxu0 0.0
  %93 = vmatpush1.msra.mxu0 0.0
  %94 = vmatprep.subr.mxu0 0.0
  %95 = vmatpush1.msra.mxu0 0.0
  %96 = vmatprep.subr.mxu0 0.0
  %97 = vmatpush1.msra.mxu0 0.0
  %98 = vmatprep.subr.mxu0 0.0
  %99 = vmatpush1.msra.mxu0 0.0
  %100 = vmatprep.subr.mxu0 0.0
  %101 = vmatpush1.msra.mxu0 0.0
  %102 = vmatprep.subr.mxu0 0.0
  %103 = vmatpush1.msra.mxu0 0.0
  %104 = vmatprep.subr.mxu0 0.0
  %105 = vmatpush1.msra.mxu0 0.0
  %106 = vmatprep.subr.mxu0 0.0
  %107 = vmatpush1.msra.mxu0 0.0
  %108 = vmatprep.subr.mxu0 0.0
  %109 = vmatpush1.msra.mxu0 0.0
  %110 = vmatprep.subr.mxu0 0.0
  %111 = vmatpush1.msra.mxu0 0.0
  %112 = vmatprep.subr.mxu0 0.0
  %113 = vmatpush1.msra.mxu0 0.0
  %114 = vmatprep.subr.mxu0 0.0
  %115 = vmatpush1.msra.mxu0 0.0
  %116 = vmatprep.subr.mxu0 0.0
  %117 = vmatpush1.msra.mxu0 0.0
  %118 = vmatprep.subr.mxu0 0.0
  %119 = vmatpush1.msra.mxu0 0.0
  %120 = vmatprep.subr.mxu0 0.0
  %121 = vmatpush1.msra.mxu0 0.0
  %122 = vmatprep.subr.mxu0 0.0
  %123 = vmatpush1.msra.mxu0 0.0
  %124 = vmatprep.subr.mxu0 0.0
  %125 = vmatpush1.msra.mxu0 0.0
  %126 = vmatprep.subr.mxu0 0.0
  %127 = vmatpush1.msra.mxu0 0.0
  %128 = vmatprep.subr.mxu0 0.0
  %129 = vmatpush1.msra.mxu0 0.0
  %130 = vmatprep.subr.mxu0 0.0
  %131 = vmatpush1.msra.mxu0 0.0
  %132 = vmatprep.subr.mxu0 0.0
  %133 = vmatpush1.msra.mxu0 0.0
  %134 = vmatprep.subr.mxu0 0.0
  %135 = vmatpush1.msra.mxu0 0.0
  %136 = vmatprep.subr.mxu0 0.0
  %137 = vmatpush1.msra.mxu0 0.0
  %138 = vmatprep.mubr.f32.mxu0 0.0
  %139 = vmatmul.mubr.f32.gmra.mrb[0].mxu0 %v69
  %v140 = vpop.f32.mrb[0].mxu0
  %v141 = vadd.f32 %v65, %v140
  %v142 = vpop.f32.mrb[0].mxu0
  %143 = vmatprep.mubr.f32.mxu0 0.0
  %144 = vmatmul.mubr.f32.gmra.mrb[0].mxu0 %v72
  %v145 = vpop.f32.mrb[0].mxu0
  %v146 = vadd.f32 %v66, %v145
  %v147 = vpop.f32.mrb[0].mxu0
  %148 = vdwg.mxu0
  %v149 = vld [vmem:[%s2] sm:$0xff]
  %v150 = vld [vmem:[%s2 + $0x8] sm:$0xff]
  %v151 = vld [vmem:[%s4] sm:$0xff]
  %v152 = vld [vmem:[%s4 + $0x8] sm:$0xff]
  %v153 = vld [vmem:[%s4 + $0x10] sm:$0xff]
  %v154 = vld [vmem:[%s4 + $0x18] sm:$0xff]
  %v155 = vld [vmem:[%s5] sm:$0x1]
  %v157 = vlaneseq
  %v158 = vshrl.u32 %v157, 7
  %v159 = vsub.s32 0, %v158
  %v160 = vrot.slane %v155, %v159
  %vm162 = vcmask 261120
  %v164 = vsel %vm162, %v141, 0
  %v167 = vsel %vm162, %v146, 0
  %169 = vmatprep.subr.mxu0 0.0
  %170 = vmatpush1.msra.mxu0 %v151
  %171 = vmatprep.subr.mxu0 0.0
  %172 = vmatpush1.msra.mxu0 %v152
  %173 = vmatprep.subr.mxu0 0.0
  %174 = vmatpush1.msra.mxu0 %v153
  %175 = vmatprep.subr.mxu0 0.0
  %176 = vmatpush1.msra.mxu0 %v154
  %177 = vmatprep.subr.mxu0 0.0
  %178 = vmatpush1.msra.mxu0 0.0
  %179 = vmatprep.subr.mxu0 0.0
  %180 = vmatpush1.msra.mxu0 0.0
  %181 = vmatprep.subr.mxu0 0.0
  %182 = vmatpush1.msra.mxu0 0.0
  %183 = vmatprep.subr.mxu0 0.0
  %184 = vmatpush1.msra.mxu0 0.0
  %185 = vmatprep.subr.mxu0 0.0
  %186 = vmatpush1.msra.mxu0 0.0
  %187 = vmatprep.subr.mxu0 0.0
  %188 = vmatpush1.msra.mxu0 0.0
  %189 = vmatprep.subr.mxu0 0.0
  %190 = vmatpush1.msra.mxu0 0.0
  %191 = vmatprep.subr.mxu0 0.0
  %192 = vmatpush1.msra.mxu0 0.0
  %193 = vmatprep.subr.mxu0 0.0
  %194 = vmatpush1.msra.mxu0 0.0
  %195 = vmatprep.subr.mxu0 0.0
  %196 = vmatpush1.msra.mxu0 0.0
  %197 = vmatprep.subr.mxu0 0.0
  %198 = vmatpush1.msra.mxu0 0.0
  %199 = vmatprep.subr.mxu0 0.0
  %200 = vmatpush1.msra.mxu0 0.0
  %201 = vmatprep.subr.mxu0 0.0
  %202 = vmatpush1.msra.mxu0 0.0
  %203 = vmatprep.subr.mxu0 0.0
  %204 = vmatpush1.msra.mxu0 0.0
  %205 = vmatprep.subr.mxu0 0.0
  %206 = vmatpush1.msra.mxu0 0.0
  %207 = vmatprep.subr.mxu0 0.0
  %208 = vmatpush1.msra.mxu0 0.0
  %209 = vmatprep.subr.mxu0 0.0
  %210 = vmatpush1.msra.mxu0 0.0
  %211 = vmatprep.subr.mxu0 0.0
  %212 = vmatpush1.msra.mxu0 0.0
  %213 = vmatprep.subr.mxu0 0.0
  %214 = vmatpush1.msra.mxu0 0.0
  %215 = vmatprep.subr.mxu0 0.0
  %216 = vmatpush1.msra.mxu0 0.0
  %217 = vmatprep.subr.mxu0 0.0
  %218 = vmatpush1.msra.mxu0 0.0
  %219 = vmatprep.subr.mxu0 0.0
  %220 = vmatpush1.msra.mxu0 0.0
  %221 = vmatprep.subr.mxu0 0.0
  %222 = vmatpush1.msra.mxu0 0.0
  %223 = vmatprep.subr.mxu0 0.0
  %224 = vmatpush1.msra.mxu0 0.0
  %225 = vmatprep.subr.mxu0 0.0
  %226 = vmatpush1.msra.mxu0 0.0
  %227 = vmatprep.subr.mxu0 0.0
  %228 = vmatpush1.msra.mxu0 0.0
  %229 = vmatprep.subr.mxu0 0.0
  %230 = vmatpush1.msra.mxu0 0.0
  %231 = vmatprep.subr.mxu0 0.0
  %232 = vmatpush1.msra.mxu0 0.0
  %233 = vmatprep.mubr.f32.mxu0 0.0
  %234 = vmatmul.mubr.f32.gmra.mrb[0].mxu0 %v164
  %v235 = vpop.f32.mrb[0].mxu0
  %v236 = vadd.f32 %v160, %v235
  %v237 = vpop.f32.mrb[0].mxu0
  %238 = vmatprep.mubr.f32.mxu0 0.0
  %239 = vmatmul.mubr.f32.gmra.mrb[0].mxu0 %v167
  %v240 = vpop.f32.mrb[0].mxu0
  %v241 = vadd.f32 %v160, %v240
  %v242 = vpop.f32.mrb[0].mxu0
  %243 = vdwg.mxu0
  %v244 = vld [vmem:[%s6] sm:$0xff]
  %v245 = vld [vmem:[%s6 + $0x8] sm:$0xff]
  %v246 = vld [vmem:[%s6 + $0x10] sm:$0xff]
  %v247 = vld [vmem:[%s6 + $0x18] sm:$0xff]
  %v248 = vmul.f32 %v236, 0.35355338
  %v249 = vmul.f32 %v241, 0.35355338
  %252 = vrot.lane.b32.xlu0 %v236, 96
  %v253 = vpop.permute.xlu0 %252
  %254 = vrot.lane.b32.xlu0 %v241, 96
  %v255 = vpop.permute.xlu0 %254
  %vm256 = vcmask 64512
  %v258 = vsel %vm256, %v248, 0
  %v261 = vsel %vm256, %v249, 0
  %v263 = vsel %vm256, %v253, 0
  %v265 = vsel %vm256, %v255, 0
  %267 = vmatprep.subr.mxu0 0.0
  %268 = vmatpush1.xpose.msra.mxu0 %v263
  %269 = vmatprep.subr.mxu0 0.0
  %270 = vmatpush1.xpose.msra.mxu0 %v265
  %271 = vmatprep.subr.mxu0 0.0
  %272 = vmatpush1.xpose.msra.mxu0 0.0
  %273 = vmatprep.subr.mxu0 0.0
  %274 = vmatpush1.xpose.msra.mxu0 0.0
  %275 = vmatprep.subr.mxu0 0.0
  %276 = vmatpush1.xpose.msra.mxu0 0.0
  %277 = vmatprep.subr.mxu0 0.0
  %278 = vmatpush1.xpose.msra.mxu0 0.0
  %279 = vmatprep.subr.mxu0 0.0
  %280 = vmatpush1.xpose.msra.mxu0 0.0
  %281 = vmatprep.subr.mxu0 0.0
  %282 = vmatpush1.xpose.msra.mxu0 0.0
  %283 = vmatprep.subr.mxu0 0.0
  %284 = vmatpush1.xpose.msra.mxu0 0.0
  %285 = vmatprep.subr.mxu0 0.0
  %286 = vmatpush1.xpose.msra.mxu0 0.0
  %287 = vmatprep.subr.mxu0 0.0
  %288 = vmatpush1.xpose.msra.mxu0 0.0
  %289 = vmatprep.subr.mxu0 0.0
  %290 = vmatpush1.xpose.msra.mxu0 0.0
  %291 = vmatprep.subr.mxu0 0.0
  %292 = vmatpush1.xpose.msra.mxu0 0.0
  %293 = vmatprep.subr.mxu0 0.0
  %294 = vmatpush1.xpose.msra.mxu0 0.0
  %295 = vmatprep.subr.mxu0 0.0
  %296 = vmatpush1.xpose.msra.mxu0 0.0
  %297 = vmatprep.subr.mxu0 0.0
  %298 = vmatpush1.xpose.msra.mxu0 0.0
  %299 = vmatprep.subr.mxu0 0.0
  %300 = vmatpush1.xpose.msra.mxu0 0.0
  %301 = vmatprep.subr.mxu0 0.0
  %302 = vmatpush1.xpose.msra.mxu0 0.0
  %303 = vmatprep.subr.mxu0 0.0
  %304 = vmatpush1.xpose.msra.mxu0 0.0
  %305 = vmatprep.subr.mxu0 0.0
  %306 = vmatpush1.xpose.msra.mxu0 0.0
  %307 = vmatprep.subr.mxu0 0.0
  %308 = vmatpush1.xpose.msra.mxu0 0.0
  %309 = vmatprep.subr.mxu0 0.0
  %310 = vmatpush1.xpose.msra.mxu0 0.0
  %311 = vmatprep.subr.mxu0 0.0
  %312 = vmatpush1.xpose.msra.mxu0 0.0
  %313 = vmatprep.subr.mxu0 0.0
  %314 = vmatpush1.xpose.msra.mxu0 0.0
  %315 = vmatprep.subr.mxu0 0.0
  %316 = vmatpush1.xpose.msra.mxu0 0.0
  %317 = vmatprep.subr.mxu0 0.0
  %318 = vmatpush1.xpose.msra.mxu0 0.0
  %319 = vmatprep.subr.mxu0 0.0
  %320 = vmatpush1.xpose.msra.mxu0 0.0
  %321 = vmatprep.subr.mxu0 0.0
  %322 = vmatpush1.xpose.msra.mxu0 0.0
  %323 = vmatprep.subr.mxu0 0.0
  %324 = vmatpush1.xpose.msra.mxu0 0.0
  %325 = vmatprep.subr.mxu0 0.0
  %326 = vmatpush1.xpose.msra.mxu0 0.0
  %327 = vmatprep.subr.mxu0 0.0
  %328 = vmatpush1.xpose.msra.mxu0 0.0
  %329 = vmatprep.subr.mxu0 0.0
  %330 = vmatpush1.xpose.msra.mxu0 0.0
  %331 = vmatprep.mubr.f32.mxu0 0.0
  %332 = vmatmul.mubr.f32.gmra.mrb[0].mxu0 %v258
  %v333 = vpop.f32.mrb[0].mxu0
  %v334 = vadd.f32 %v149, %v333
  %v335 = vpop.f32.mrb[0].mxu0
  %336 = vmatprep.mubr.f32.mxu0 0.0
  %337 = vmatmul.mubr.f32.gmra.mrb[0].mxu0 %v261
  %v338 = vpop.f32.mrb[0].mxu0
  %v339 = vadd.f32 %v150, %v338
  %v340 = vpop.f32.mrb[0].mxu0
  %341 = vdwg.mxu0
  %v342 = vsel %vm67, %v334, -inf
  %343 = vmax.xlane.f32.xlu0 %v342
  %v344 = vpop.xlane.xlu0 %343
  %v345 = vsel %vm67, %v339, -inf
  %346 = vmax.xlane.f32.xlu0 %v345
  %v347 = vpop.xlane.xlu0 %346
  %v348 = vsub.f32 %v334, %v344
  %v349 = vsub.f32 %v339, %v347
  %v350 = vmul.f32 %v348, 1.442695
  %v351 = vpow.pop %v350
  %v352 = vmul.f32 %v349, 1.442695
  %v353 = vpow.pop %v352
  %v354 = vsel %vm67, %v351, 0.0
  %355 = vadd.xlane.f32.xlu0 %v354
  %v356 = vpop.xlane.xlu0 %355
  %v357 = vsel %vm67, %v353, 0.0
  %358 = vadd.xlane.f32.xlu0 %v357
  %v359 = vpop.xlane.xlu0 %358
  %v360 = vrcp.pop %v356
  %v361 = vrcp.pop %v359
  %v362 = vmul.f32 %v351, %v360
  %v363 = vmul.f32 %v353, %v361
  %364 = vrot.lane.b32.xlu0 %v236, 64
  %v365 = vpop.permute.xlu0 %364
  %366 = vrot.lane.b32.xlu0 %v241, 64
  %v367 = vpop.permute.xlu0 %366
  %v371 = vsel %vm67, %v362, 0
  %v374 = vsel %vm67, %v363, 0
  %376 = vmatprep.subr.mxu0 0.0
  %377 = vmatpush1.msra.mxu0 %v365
  %378 = vmatprep.subr.mxu0 0.0
  %379 = vmatpush1.msra.mxu0 %v367
  %380 = vmatprep.subr.mxu0 0.0
  %381 = vmatpush1.msra.mxu0 0.0
  %382 = vmatprep.subr.mxu0 0.0
  %383 = vmatpush1.msra.mxu0 0.0
  %384 = vmatprep.subr.mxu0 0.0
  %385 = vmatpush1.msra.mxu0 0.0
  %386 = vmatprep.subr.mxu0 0.0
  %387 = vmatpush1.msra.mxu0 0.0
  %388 = vmatprep.subr.mxu0 0.0
  %389 = vmatpush1.msra.mxu0 0.0
  %390 = vmatprep.subr.mxu0 0.0
  %391 = vmatpush1.msra.mxu0 0.0
  %392 = vmatprep.subr.mxu0 0.0
  %393 = vmatpush1.msra.mxu0 0.0
  %394 = vmatprep.subr.mxu0 0.0
  %395 = vmatpush1.msra.mxu0 0.0
  %396 = vmatprep.subr.mxu0 0.0
  %397 = vmatpush1.msra.mxu0 0.0
  %398 = vmatprep.subr.mxu0 0.0
  %399 = vmatpush1.msra.mxu0 0.0
  %400 = vmatprep.subr.mxu0 0.0
  %401 = vmatpush1.msra.mxu0 0.0
  %402 = vmatprep.subr.mxu0 0.0
  %403 = vmatpush1.msra.mxu0 0.0
  %404 = vmatprep.subr.mxu0 0.0
  %405 = vmatpush1.msra.mxu0 0.0
  %406 = vmatprep.subr.mxu0 0.0
  %407 = vmatpush1.msra.mxu0 0.0
  %408 = vmatprep.subr.mxu0 0.0
  %409 = vmatpush1.msra.mxu0 0.0
  %410 = vmatprep.subr.mxu0 0.0
  %411 = vmatpush1.msra.mxu0 0.0
  %412 = vmatprep.subr.mxu0 0.0
  %413 = vmatpush1.msra.mxu0 0.0
  %414 = vmatprep.subr.mxu0 0.0
  %415 = vmatpush1.msra.mxu0 0.0
  %416 = vmatprep.subr.mxu0 0.0
  %417 = vmatpush1.msra.mxu0 0.0
  %418 = vmatprep.subr.mxu0 0.0
  %419 = vmatpush1.msra.mxu0 0.0
  %420 = vmatprep.subr.mxu0 0.0
  %421 = vmatpush1.msra.mxu0 0.0
  %422 = vmatprep.subr.mxu0 0.0
  %423 = vmatpush1.msra.mxu0 0.0
  %424 = vmatprep.subr.mxu0 0.0
  %425 = vmatpush1.msra.mxu0 0.0
  %426 = vmatprep.subr.mxu0 0.0
  %427 = vmatpush1.msra.mxu0 0.0
  %428 = vmatprep.subr.mxu0 0.0
  %429 = vmatpush1.msra.mxu0 0.0
  %430 = vmatprep.subr.mxu0 0.0
  %431 = vmatpush1.msra.mxu0 0.0
  %432 = vmatprep.subr.mxu0 0.0
  %433 = vmatpush1.msra.mxu0 0.0
  %434 = vmatprep.subr.mxu0 0.0
  %435 = vmatpush1.msra.mxu0 0.0
  %436 = vmatprep.subr.mxu0 0.0
  %437 = vmatpush1.msra.mxu0 0.0
  %438 = vmatprep.subr.mxu0 0.0
  %439 = vmatpush1.msra.mxu0 0.0
  %440 = vmatprep.mubr.f32.mxu0 0.0
  %441 = vmatmul.mubr.f32.gmra.mrb[0].mxu0 %v371
  %v442 = vpop.f32.mrb[0].mxu0
  %v443 = vadd.f32 0.0, %v442
  %v444 = vpop.f32.mrb[0].mxu0
  %445 = vmatprep.mubr.f32.mxu0 0.0
  %446 = vmatmul.mubr.f32.gmra.mrb[0].mxu0 %v374
  %v447 = vpop.f32.mrb[0].mxu0
  %v448 = vadd.f32 0.0, %v447
  %v449 = vpop.f32.mrb[0].mxu0
  %450 = vdwg.mxu0
  %451 = vrot.lane.b32.xlu0 %v248, 120
  %v452 = vpop.permute.xlu0 %451
  %453 = vrot.lane.b32.xlu0 %v249, 120
  %v454 = vpop.permute.xlu0 %453
  %455 = vrot.lane.b32.xlu0 %v236, 88
  %v456 = vpop.permute.xlu0 %455
  %457 = vrot.lane.b32.xlu0 %v241, 88
  %v458 = vpop.permute.xlu0 %457
  %v459 = vsel %vm256, %v452, 0
  %v461 = vsel %vm256, %v454, 0
  %v463 = vsel %vm256, %v456, 0
  %v465 = vsel %vm256, %v458, 0
  %467 = vmatprep.subr.mxu0 0.0
  %468 = vmatpush1.xpose.msra.mxu0 %v463
  %469 = vmatprep.subr.mxu0 0.0
  %470 = vmatpush1.xpose.msra.mxu0 %v465
  %471 = vmatprep.subr.mxu0 0.0
  %472 = vmatpush1.xpose.msra.mxu0 0.0
  %473 = vmatprep.subr.mxu0 0.0
  %474 = vmatpush1.xpose.msra.mxu0 0.0
  %475 = vmatprep.subr.mxu0 0.0
  %476 = vmatpush1.xpose.msra.mxu0 0.0
  %477 = vmatprep.subr.mxu0 0.0
  %478 = vmatpush1.xpose.msra.mxu0 0.0
  %479 = vmatprep.subr.mxu0 0.0
  %480 = vmatpush1.xpose.msra.mxu0 0.0
  %481 = vmatprep.subr.mxu0 0.0
  %482 = vmatpush1.xpose.msra.mxu0 0.0
  %483 = vmatprep.subr.mxu0 0.0
  %484 = vmatpush1.xpose.msra.mxu0 0.0
  %485 = vmatprep.subr.mxu0 0.0
  %486 = vmatpush1.xpose.msra.mxu0 0.0
  %487 = vmatprep.subr.mxu0 0.0
  %488 = vmatpush1.xpose.msra.mxu0 0.0
  %489 = vmatprep.subr.mxu0 0.0
  %490 = vmatpush1.xpose.msra.mxu0 0.0
  %491 = vmatprep.subr.mxu0 0.0
  %492 = vmatpush1.xpose.msra.mxu0 0.0
  %493 = vmatprep.subr.mxu0 0.0
  %494 = vmatpush1.xpose.msra.mxu0 0.0
  %495 = vmatprep.subr.mxu0 0.0
  %496 = vmatpush1.xpose.msra.mxu0 0.0
  %497 = vmatprep.subr.mxu0 0.0
  %498 = vmatpush1.xpose.msra.mxu0 0.0
  %499 = vmatprep.subr.mxu0 0.0
  %500 = vmatpush1.xpose.msra.mxu0 0.0
  %501 = vmatprep.subr.mxu0 0.0
  %502 = vmatpush1.xpose.msra.mxu0 0.0
  %503 = vmatprep.subr.mxu0 0.0
  %504 = vmatpush1.xpose.msra.mxu0 0.0
  %505 = vmatprep.subr.mxu0 0.0
  %506 = vmatpush1.xpose.msra.mxu0 0.0
  %507 = vmatprep.subr.mxu0 0.0
  %508 = vmatpush1.xpose.msra.mxu0 0.0
  %509 = vmatprep.subr.mxu0 0.0
  %510 = vmatpush1.xpose.msra.mxu0 0.0
  %511 = vmatprep.subr.mxu0 0.0
  %512 = vmatpush1.xpose.msra.mxu0 0.0
  %513 = vmatprep.subr.mxu0 0.0
  %514 = vmatpush1.xpose.msra.mxu0 0.0
  %515 = vmatprep.subr.mxu0 0.0
  %516 = vmatpush1.xpose.msra.mxu0 0.0
  %517 = vmatprep.subr.mxu0 0.0
  %518 = vmatpush1.xpose.msra.mxu0 0.0
  %519 = vmatprep.subr.mxu0 0.0
  %520 = vmatpush1.xpose.msra.mxu0 0.0
  %521 = vmatprep.subr.mxu0 0.0
  %522 = vmatpush1.xpose.msra.mxu0 0.0
  %523 = vmatprep.subr.mxu0 0.0
  %524 = vmatpush1.xpose.msra.mxu0 0.0
  %525 = vmatprep.subr.mxu0 0.0
  %526 = vmatpush1.xpose.msra.mxu0 0.0
  %527 = vmatprep.subr.mxu0 0.0
  %528 = vmatpush1.xpose.msra.mxu0 0.0
  %529 = vmatprep.subr.mxu0 0.0
  %530 = vmatpush1.xpose.msra.mxu0 0.0
  %531 = vmatprep.mubr.f32.mxu0 0.0
  %532 = vmatmul.mubr.f32.gmra.mrb[0].mxu0 %v459
  %v533 = vpop.f32.mrb[0].mxu0
  %v534 = vadd.f32 %v149, %v533
  %v535 = vpop.f32.mrb[0].mxu0
  %536 = vmatprep.mubr.f32.mxu0 0.0
  %537 = vmatmul.mubr.f32.gmra.mrb[0].mxu0 %v461
  %v538 = vpop.f32.mrb[0].mxu0
  %v539 = vadd.f32 %v150, %v538
  %v540 = vpop.f32.mrb[0].mxu0
  %541 = vdwg.mxu0
  %v542 = vsel %vm67, %v534, -inf
  %543 = vmax.xlane.f32.xlu0 %v542
  %v544 = vpop.xlane.xlu0 %543
  %v545 = vsel %vm67, %v539, -inf
  %546 = vmax.xlane.f32.xlu0 %v545
  %v547 = vpop.xlane.xlu0 %546
  %v548 = vsub.f32 %v534, %v544
  %v549 = vsub.f32 %v539, %v547
  %v550 = vmul.f32 %v548, 1.442695
  %v551 = vpow.pop %v550
  %v552 = vmul.f32 %v549, 1.442695
  %v553 = vpow.pop %v552
  %v554 = vsel %vm67, %v551, 0.0
  %555 = vadd.xlane.f32.xlu0 %v554
  %v556 = vpop.xlane.xlu0 %555
  %v557 = vsel %vm67, %v553, 0.0
  %558 = vadd.xlane.f32.xlu0 %v557
  %v559 = vpop.xlane.xlu0 %558
  %v560 = vrcp.pop %v556
  %v561 = vrcp.pop %v559
  %v562 = vmul.f32 %v551, %v560
  %v563 = vmul.f32 %v553, %v561
  %564 = vrot.lane.b32.xlu0 %v236, 56
  %v565 = vpop.permute.xlu0 %564
  %566 = vrot.lane.b32.xlu0 %v241, 56
  %v567 = vpop.permute.xlu0 %566
  %v571 = vsel %vm67, %v562, 0
  %v574 = vsel %vm67, %v563, 0
  %576 = vmatprep.subr.mxu0 0.0
  %577 = vmatpush1.msra.mxu0 %v565
  %578 = vmatprep.subr.mxu0 0.0
  %579 = vmatpush1.msra.mxu0 %v567
  %580 = vmatprep.subr.mxu0 0.0
  %581 = vmatpush1.msra.mxu0 0.0
  %582 = vmatprep.subr.mxu0 0.0
  %583 = vmatpush1.msra.mxu0 0.0
  %584 = vmatprep.subr.mxu0 0.0
  %585 = vmatpush1.msra.mxu0 0.0
  %586 = vmatprep.subr.mxu0 0.0
  %587 = vmatpush1.msra.mxu0 0.0
  %588 = vmatprep.subr.mxu0 0.0
  %589 = vmatpush1.msra.mxu0 0.0
  %590 = vmatprep.subr.mxu0 0.0
  %591 = vmatpush1.msra.mxu0 0.0
  %592 = vmatprep.subr.mxu0 0.0
  %593 = vmatpush1.msra.mxu0 0.0
  %594 = vmatprep.subr.mxu0 0.0
  %595 = vmatpush1.msra.mxu0 0.0
  %596 = vmatprep.subr.mxu0 0.0
  %597 = vmatpush1.msra.mxu0 0.0
  %598 = vmatprep.subr.mxu0 0.0
  %599 = vmatpush1.msra.mxu0 0.0
  %600 = vmatprep.subr.mxu0 0.0
  %601 = vmatpush1.msra.mxu0 0.0
  %602 = vmatprep.subr.mxu0 0.0
  %603 = vmatpush1.msra.mxu0 0.0
  %604 = vmatprep.subr.mxu0 0.0
  %605 = vmatpush1.msra.mxu0 0.0
  %606 = vmatprep.subr.mxu0 0.0
  %607 = vmatpush1.msra.mxu0 0.0
  %608 = vmatprep.subr.mxu0 0.0
  %609 = vmatpush1.msra.mxu0 0.0
  %610 = vmatprep.subr.mxu0 0.0
  %611 = vmatpush1.msra.mxu0 0.0
  %612 = vmatprep.subr.mxu0 0.0
  %613 = vmatpush1.msra.mxu0 0.0
  %614 = vmatprep.subr.mxu0 0.0
  %615 = vmatpush1.msra.mxu0 0.0
  %616 = vmatprep.subr.mxu0 0.0
  %617 = vmatpush1.msra.mxu0 0.0
  %618 = vmatprep.subr.mxu0 0.0
  %619 = vmatpush1.msra.mxu0 0.0
  %620 = vmatprep.subr.mxu0 0.0
  %621 = vmatpush1.msra.mxu0 0.0
  %622 = vmatprep.subr.mxu0 0.0
  %623 = vmatpush1.msra.mxu0 0.0
  %624 = vmatprep.subr.mxu0 0.0
  %625 = vmatpush1.msra.mxu0 0.0
  %626 = vmatprep.subr.mxu0 0.0
  %627 = vmatpush1.msra.mxu0 0.0
  %628 = vmatprep.subr.mxu0 0.0
  %629 = vmatpush1.msra.mxu0 0.0
  %630 = vmatprep.subr.mxu0 0.0
  %631 = vmatpush1.msra.mxu0 0.0
  %632 = vmatprep.subr.mxu0 0.0
  %633 = vmatpush1.msra.mxu0 0.0
  %634 = vmatprep.subr.mxu0 0.0
  %635 = vmatpush1.msra.mxu0 0.0
  %636 = vmatprep.subr.mxu0 0.0
  %637 = vmatpush1.msra.mxu0 0.0
  %638 = vmatprep.subr.mxu0 0.0
  %639 = vmatpush1.msra.mxu0 0.0
  %640 = vmatprep.mubr.f32.mxu0 0.0
  %641 = vmatmul.mubr.f32.gmra.mrb[0].mxu0 %v571
  %v642 = vpop.f32.mrb[0].mxu0
  %v643 = vadd.f32 0.0, %v642
  %v644 = vpop.f32.mrb[0].mxu0
  %645 = vmatprep.mubr.f32.mxu0 0.0
  %646 = vmatmul.mubr.f32.gmra.mrb[0].mxu0 %v574
  %v647 = vpop.f32.mrb[0].mxu0
  %v648 = vadd.f32 0.0, %v647
  %v649 = vpop.f32.mrb[0].mxu0
  %650 = vdwg.mxu0
  %v652 = vsel %vm256, %v643, 0
  %v655 = vsel %vm256, %v648, 0
  %657 = vmatprep.subr.mxu0 0.0
  %658 = vmatpush1.msra.mxu0 %v245
  %659 = vmatprep.subr.mxu0 0.0
  %660 = vmatpush1.msra.mxu0 0.0
  %661 = vmatprep.subr.mxu0 0.0
  %662 = vmatpush1.msra.mxu0 0.0
  %663 = vmatprep.subr.mxu0 0.0
  %664 = vmatpush1.msra.mxu0 0.0
  %665 = vmatprep.subr.mxu0 0.0
  %666 = vmatpush1.msra.mxu0 0.0
  %667 = vmatprep.subr.mxu0 0.0
  %668 = vmatpush1.msra.mxu0 0.0
  %669 = vmatprep.subr.mxu0 0.0
  %670 = vmatpush1.msra.mxu0 0.0
  %671 = vmatprep.subr.mxu0 0.0
  %672 = vmatpush1.msra.mxu0 0.0
  %673 = vmatprep.subr.mxu0 0.0
  %674 = vmatpush1.msra.mxu0 0.0
  %675 = vmatprep.subr.mxu0 0.0
  %676 = vmatpush1.msra.mxu0 0.0
  %677 = vmatprep.subr.mxu0 0.0
  %678 = vmatpush1.msra.mxu0 0.0
  %679 = vmatprep.subr.mxu0 0.0
  %680 = vmatpush1.msra.mxu0 0.0
  %681 = vmatprep.subr.mxu0 0.0
  %682 = vmatpush1.msra.mxu0 0.0
  %683 = vmatprep.subr.mxu0 0.0
  %684 = vmatpush1.msra.mxu0 0.0
  %685 = vmatprep.subr.mxu0 0.0
  %686 = vmatpush1.msra.mxu0 0.0
  %687 = vmatprep.subr.mxu0 0.0
  %688 = vmatpush1.msra.mxu0 0.0
  %689 = vmatprep.subr.mxu0 0.0
  %690 = vmatpush1.msra.mxu0 0.0
  %691 = vmatprep.subr.mxu0 0.0
  %692 = vmatpush1.msra.mxu0 0.0
  %693 = vmatprep.subr.mxu0 0.0
  %694 = vmatpush1.msra.mxu0 0.0
  %695 = vmatprep.subr.mxu0 0.0
  %696 = vmatpush1.msra.mxu0 0.0
  %697 = vmatprep.subr.mxu0 0.0
  %698 = vmatpush1.msra.mxu0 0.0
  %699 = vmatprep.subr.mxu0 0.0
  %700 = vmatpush1.msra.mxu0 0.0
  %701 = vmatprep.subr.mxu0 0.0
  %702 = vmatpush1.msra.mxu0 0.0
  %703 = vmatprep.subr.mxu0 0.0
  %704 = vmatpush1.msra.mxu0 0.0
  %705 = vmatprep.subr.mxu0 0.0
  %706 = vmatpush1.msra.mxu0 0.0
  %707 = vmatprep.subr.mxu0 0.0
  %708 = vmatpush1.msra.mxu0 0.0
  %709 = vmatprep.subr.mxu0 0.0
  %710 = vmatpush1.msra.mxu0 0.0
  %711 = vmatprep.subr.mxu0 0.0
  %712 = vmatpush1.msra.mxu0 0.0
  %713 = vmatprep.subr.mxu0 0.0
  %714 = vmatpush1.msra.mxu0 0.0
  %715 = vmatprep.subr.mxu0 0.0
  %716 = vmatpush1.msra.mxu0 0.0
  %717 = vmatprep.subr.mxu0 0.0
  %718 = vmatpush1.msra.mxu0 0.0
  %719 = vmatprep.subr.mxu0 0.0
  %720 = vmatpush1.msra.mxu0 0.0
  %721 = vmatprep.mubr.f32.mxu0 0.0
  %722 = vmatmul.mubr.f32.gmra.mrb[0].mxu0 %v652
  %v723 = vpop.f32.mrb[0].mxu0
  %v724 = vadd.f32 0.0, %v723
  %v725 = vpop.f32.mrb[0].mxu0
  %726 = vmatprep.mubr.f32.mxu0 0.0
  %727 = vmatmul.mubr.f32.gmra.mrb[0].mxu0 %v655
  %v728 = vpop.f32.mrb[0].mxu0
  %v729 = vadd.f32 0.0, %v728
  %v730 = vpop.f32.mrb[0].mxu0
  %731 = vdwg.mxu0
  %v733 = vsel %vm256, %v443, 0
  %v736 = vsel %vm256, %v448, 0
  %738 = vmatprep.subr.mxu0 0.0
  %739 = vmatpush1.msra.mxu0 %v244
  %740 = vmatprep.subr.mxu0 0.0
  %741 = vmatpush1.msra.mxu0 0.0
  %742 = vmatprep.subr.mxu0 0.0
  %743 = vmatpush1.msra.mxu0 0.0
  %744 = vmatprep.subr.mxu0 0.0
  %745 = vmatpush1.msra.mxu0 0.0
  %746 = vmatprep.subr.mxu0 0.0
  %747 = vmatpush1.msra.mxu0 0.0
  %748 = vmatprep.subr.mxu0 0.0
  %749 = vmatpush1.msra.mxu0 0.0
  %750 = vmatprep.subr.mxu0 0.0
  %751 = vmatpush1.msra.mxu0 0.0
  %752 = vmatprep.subr.mxu0 0.0
  %753 = vmatpush1.msra.mxu0 0.0
  %754 = vmatprep.subr.mxu0 0.0
  %755 = vmatpush1.msra.mxu0 0.0
  %756 = vmatprep.subr.mxu0 0.0
  %757 = vmatpush1.msra.mxu0 0.0
  %758 = vmatprep.subr.mxu0 0.0
  %759 = vmatpush1.msra.mxu0 0.0
  %760 = vmatprep.subr.mxu0 0.0
  %761 = vmatpush1.msra.mxu0 0.0
  %762 = vmatprep.subr.mxu0 0.0
  %763 = vmatpush1.msra.mxu0 0.0
  %764 = vmatprep.subr.mxu0 0.0
  %765 = vmatpush1.msra.mxu0 0.0
  %766 = vmatprep.subr.mxu0 0.0
  %767 = vmatpush1.msra.mxu0 0.0
  %768 = vmatprep.subr.mxu0 0.0
  %769 = vmatpush1.msra.mxu0 0.0
  %770 = vmatprep.subr.mxu0 0.0
  %771 = vmatpush1.msra.mxu0 0.0
  %772 = vmatprep.subr.mxu0 0.0
  %773 = vmatpush1.msra.mxu0 0.0
  %774 = vmatprep.subr.mxu0 0.0
  %775 = vmatpush1.msra.mxu0 0.0
  %776 = vmatprep.subr.mxu0 0.0
  %777 = vmatpush1.msra.mxu0 0.0
  %778 = vmatprep.subr.mxu0 0.0
  %779 = vmatpush1.msra.mxu0 0.0
  %780 = vmatprep.subr.mxu0 0.0
  %781 = vmatpush1.msra.mxu0 0.0
  %782 = vmatprep.subr.mxu0 0.0
  %783 = vmatpush1.msra.mxu0 0.0
  %784 = vmatprep.subr.mxu0 0.0
  %785 = vmatpush1.msra.mxu0 0.0
  %786 = vmatprep.subr.mxu0 0.0
  %787 = vmatpush1.msra.mxu0 0.0
  %788 = vmatprep.subr.mxu0 0.0
  %789 = vmatpush1.msra.mxu0 0.0
  %790 = vmatprep.subr.mxu0 0.0
  %791 = vmatpush1.msra.mxu0 0.0
  %792 = vmatprep.subr.mxu0 0.0
  %793 = vmatpush1.msra.mxu0 0.0
  %794 = vmatprep.subr.mxu0 0.0
  %795 = vmatpush1.msra.mxu0 0.0
  %796 = vmatprep.subr.mxu0 0.0
  %797 = vmatpush1.msra.mxu0 0.0
  %798 = vmatprep.subr.mxu0 0.0
  %799 = vmatpush1.msra.mxu0 0.0
  %800 = vmatprep.subr.mxu0 0.0
  %801 = vmatpush1.msra.mxu0 0.0
  %802 = vmatprep.mubr.f32.mxu0 0.0
  %803 = vmatmul.mubr.f32.gmra.mrb[0].mxu0 %v733
  %v804 = vpop.f32.mrb[0].mxu0
  %v805 = vadd.f32 %v724, %v804
  %v806 = vpop.f32.mrb[0].mxu0
  %807 = vmatprep.mubr.f32.mxu0 0.0
  %808 = vmatmul.mubr.f32.gmra.mrb[0].mxu0 %v736
  %v809 = vpop.f32.mrb[0].mxu0
  %v810 = vadd.f32 %v729, %v809
  %v811 = vpop.f32.mrb[0].mxu0
  %812 = vdwg.mxu0
  %813 = vrot.lane.b32.xlu0 %v248, 112
  %v814 = vpop.permute.xlu0 %813
  %815 = vrot.lane.b32.xlu0 %v249, 112
  %v816 = vpop.permute.xlu0 %815
  %817 = vrot.lane.b32.xlu0 %v236, 80
  %v818 = vpop.permute.xlu0 %817
  %819 = vrot.lane.b32.xlu0 %v241, 80
  %v820 = vpop.permute.xlu0 %819
  %v821 = vsel %vm256, %v814, 0
  %v823 = vsel %vm256, %v816, 0
  %v825 = vsel %vm256, %v818, 0
  %v827 = vsel %vm256, %v820, 0
  %829 = vmatprep.subr.mxu0 0.0
  %830 = vmatpush1.xpose.msra.mxu0 %v825
  %831 = vmatprep.subr.mxu0 0.0
  %832 = vmatpush1.xpose.msra.mxu0 %v827
  %833 = vmatprep.subr.mxu0 0.0
  %834 = vmatpush1.xpose.msra.mxu0 0.0
  %835 = vmatprep.subr.mxu0 0.0
  %836 = vmatpush1.xpose.msra.mxu0 0.0
  %837 = vmatprep.subr.mxu0 0.0
  %838 = vmatpush1.xpose.msra.mxu0 0.0
  %839 = vmatprep.subr.mxu0 0.0
  %840 = vmatpush1.xpose.msra.mxu0 0.0
  %841 = vmatprep.subr.mxu0 0.0
  %842 = vmatpush1.xpose.msra.mxu0 0.0
  %843 = vmatprep.subr.mxu0 0.0
  %844 = vmatpush1.xpose.msra.mxu0 0.0
  %845 = vmatprep.subr.mxu0 0.0
  %846 = vmatpush1.xpose.msra.mxu0 0.0
  %847 = vmatprep.subr.mxu0 0.0
  %848 = vmatpush1.xpose.msra.mxu0 0.0
  %849 = vmatprep.subr.mxu0 0.0
  %850 = vmatpush1.xpose.msra.mxu0 0.0
  %851 = vmatprep.subr.mxu0 0.0
  %852 = vmatpush1.xpose.msra.mxu0 0.0
  %853 = vmatprep.subr.mxu0 0.0
  %854 = vmatpush1.xpose.msra.mxu0 0.0
  %855 = vmatprep.subr.mxu0 0.0
  %856 = vmatpush1.xpose.msra.mxu0 0.0
  %857 = vmatprep.subr.mxu0 0.0
  %858 = vmatpush1.xpose.msra.mxu0 0.0
  %859 = vmatprep.subr.mxu0 0.0
  %860 = vmatpush1.xpose.msra.mxu0 0.0
  %861 = vmatprep.subr.mxu0 0.0
  %862 = vmatpush1.xpose.msra.mxu0 0.0
  %863 = vmatprep.subr.mxu0 0.0
  %864 = vmatpush1.xpose.msra.mxu0 0.0
  %865 = vmatprep.subr.mxu0 0.0
  %866 = vmatpush1.xpose.msra.mxu0 0.0
  %867 = vmatprep.subr.mxu0 0.0
  %868 = vmatpush1.xpose.msra.mxu0 0.0
  %869 = vmatprep.subr.mxu0 0.0
  %870 = vmatpush1.xpose.msra.mxu0 0.0
  %871 = vmatprep.subr.mxu0 0.0
  %872 = vmatpush1.xpose.msra.mxu0 0.0
  %873 = vmatprep.subr.mxu0 0.0
  %874 = vmatpush1.xpose.msra.mxu0 0.0
  %875 = vmatprep.subr.mxu0 0.0
  %876 = vmatpush1.xpose.msra.mxu0 0.0
  %877 = vmatprep.subr.mxu0 0.0
  %878 = vmatpush1.xpose.msra.mxu0 0.0
  %879 = vmatprep.subr.mxu0 0.0
  %880 = vmatpush1.xpose.msra.mxu0 0.0
  %881 = vmatprep.subr.mxu0 0.0
  %882 = vmatpush1.xpose.msra.mxu0 0.0
  %883 = vmatprep.subr.mxu0 0.0
  %884 = vmatpush1.xpose.msra.mxu0 0.0
  %885 = vmatprep.subr.mxu0 0.0
  %886 = vmatpush1.xpose.msra.mxu0 0.0
  %887 = vmatprep.subr.mxu0 0.0
  %888 = vmatpush1.xpose.msra.mxu0 0.0
  %889 = vmatprep.subr.mxu0 0.0
  %890 = vmatpush1.xpose.msra.mxu0 0.0
  %891 = vmatprep.subr.mxu0 0.0
  %892 = vmatpush1.xpose.msra.mxu0 0.0
  %893 = vmatprep.mubr.f32.mxu0 0.0
  %894 = vmatmul.mubr.f32.gmra.mrb[0].mxu0 %v821
  %v895 = vpop.f32.mrb[0].mxu0
  %v896 = vadd.f32 %v149, %v895
  %v897 = vpop.f32.mrb[0].mxu0
  %898 = vmatprep.mubr.f32.mxu0 0.0
  %899 = vmatmul.mubr.f32.gmra.mrb[0].mxu0 %v823
  %v900 = vpop.f32.mrb[0].mxu0
  %v901 = vadd.f32 %v150, %v900
  %v902 = vpop.f32.mrb[0].mxu0
  %903 = vdwg.mxu0
  %v904 = vsel %vm67, %v896, -inf
  %905 = vmax.xlane.f32.xlu0 %v904
  %v906 = vpop.xlane.xlu0 %905
  %v907 = vsel %vm67, %v901, -inf
  %908 = vmax.xlane.f32.xlu0 %v907
  %v909 = vpop.xlane.xlu0 %908
  %v910 = vsub.f32 %v896, %v906
  %v911 = vsub.f32 %v901, %v909
  %v912 = vmul.f32 %v910, 1.442695
  %v913 = vpow.pop %v912
  %v914 = vmul.f32 %v911, 1.442695
  %v915 = vpow.pop %v914
  %v916 = vsel %vm67, %v913, 0.0
  %917 = vadd.xlane.f32.xlu0 %v916
  %v918 = vpop.xlane.xlu0 %917
  %v919 = vsel %vm67, %v915, 0.0
  %920 = vadd.xlane.f32.xlu0 %v919
  %v921 = vpop.xlane.xlu0 %920
  %v922 = vrcp.pop %v918
  %v923 = vrcp.pop %v921
  %v924 = vmul.f32 %v913, %v922
  %v925 = vmul.f32 %v915, %v923
  %926 = vrot.lane.b32.xlu0 %v236, 48
  %v927 = vpop.permute.xlu0 %926
  %928 = vrot.lane.b32.xlu0 %v241, 48
  %v929 = vpop.permute.xlu0 %928
  %v933 = vsel %vm67, %v924, 0
  %v936 = vsel %vm67, %v925, 0
  %938 = vmatprep.subr.mxu0 0.0
  %939 = vmatpush1.msra.mxu0 %v927
  %940 = vmatprep.subr.mxu0 0.0
  %941 = vmatpush1.msra.mxu0 %v929
  %942 = vmatprep.subr.mxu0 0.0
  %943 = vmatpush1.msra.mxu0 0.0
  %944 = vmatprep.subr.mxu0 0.0
  %945 = vmatpush1.msra.mxu0 0.0
  %946 = vmatprep.subr.mxu0 0.0
  %947 = vmatpush1.msra.mxu0 0.0
  %948 = vmatprep.subr.mxu0 0.0
  %949 = vmatpush1.msra.mxu0 0.0
  %950 = vmatprep.subr.mxu0 0.0
  %951 = vmatpush1.msra.mxu0 0.0
  %952 = vmatprep.subr.mxu0 0.0
  %953 = vmatpush1.msra.mxu0 0.0
  %954 = vmatprep.subr.mxu0 0.0
  %955 = vmatpush1.msra.mxu0 0.0
  %956 = vmatprep.subr.mxu0 0.0
  %957 = vmatpush1.msra.mxu0 0.0
  %958 = vmatprep.subr.mxu0 0.0
  %959 = vmatpush1.msra.mxu0 0.0
  %960 = vmatprep.subr.mxu0 0.0
  %961 = vmatpush1.msra.mxu0 0.0
  %962 = vmatprep.subr.mxu0 0.0
  %963 = vmatpush1.msra.mxu0 0.0
  %964 = vmatprep.subr.mxu0 0.0
  %965 = vmatpush1.msra.mxu0 0.0
  %966 = vmatprep.subr.mxu0 0.0
  %967 = vmatpush1.msra.mxu0 0.0
  %968 = vmatprep.subr.mxu0 0.0
  %969 = vmatpush1.msra.mxu0 0.0
  %970 = vmatprep.subr.mxu0 0.0
  %971 = vmatpush1.msra.mxu0 0.0
  %972 = vmatprep.subr.mxu0 0.0
  %973 = vmatpush1.msra.mxu0 0.0
  %974 = vmatprep.subr.mxu0 0.0
  %975 = vmatpush1.msra.mxu0 0.0
  %976 = vmatprep.subr.mxu0 0.0
  %977 = vmatpush1.msra.mxu0 0.0
  %978 = vmatprep.subr.mxu0 0.0
  %979 = vmatpush1.msra.mxu0 0.0
  %980 = vmatprep.subr.mxu0 0.0
  %981 = vmatpush1.msra.mxu0 0.0
  %982 = vmatprep.subr.mxu0 0.0
  %983 = vmatpush1.msra.mxu0 0.0
  %984 = vmatprep.subr.mxu0 0.0
  %985 = vmatpush1.msra.mxu0 0.0
  %986 = vmatprep.subr.mxu0 0.0
  %987 = vmatpush1.msra.mxu0 0.0
  %988 = vmatprep.subr.mxu0 0.0
  %989 = vmatpush1.msra.mxu0 0.0
  %990 = vmatprep.subr.mxu0 0.0
  %991 = vmatpush1.msra.mxu0 0.0
  %992 = vmatprep.subr.mxu0 0.0
  %993 = vmatpush1.msra.mxu0 0.0
  %994 = vmatprep.subr.mxu0 0.0
  %995 = vmatpush1.msra.mxu0 0.0
  %996 = vmatprep.subr.mxu0 0.0
  %997 = vmatpush1.msra.mxu0 0.0
  %998 = vmatprep.subr.mxu0 0.0
  %999 = vmatpush1.msra.mxu0 0.0
  %1000 = vmatprep.subr.mxu0 0.0
  %1001 = vmatpush1.msra.mxu0 0.0
  %1002 = vmatprep.mubr.f32.mxu0 0.0
  %1003 = vmatmul.mubr.f32.gmra.mrb[0].mxu0 %v933
  %v1004 = vpop.f32.mrb[0].mxu0
  %v1005 = vadd.f32 0.0, %v1004
  %v1006 = vpop.f32.mrb[0].mxu0
  %1007 = vmatprep.mubr.f32.mxu0 0.0
  %1008 = vmatmul.mubr.f32.gmra.mrb[0].mxu0 %v936
  %v1009 = vpop.f32.mrb[0].mxu0
  %v1010 = vadd.f32 0.0, %v1009
  %v1011 = vpop.f32.mrb[0].mxu0
  %1012 = vdwg.mxu0
  %v1014 = vsel %vm256, %v1005, 0
  %v1017 = vsel %vm256, %v1010, 0
  %1019 = vmatprep.subr.mxu0 0.0
  %1020 = vmatpush1.msra.mxu0 %v246
  %1021 = vmatprep.subr.mxu0 0.0
  %1022 = vmatpush1.msra.mxu0 0.0
  %1023 = vmatprep.subr.mxu0 0.0
  %1024 = vmatpush1.msra.mxu0 0.0
  %1025 = vmatprep.subr.mxu0 0.0
  %1026 = vmatpush1.msra.mxu0 0.0
  %1027 = vmatprep.subr.mxu0 0.0
  %1028 = vmatpush1.msra.mxu0 0.0
  %1029 = vmatprep.subr.mxu0 0.0
  %1030 = vmatpush1.msra.mxu0 0.0
  %1031 = vmatprep.subr.mxu0 0.0
  %1032 = vmatpush1.msra.mxu0 0.0
  %1033 = vmatprep.subr.mxu0 0.0
  %1034 = vmatpush1.msra.mxu0 0.0
  %1035 = vmatprep.subr.mxu0 0.0
  %1036 = vmatpush1.msra.mxu0 0.0
  %1037 = vmatprep.subr.mxu0 0.0
  %1038 = vmatpush1.msra.mxu0 0.0
  %1039 = vmatprep.subr.mxu0 0.0
  %1040 = vmatpush1.msra.mxu0 0.0
  %1041 = vmatprep.subr.mxu0 0.0
  %1042 = vmatpush1.msra.mxu0 0.0
  %1043 = vmatprep.subr.mxu0 0.0
  %1044 = vmatpush1.msra.mxu0 0.0
  %1045 = vmatprep.subr.mxu0 0.0
  %1046 = vmatpush1.msra.mxu0 0.0
  %1047 = vmatprep.subr.mxu0 0.0
  %1048 = vmatpush1.msra.mxu0 0.0
  %1049 = vmatprep.subr.mxu0 0.0
  %1050 = vmatpush1.msra.mxu0 0.0
  %1051 = vmatprep.subr.mxu0 0.0
  %1052 = vmatpush1.msra.mxu0 0.0
  %1053 = vmatprep.subr.mxu0 0.0
  %1054 = vmatpush1.msra.mxu0 0.0
  %1055 = vmatprep.subr.mxu0 0.0
  %1056 = vmatpush1.msra.mxu0 0.0
  %1057 = vmatprep.subr.mxu0 0.0
  %1058 = vmatpush1.msra.mxu0 0.0
  %1059 = vmatprep.subr.mxu0 0.0
  %1060 = vmatpush1.msra.mxu0 0.0
  %1061 = vmatprep.subr.mxu0 0.0
  %1062 = vmatpush1.msra.mxu0 0.0
  %1063 = vmatprep.subr.mxu0 0.0
  %1064 = vmatpush1.msra.mxu0 0.0
  %1065 = vmatprep.subr.mxu0 0.0
  %1066 = vmatpush1.msra.mxu0 0.0
  %1067 = vmatprep.subr.mxu0 0.0
  %1068 = vmatpush1.msra.mxu0 0.0
  %1069 = vmatprep.subr.mxu0 0.0
  %1070 = vmatpush1.msra.mxu0 0.0
  %1071 = vmatprep.subr.mxu0 0.0
  %1072 = vmatpush1.msra.mxu0 0.0
  %1073 = vmatprep.subr.mxu0 0.0
  %1074 = vmatpush1.msra.mxu0 0.0
  %1075 = vmatprep.subr.mxu0 0.0
  %1076 = vmatpush1.msra.mxu0 0.0
  %1077 = vmatprep.subr.mxu0 0.0
  %1078 = vmatpush1.msra.mxu0 0.0
  %1079 = vmatprep.subr.mxu0 0.0
  %1080 = vmatpush1.msra.mxu0 0.0
  %1081 = vmatprep.subr.mxu0 0.0
  %1082 = vmatpush1.msra.mxu0 0.0
  %1083 = vmatprep.mubr.f32.mxu0 0.0
  %1084 = vmatmul.mubr.f32.gmra.mrb[0].mxu0 %v1014
  %v1085 = vpop.f32.mrb[0].mxu0
  %v1086 = vadd.f32 0.0, %v1085
  %v1087 = vpop.f32.mrb[0].mxu0
  %1088 = vmatprep.mubr.f32.mxu0 0.0
  %1089 = vmatmul.mubr.f32.gmra.mrb[0].mxu0 %v1017
  %v1090 = vpop.f32.mrb[0].mxu0
  %v1091 = vadd.f32 0.0, %v1090
  %v1092 = vpop.f32.mrb[0].mxu0
  %1093 = vdwg.mxu0
  %v1094 = vadd.f32 %v805, %v1086
  %v1095 = vadd.f32 %v810, %v1091
  %1096 = vrot.lane.b32.xlu0 %v248, 104
  %v1097 = vpop.permute.xlu0 %1096
  %1098 = vrot.lane.b32.xlu0 %v249, 104
  %v1099 = vpop.permute.xlu0 %1098
  %1100 = vrot.lane.b32.xlu0 %v236, 72
  %v1101 = vpop.permute.xlu0 %1100
  %1102 = vrot.lane.b32.xlu0 %v241, 72
  %v1103 = vpop.permute.xlu0 %1102
  %v1104 = vsel %vm256, %v1097, 0
  %v1106 = vsel %vm256, %v1099, 0
  %v1108 = vsel %vm256, %v1101, 0
  %v1110 = vsel %vm256, %v1103, 0
  %1112 = vmatprep.subr.mxu0 0.0
  %1113 = vmatpush1.xpose.msra.mxu0 %v1108
  %1114 = vmatprep.subr.mxu0 0.0
  %1115 = vmatpush1.xpose.msra.mxu0 %v1110
  %1116 = vmatprep.subr.mxu0 0.0
  %1117 = vmatpush1.xpose.msra.mxu0 0.0
  %1118 = vmatprep.subr.mxu0 0.0
  %1119 = vmatpush1.xpose.msra.mxu0 0.0
  %1120 = vmatprep.subr.mxu0 0.0
  %1121 = vmatpush1.xpose.msra.mxu0 0.0
  %1122 = vmatprep.subr.mxu0 0.0
  %1123 = vmatpush1.xpose.msra.mxu0 0.0
  %1124 = vmatprep.subr.mxu0 0.0
  %1125 = vmatpush1.xpose.msra.mxu0 0.0
  %1126 = vmatprep.subr.mxu0 0.0
  %1127 = vmatpush1.xpose.msra.mxu0 0.0
  %1128 = vmatprep.subr.mxu0 0.0
  %1129 = vmatpush1.xpose.msra.mxu0 0.0
  %1130 = vmatprep.subr.mxu0 0.0
  %1131 = vmatpush1.xpose.msra.mxu0 0.0
  %1132 = vmatprep.subr.mxu0 0.0
  %1133 = vmatpush1.xpose.msra.mxu0 0.0
  %1134 = vmatprep.subr.mxu0 0.0
  %1135 = vmatpush1.xpose.msra.mxu0 0.0
  %1136 = vmatprep.subr.mxu0 0.0
  %1137 = vmatpush1.xpose.msra.mxu0 0.0
  %1138 = vmatprep.subr.mxu0 0.0
  %1139 = vmatpush1.xpose.msra.mxu0 0.0
  %1140 = vmatprep.subr.mxu0 0.0
  %1141 = vmatpush1.xpose.msra.mxu0 0.0
  %1142 = vmatprep.subr.mxu0 0.0
  %1143 = vmatpush1.xpose.msra.mxu0 0.0
  %1144 = vmatprep.subr.mxu0 0.0
  %1145 = vmatpush1.xpose.msra.mxu0 0.0
  %1146 = vmatprep.subr.mxu0 0.0
  %1147 = vmatpush1.xpose.msra.mxu0 0.0
  %1148 = vmatprep.subr.mxu0 0.0
  %1149 = vmatpush1.xpose.msra.mxu0 0.0
  %1150 = vmatprep.subr.mxu0 0.0
  %1151 = vmatpush1.xpose.msra.mxu0 0.0
  %1152 = vmatprep.subr.mxu0 0.0
  %1153 = vmatpush1.xpose.msra.mxu0 0.0
  %1154 = vmatprep.subr.mxu0 0.0
  %1155 = vmatpush1.xpose.msra.mxu0 0.0
  %1156 = vmatprep.subr.mxu0 0.0
  %1157 = vmatpush1.xpose.msra.mxu0 0.0
  %1158 = vmatprep.subr.mxu0 0.0
  %1159 = vmatpush1.xpose.msra.mxu0 0.0
  %1160 = vmatprep.subr.mxu0 0.0
  %1161 = vmatpush1.xpose.msra.mxu0 0.0
  %1162 = vmatprep.subr.mxu0 0.0
  %1163 = vmatpush1.xpose.msra.mxu0 0.0
  %1164 = vmatprep.subr.mxu0 0.0
  %1165 = vmatpush1.xpose.msra.mxu0 0.0
  %1166 = vmatprep.subr.mxu0 0.0
  %1167 = vmatpush1.xpose.msra.mxu0 0.0
  %1168 = vmatprep.subr.mxu0 0.0
  %1169 = vmatpush1.xpose.msra.mxu0 0.0
  %1170 = vmatprep.subr.mxu0 0.0
  %1171 = vmatpush1.xpose.msra.mxu0 0.0
  %1172 = vmatprep.subr.mxu0 0.0
  %1173 = vmatpush1.xpose.msra.mxu0 0.0
  %1174 = vmatprep.subr.mxu0 0.0
  %1175 = vmatpush1.xpose.msra.mxu0 0.0
  %1176 = vmatprep.mubr.f32.mxu0 0.0
  %1177 = vmatmul.mubr.f32.gmra.mrb[0].mxu0 %v1104
  %v1178 = vpop.f32.mrb[0].mxu0
  %v1179 = vadd.f32 %v149, %v1178
  %v1180 = vpop.f32.mrb[0].mxu0
  %1181 = vmatprep.mubr.f32.mxu0 0.0
  %1182 = vmatmul.mubr.f32.gmra.mrb[0].mxu0 %v1106
  %v1183 = vpop.f32.mrb[0].mxu0
  %v1184 = vadd.f32 %v150, %v1183
  %v1185 = vpop.f32.mrb[0].mxu0
  %1186 = vdwg.mxu0
  %v1187 = vsel %vm67, %v1179, -inf
  %1188 = vmax.xlane.f32.xlu0 %v1187
  %v1189 = vpop.xlane.xlu0 %1188
  %v1190 = vsel %vm67, %v1184, -inf
  %1191 = vmax.xlane.f32.xlu0 %v1190
  %v1192 = vpop.xlane.xlu0 %1191
  %v1193 = vsub.f32 %v1179, %v1189
  %v1194 = vsub.f32 %v1184, %v1192
  %v1195 = vmul.f32 %v1193, 1.442695
  %v1196 = vpow.pop %v1195
  %v1197 = vmul.f32 %v1194, 1.442695
  %v1198 = vpow.pop %v1197
  %v1199 = vsel %vm67, %v1196, 0.0
  %1200 = vadd.xlane.f32.xlu0 %v1199
  %v1201 = vpop.xlane.xlu0 %1200
  %v1202 = vsel %vm67, %v1198, 0.0
  %1203 = vadd.xlane.f32.xlu0 %v1202
  %v1204 = vpop.xlane.xlu0 %1203
  %v1205 = vrcp.pop %v1201
  %v1206 = vrcp.pop %v1204
  %v1207 = vmul.f32 %v1196, %v1205
  %v1208 = vmul.f32 %v1198, %v1206
  %1209 = vrot.lane.b32.xlu0 %v236, 40
  %v1210 = vpop.permute.xlu0 %1209
  %1211 = vrot.lane.b32.xlu0 %v241, 40
  %v1212 = vpop.permute.xlu0 %1211
  %v1216 = vsel %vm67, %v1207, 0
  %v1219 = vsel %vm67, %v1208, 0
  %1221 = vmatprep.subr.mxu0 0.0
  %1222 = vmatpush1.msra.mxu0 %v1210
  %1223 = vmatprep.subr.mxu0 0.0
  %1224 = vmatpush1.msra.mxu0 %v1212
  %1225 = vmatprep.subr.mxu0 0.0
  %1226 = vmatpush1.msra.mxu0 0.0
  %1227 = vmatprep.subr.mxu0 0.0
  %1228 = vmatpush1.msra.mxu0 0.0
  %1229 = vmatprep.subr.mxu0 0.0
  %1230 = vmatpush1.msra.mxu0 0.0
  %1231 = vmatprep.subr.mxu0 0.0
  %1232 = vmatpush1.msra.mxu0 0.0
  %1233 = vmatprep.subr.mxu0 0.0
  %1234 = vmatpush1.msra.mxu0 0.0
  %1235 = vmatprep.subr.mxu0 0.0
  %1236 = vmatpush1.msra.mxu0 0.0
  %1237 = vmatprep.subr.mxu0 0.0
  %1238 = vmatpush1.msra.mxu0 0.0
  %1239 = vmatprep.subr.mxu0 0.0
  %1240 = vmatpush1.msra.mxu0 0.0
  %1241 = vmatprep.subr.mxu0 0.0
  %1242 = vmatpush1.msra.mxu0 0.0
  %1243 = vmatprep.subr.mxu0 0.0
  %1244 = vmatpush1.msra.mxu0 0.0
  %1245 = vmatprep.subr.mxu0 0.0
  %1246 = vmatpush1.msra.mxu0 0.0
  %1247 = vmatprep.subr.mxu0 0.0
  %1248 = vmatpush1.msra.mxu0 0.0
  %1249 = vmatprep.subr.mxu0 0.0
  %1250 = vmatpush1.msra.mxu0 0.0
  %1251 = vmatprep.subr.mxu0 0.0
  %1252 = vmatpush1.msra.mxu0 0.0
  %1253 = vmatprep.subr.mxu0 0.0
  %1254 = vmatpush1.msra.mxu0 0.0
  %1255 = vmatprep.subr.mxu0 0.0
  %1256 = vmatpush1.msra.mxu0 0.0
  %1257 = vmatprep.subr.mxu0 0.0
  %1258 = vmatpush1.msra.mxu0 0.0
  %1259 = vmatprep.subr.mxu0 0.0
  %1260 = vmatpush1.msra.mxu0 0.0
  %1261 = vmatprep.subr.mxu0 0.0
  %1262 = vmatpush1.msra.mxu0 0.0
  %1263 = vmatprep.subr.mxu0 0.0
  %1264 = vmatpush1.msra.mxu0 0.0
  %1265 = vmatprep.subr.mxu0 0.0
  %1266 = vmatpush1.msra.mxu0 0.0
  %1267 = vmatprep.subr.mxu0 0.0
  %1268 = vmatpush1.msra.mxu0 0.0
  %1269 = vmatprep.subr.mxu0 0.0
  %1270 = vmatpush1.msra.mxu0 0.0
  %1271 = vmatprep.subr.mxu0 0.0
  %1272 = vmatpush1.msra.mxu0 0.0
  %1273 = vmatprep.subr.mxu0 0.0
  %1274 = vmatpush1.msra.mxu0 0.0
  %1275 = vmatprep.subr.mxu0 0.0
  %1276 = vmatpush1.msra.mxu0 0.0
  %1277 = vmatprep.subr.mxu0 0.0
  %1278 = vmatpush1.msra.mxu0 0.0
  %1279 = vmatprep.subr.mxu0 0.0
  %1280 = vmatpush1.msra.mxu0 0.0
  %1281 = vmatprep.subr.mxu0 0.0
  %1282 = vmatpush1.msra.mxu0 0.0
  %1283 = vmatprep.subr.mxu0 0.0
  %1284 = vmatpush1.msra.mxu0 0.0
  %1285 = vmatprep.mubr.f32.mxu0 0.0
  %1286 = vmatmul.mubr.f32.gmra.mrb[0].mxu0 %v1216
  %v1287 = vpop.f32.mrb[0].mxu0
  %v1288 = vadd.f32 0.0, %v1287
  %v1289 = vpop.f32.mrb[0].mxu0
  %1290 = vmatprep.mubr.f32.mxu0 0.0
  %1291 = vmatmul.mubr.f32.gmra.mrb[0].mxu0 %v1219
  %v1292 = vpop.f32.mrb[0].mxu0
  %v1293 = vadd.f32 0.0, %v1292
  %v1294 = vpop.f32.mrb[0].mxu0
  %1295 = vdwg.mxu0
  %v1297 = vsel %vm256, %v1288, 0
  %v1300 = vsel %vm256, %v1293, 0
  %1302 = vmatprep.subr.mxu0 0.0
  %1303 = vmatpush1.msra.mxu0 %v247
  %1304 = vmatprep.subr.mxu0 0.0
  %1305 = vmatpush1.msra.mxu0 0.0
  %1306 = vmatprep.subr.mxu0 0.0
  %1307 = vmatpush1.msra.mxu0 0.0
  %1308 = vmatprep.subr.mxu0 0.0
  %1309 = vmatpush1.msra.mxu0 0.0
  %1310 = vmatprep.subr.mxu0 0.0
  %1311 = vmatpush1.msra.mxu0 0.0
  %1312 = vmatprep.subr.mxu0 0.0
  %1313 = vmatpush1.msra.mxu0 0.0
  %1314 = vmatprep.subr.mxu0 0.0
  %1315 = vmatpush1.msra.mxu0 0.0
  %1316 = vmatprep.subr.mxu0 0.0
  %1317 = vmatpush1.msra.mxu0 0.0
  %1318 = vmatprep.subr.mxu0 0.0
  %1319 = vmatpush1.msra.mxu0 0.0
  %1320 = vmatprep.subr.mxu0 0.0
  %1321 = vmatpush1.msra.mxu0 0.0
  %1322 = vmatprep.subr.mxu0 0.0
  %1323 = vmatpush1.msra.mxu0 0.0
  %1324 = vmatprep.subr.mxu0 0.0
  %1325 = vmatpush1.msra.mxu0 0.0
  %1326 = vmatprep.subr.mxu0 0.0
  %1327 = vmatpush1.msra.mxu0 0.0
  %1328 = vmatprep.subr.mxu0 0.0
  %1329 = vmatpush1.msra.mxu0 0.0
  %1330 = vmatprep.subr.mxu0 0.0
  %1331 = vmatpush1.msra.mxu0 0.0
  %1332 = vmatprep.subr.mxu0 0.0
  %1333 = vmatpush1.msra.mxu0 0.0
  %1334 = vmatprep.subr.mxu0 0.0
  %1335 = vmatpush1.msra.mxu0 0.0
  %1336 = vmatprep.subr.mxu0 0.0
  %1337 = vmatpush1.msra.mxu0 0.0
  %1338 = vmatprep.subr.mxu0 0.0
  %1339 = vmatpush1.msra.mxu0 0.0
  %1340 = vmatprep.subr.mxu0 0.0
  %1341 = vmatpush1.msra.mxu0 0.0
  %1342 = vmatprep.subr.mxu0 0.0
  %1343 = vmatpush1.msra.mxu0 0.0
  %1344 = vmatprep.subr.mxu0 0.0
  %1345 = vmatpush1.msra.mxu0 0.0
  %1346 = vmatprep.subr.mxu0 0.0
  %1347 = vmatpush1.msra.mxu0 0.0
  %1348 = vmatprep.subr.mxu0 0.0
  %1349 = vmatpush1.msra.mxu0 0.0
  %1350 = vmatprep.subr.mxu0 0.0
  %1351 = vmatpush1.msra.mxu0 0.0
  %1352 = vmatprep.subr.mxu0 0.0
  %1353 = vmatpush1.msra.mxu0 0.0
  %1354 = vmatprep.subr.mxu0 0.0
  %1355 = vmatpush1.msra.mxu0 0.0
  %1356 = vmatprep.subr.mxu0 0.0
  %1357 = vmatpush1.msra.mxu0 0.0
  %1358 = vmatprep.subr.mxu0 0.0
  %1359 = vmatpush1.msra.mxu0 0.0
  %1360 = vmatprep.subr.mxu0 0.0
  %1361 = vmatpush1.msra.mxu0 0.0
  %1362 = vmatprep.subr.mxu0 0.0
  %1363 = vmatpush1.msra.mxu0 0.0
  %1364 = vmatprep.subr.mxu0 0.0
  %1365 = vmatpush1.msra.mxu0 0.0
  %1366 = vmatprep.mubr.f32.mxu0 0.0
  %1367 = vmatmul.mubr.f32.gmra.mrb[0].mxu0 %v1297
  %v1368 = vpop.f32.mrb[0].mxu0
  %v1369 = vadd.f32 0.0, %v1368
  %v1370 = vpop.f32.mrb[0].mxu0
  %1371 = vmatprep.mubr.f32.mxu0 0.0
  %1372 = vmatmul.mubr.f32.gmra.mrb[0].mxu0 %v1300
  %v1373 = vpop.f32.mrb[0].mxu0
  %v1374 = vadd.f32 0.0, %v1373
  %v1375 = vpop.f32.mrb[0].mxu0
  %1376 = vdwg.mxu0
  %v1377 = vadd.f32 %v1094, %v1369
  %v1378 = vadd.f32 %v1095, %v1374
  %v1379 = vld [vmem:[%s7] sm:$0x1]
  %v1381 = vlaneseq
  %v1382 = vshrl.u32 %v1381, 7
  %v1383 = vsub.s32 0, %v1382
  %v1384 = vrot.slane %v1379, %v1383
  %v1386 = vadd.f32 %v1377, %v1384
  %v1387 = vadd.f32 %v1378, %v1384
  %v1388 = vadd.f32 %v141, %v1386
  %v1389 = vadd.f32 %v146, %v1387
  %v1390 = vld [vmem:[%s12] sm:$0x1]
  %v1391 = vld [vmem:[%s13] sm:$0x1]
  %v1392 = vsel %vm162, %v1388, 0.0
  %1393 = vadd.xlane.f32.xlu0 %v1392
  %v1394 = vpop.xlane.xlu0 %1393
  %v1395 = vsel %vm162, %v1389, 0.0
  %1396 = vadd.xlane.f32.xlu0 %v1395
  %v1397 = vpop.xlane.xlu0 %1396
  %v1398 = vrcp.pop 32.0
  %v1399 = vmul.f32 %v1394, %v1398
  %v1400 = vmul.f32 %v1397, %v1398
  %v1401 = vsub.f32 %v1388, %v1399
  %v1402 = vsub.f32 %v1389, %v1400
  %v1403 = vmul.f32 %v1401, %v1401
  %v1404 = vmul.f32 %v1402, %v1402
  %v1405 = vsel %vm162, %v1403, 0.0
  %1406 = vadd.xlane.f32.xlu0 %v1405
  %v1407 = vpop.xlane.xlu0 %1406
  %v1408 = vsel %vm162, %v1404, 0.0
  %1409 = vadd.xlane.f32.xlu0 %v1408
  %v1410 = vpop.xlane.xlu0 %1409
  %v1411 = vmul.f32 %v1407, %v1398
  %v1412 = vmul.f32 %v1410, %v1398
  %v1413 = vadd.f32 %v1411, 1e-05
  %v1414 = vadd.f32 %v1412, 1e-05
  %v1415 = vrsqrt.pop %v1413
  %v1416 = vrsqrt.pop %v1414
  %v1417 = vmul.f32 %v1401, %v1415
  %v1418 = vmul.f32 %v1402, %v1416
  %v1420 = vlaneseq
  %v1421 = vshrl.u32 %v1420, 7
  %v1422 = vsub.s32 0, %v1421
  %v1423 = vrot.slane %v1390, %v1422
  %v1425 = vmul.f32 %v1417, %v1423
  %v1426 = vmul.f32 %v1418, %v1423
  %v1428 = vlaneseq
  %v1429 = vshrl.u32 %v1428, 7
  %v1430 = vsub.s32 0, %v1429
  %v1431 = vrot.slane %v1391, %v1430
  %v1433 = vadd.f32 %v1425, %v1431
  %v1434 = vadd.f32 %v1426, %v1431
  %v1435 = vld [vmem:[%s8] sm:$0xff]
  %v1436 = vld [vmem:[%s8 + $0x8] sm:$0xff]
  %v1437 = vld [vmem:[%s8 + $0x10] sm:$0xff]
  %v1438 = vld [vmem:[%s8 + $0x18] sm:$0xff]
  %v1439 = vld [vmem:[%s9] sm:$0x1]
  %v1441 = vlaneseq
  %v1442 = vshrl.u32 %v1441, 7
  %v1443 = vsub.s32 0, %v1442
  %v1444 = vrot.slane %v1439, %v1443
  %v1447 = vsel %vm162, %v1433, 0
  %v1450 = vsel %vm162, %v1434, 0
  %1452 = vmatprep.subr.mxu0 0.0
  %1453 = vmatpush1.msra.mxu0 %v1435
  %1454 = vmatprep.subr.mxu0 0.0
  %1455 = vmatpush1.msra.mxu0 %v1436
  %1456 = vmatprep.subr.mxu0 0.0
  %1457 = vmatpush1.msra.mxu0 %v1437
  %1458 = vmatprep.subr.mxu0 0.0
  %1459 = vmatpush1.msra.mxu0 %v1438
  %1460 = vmatprep.subr.mxu0 0.0
  %1461 = vmatpush1.msra.mxu0 0.0
  %1462 = vmatprep.subr.mxu0 0.0
  %1463 = vmatpush1.msra.mxu0 0.0
  %1464 = vmatprep.subr.mxu0 0.0
  %1465 = vmatpush1.msra.mxu0 0.0
  %1466 = vmatprep.subr.mxu0 0.0
  %1467 = vmatpush1.msra.mxu0 0.0
  %1468 = vmatprep.subr.mxu0 0.0
  %1469 = vmatpush1.msra.mxu0 0.0
  %1470 = vmatprep.subr.mxu0 0.0
  %1471 = vmatpush1.msra.mxu0 0.0
  %1472 = vmatprep.subr.mxu0 0.0
  %1473 = vmatpush1.msra.mxu0 0.0
  %1474 = vmatprep.subr.mxu0 0.0
  %1475 = vmatpush1.msra.mxu0 0.0
  %1476 = vmatprep.subr.mxu0 0.0
  %1477 = vmatpush1.msra.mxu0 0.0
  %1478 = vmatprep.subr.mxu0 0.0
  %1479 = vmatpush1.msra.mxu0 0.0
  %1480 = vmatprep.subr.mxu0 0.0
  %1481 = vmatpush1.msra.mxu0 0.0
  %1482 = vmatprep.subr.mxu0 0.0
  %1483 = vmatpush1.msra.mxu0 0.0
  %1484 = vmatprep.subr.mxu0 0.0
  %1485 = vmatpush1.msra.mxu0 0.0
  %1486 = vmatprep.subr.mxu0 0.0
  %1487 = vmatpush1.msra.mxu0 0.0
  %1488 = vmatprep.subr.mxu0 0.0
  %1489 = vmatpush1.msra.mxu0 0.0
  %1490 = vmatprep.subr.mxu0 0.0
  %1491 = vmatpush1.msra.mxu0 0.0
  %1492 = vmatprep.subr.mxu0 0.0
  %1493 = vmatpush1.msra.mxu0 0.0
  %1494 = vmatprep.subr.mxu0 0.0
  %1495 = vmatpush1.msra.mxu0 0.0
  %1496 = vmatprep.subr.mxu0 0.0
  %1497 = vmatpush1.msra.mxu0 0.0
  %1498 = vmatprep.subr.mxu0 0.0
  %1499 = vmatpush1.msra.mxu0 0.0
  %1500 = vmatprep.subr.mxu0 0.0
  %1501 = vmatpush1.msra.mxu0 0.0
  %1502 = vmatprep.subr.mxu0 0.0
  %1503 = vmatpush1.msra.mxu0 0.0
  %1504 = vmatprep.subr.mxu0 0.0
  %1505 = vmatpush1.msra.mxu0 0.0
  %1506 = vmatprep.subr.mxu0 0.0
  %1507 = vmatpush1.msra.mxu0 0.0
  %1508 = vmatprep.subr.mxu0 0.0
  %1509 = vmatpush1.msra.mxu0 0.0
  %1510 = vmatprep.subr.mxu0 0.0
  %1511 = vmatpush1.msra.mxu0 0.0
  %1512 = vmatprep.subr.mxu0 0.0
  %1513 = vmatpush1.msra.mxu0 0.0
  %1514 = vmatprep.subr.mxu0 0.0
  %1515 = vmatpush1.msra.mxu0 0.0
  %1516 = vmatprep.mubr.f32.mxu0 0.0
  %1517 = vmatmul.mubr.f32.gmra.mrb[0].mxu0 %v1447
  %v1518 = vpop.f32.mrb[0].mxu0
  %v1519 = vadd.f32 %v1444, %v1518
  %v1520 = vpop.f32.mrb[0].mxu0
  %1521 = vmatprep.mubr.f32.mxu0 0.0
  %1522 = vmatmul.mubr.f32.gmra.mrb[0].mxu0 %v1450
  %v1523 = vpop.f32.mrb[0].mxu0
  %v1524 = vadd.f32 %v1444, %v1523
  %v1525 = vpop.f32.mrb[0].mxu0
  %1526 = vdwg.mxu0
  %v1527 = vmax.f32 %v1519, 0.0
  %v1528 = vmax.f32 %v1524, 0.0
  %v1529 = vld [vmem:[%s10] sm:$0xff]
  %v1530 = vld [vmem:[%s10 + $0x8] sm:$0xff]
  %v1531 = vld [vmem:[%s10 + $0x10] sm:$0xff]
  %v1532 = vld [vmem:[%s10 + $0x18] sm:$0xff]
  %v1533 = vld [vmem:[%s10 + $0x20] sm:$0xff]
  %v1534 = vld [vmem:[%s10 + $0x28] sm:$0xff]
  %v1535 = vld [vmem:[%s10 + $0x30] sm:$0xff]
  %v1536 = vld [vmem:[%s10 + $0x38] sm:$0xff]
  %v1537 = vld [vmem:[%s11] sm:$0x1]
  %v1539 = vlaneseq
  %v1540 = vshrl.u32 %v1539, 7
  %v1541 = vsub.s32 0, %v1540
  %v1542 = vrot.slane %v1537, %v1541
  %vm1544 = vcmask 523264
  %v1546 = vsel %vm1544, %v1527, 0
  %v1549 = vsel %vm1544, %v1528, 0
  %1551 = vmatprep.subr.mxu0 0.0
  %1552 = vmatpush1.msra.mxu0 %v1529
  %1553 = vmatprep.subr.mxu0 0.0
  %1554 = vmatpush1.msra.mxu0 %v1530
  %1555 = vmatprep.subr.mxu0 0.0
  %1556 = vmatpush1.msra.mxu0 %v1531
  %1557 = vmatprep.subr.mxu0 0.0
  %1558 = vmatpush1.msra.mxu0 %v1532
  %1559 = vmatprep.subr.mxu0 0.0
  %1560 = vmatpush1.msra.mxu0 %v1533
  %1561 = vmatprep.subr.mxu0 0.0
  %1562 = vmatpush1.msra.mxu0 %v1534
  %1563 = vmatprep.subr.mxu0 0.0
  %1564 = vmatpush1.msra.mxu0 %v1535
  %1565 = vmatprep.subr.mxu0 0.0
  %1566 = vmatpush1.msra.mxu0 %v1536
  %1567 = vmatprep.subr.mxu0 0.0
  %1568 = vmatpush1.msra.mxu0 0.0
  %1569 = vmatprep.subr.mxu0 0.0
  %1570 = vmatpush1.msra.mxu0 0.0
  %1571 = vmatprep.subr.mxu0 0.0
  %1572 = vmatpush1.msra.mxu0 0.0
  %1573 = vmatprep.subr.mxu0 0.0
  %1574 = vmatpush1.msra.mxu0 0.0
  %1575 = vmatprep.subr.mxu0 0.0
  %1576 = vmatpush1.msra.mxu0 0.0
  %1577 = vmatprep.subr.mxu0 0.0
  %1578 = vmatpush1.msra.mxu0 0.0
  %1579 = vmatprep.subr.mxu0 0.0
  %1580 = vmatpush1.msra.mxu0 0.0
  %1581 = vmatprep.subr.mxu0 0.0
  %1582 = vmatpush1.msra.mxu0 0.0
  %1583 = vmatprep.subr.mxu0 0.0
  %1584 = vmatpush1.msra.mxu0 0.0
  %1585 = vmatprep.subr.mxu0 0.0
  %1586 = vmatpush1.msra.mxu0 0.0
  %1587 = vmatprep.subr.mxu0 0.0
  %1588 = vmatpush1.msra.mxu0 0.0
  %1589 = vmatprep.subr.mxu0 0.0
  %1590 = vmatpush1.msra.mxu0 0.0
  %1591 = vmatprep.subr.mxu0 0.0
  %1592 = vmatpush1.msra.mxu0 0.0
  %1593 = vmatprep.subr.mxu0 0.0
  %1594 = vmatpush1.msra.mxu0 0.0
  %1595 = vmatprep.subr.mxu0 0.0
  %1596 = vmatpush1.msra.mxu0 0.0
  %1597 = vmatprep.subr.mxu0 0.0
  %1598 = vmatpush1.msra.mxu0 0.0
  %1599 = vmatprep.subr.mxu0 0.0
  %1600 = vmatpush1.msra.mxu0 0.0
  %1601 = vmatprep.subr.mxu0 0.0
  %1602 = vmatpush1.msra.mxu0 0.0
  %1603 = vmatprep.subr.mxu0 0.0
  %1604 = vmatpush1.msra.mxu0 0.0
  %1605 = vmatprep.subr.mxu0 0.0
  %1606 = vmatpush1.msra.mxu0 0.0
  %1607 = vmatprep.subr.mxu0 0.0
  %1608 = vmatpush1.msra.mxu0 0.0
  %1609 = vmatprep.subr.mxu0 0.0
  %1610 = vmatpush1.msra.mxu0 0.0
  %1611 = vmatprep.subr.mxu0 0.0
  %1612 = vmatpush1.msra.mxu0 0.0
  %1613 = vmatprep.subr.mxu0 0.0
  %1614 = vmatpush1.msra.mxu0 0.0
  %1615 = vmatprep.mubr.f32.mxu0 0.0
  %1616 = vmatmul.mubr.f32.gmra.mrb[0].mxu0 %v1546
  %v1617 = vpop.f32.mrb[0].mxu0
  %v1618 = vadd.f32 %v1542, %v1617
  %v1619 = vpop.f32.mrb[0].mxu0
  %1620 = vmatprep.mubr.f32.mxu0 0.0
  %1621 = vmatmul.mubr.f32.gmra.mrb[0].mxu0 %v1549
  %v1622 = vpop.f32.mrb[0].mxu0
  %v1623 = vadd.f32 %v1542, %v1622
  %v1624 = vpop.f32.mrb[0].mxu0
  %1625 = vdwg.mxu0
  %v1626 = vadd.f32 %v1433, %v1618
  %v1627 = vadd.f32 %v1434, %v1623
  %v1628 = vld [vmem:[%s14] sm:$0x1]
  %v1629 = vld [vmem:[%s15] sm:$0x1]
  %v1630 = vsel %vm162, %v1626, 0.0
  %1631 = vadd.xlane.f32.xlu0 %v1630
  %v1632 = vpop.xlane.xlu0 %1631
  %v1633 = vsel %vm162, %v1627, 0.0
  %1634 = vadd.xlane.f32.xlu0 %v1633
  %v1635 = vpop.xlane.xlu0 %1634
  %v1636 = vmul.f32 %v1632, %v1398
  %v1637 = vmul.f32 %v1635, %v1398
  %v1638 = vsub.f32 %v1626, %v1636
  %v1639 = vsub.f32 %v1627, %v1637
  %v1640 = vmul.f32 %v1638, %v1638
  %v1641 = vmul.f32 %v1639, %v1639
  %v1642 = vsel %vm162, %v1640, 0.0
  %1643 = vadd.xlane.f32.xlu0 %v1642
  %v1644 = vpop.xlane.xlu0 %1643
  %v1645 = vsel %vm162, %v1641, 0.0
  %1646 = vadd.xlane.f32.xlu0 %v1645
  %v1647 = vpop.xlane.xlu0 %1646
  %v1648 = vmul.f32 %v1644, %v1398
  %v1649 = vmul.f32 %v1647, %v1398
  %v1650 = vadd.f32 %v1648, 1e-05
  %v1651 = vadd.f32 %v1649, 1e-05
  %v1652 = vrsqrt.pop %v1650
  %v1653 = vrsqrt.pop %v1651
  %v1654 = vmul.f32 %v1638, %v1652
  %v1655 = vmul.f32 %v1639, %v1653
  %v1657 = vlaneseq
  %v1658 = vshrl.u32 %v1657, 7
  %v1659 = vsub.s32 0, %v1658
  %v1660 = vrot.slane %v1628, %v1659
  %v1662 = vmul.f32 %v1654, %v1660
  %v1663 = vmul.f32 %v1655, %v1660
  %v1665 = vlaneseq
  %v1666 = vshrl.u32 %v1665, 7
  %v1667 = vsub.s32 0, %v1666
  %v1668 = vrot.slane %v1629, %v1667
  %v1670 = vadd.f32 %v1662, %v1668
  %v1671 = vadd.f32 %v1663, %v1668
  %s1672 = scalar_lea.vmem %s4, 32
  %v1673 = vld [vmem:[%s1672] sm:$0xff]
  %v1674 = vld [vmem:[%s1672 + $0x8] sm:$0xff]
  %v1675 = vld [vmem:[%s1672 + $0x10] sm:$0xff]
  %v1676 = vld [vmem:[%s1672 + $0x18] sm:$0xff]
  %s1677 = scalar_lea.vmem %s5, 1
  %v1678 = vld [vmem:[%s1677] sm:$0x1]
  %v1680 = vlaneseq
  %v1681 = vshrl.u32 %v1680, 7
  %v1682 = vsub.s32 0, %v1681
  %v1683 = vrot.slane %v1678, %v1682
  %v1686 = vsel %vm162, %v1670, 0
  %v1689 = vsel %vm162, %v1671, 0
  %1691 = vmatprep.subr.mxu0 0.0
  %1692 = vmatpush1.msra.mxu0 %v1673
  %1693 = vmatprep.subr.mxu0 0.0
  %1694 = vmatpush1.msra.mxu0 %v1674
  %1695 = vmatprep.subr.mxu0 0.0
  %1696 = vmatpush1.msra.mxu0 %v1675
  %1697 = vmatprep.subr.mxu0 0.0
  %1698 = vmatpush1.msra.mxu0 %v1676
  %1699 = vmatprep.subr.mxu0 0.0
  %1700 = vmatpush1.msra.mxu0 0.0
  %1701 = vmatprep.subr.mxu0 0.0
  %1702 = vmatpush1.msra.mxu0 0.0
  %1703 = vmatprep.subr.mxu0 0.0
  %1704 = vmatpush1.msra.mxu0 0.0
  %1705 = vmatprep.subr.mxu0 0.0
  %1706 = vmatpush1.msra.mxu0 0.0
  %1707 = vmatprep.subr.mxu0 0.0
  %1708 = vmatpush1.msra.mxu0 0.0
  %1709 = vmatprep.subr.mxu0 0.0
  %1710 = vmatpush1.msra.mxu0 0.0
  %1711 = vmatprep.subr.mxu0 0.0
  %1712 = vmatpush1.msra.mxu0 0.0
  %1713 = vmatprep.subr.mxu0 0.0
  %1714 = vmatpush1.msra.mxu0 0.0
  %1715 = vmatprep.subr.mxu0 0.0
  %1716 = vmatpush1.msra.mxu0 0.0
  %1717 = vmatprep.subr.mxu0 0.0
  %1718 = vmatpush1.msra.mxu0 0.0
  %1719 = vmatprep.subr.mxu0 0.0
  %1720 = vmatpush1.msra.mxu0 0.0
  %1721 = vmatprep.subr.mxu0 0.0
  %1722 = vmatpush1.msra.mxu0 0.0
  %1723 = vmatprep.subr.mxu0 0.0
  %1724 = vmatpush1.msra.mxu0 0.0
  %1725 = vmatprep.subr.mxu0 0.0
  %1726 = vmatpush1.msra.mxu0 0.0
  %1727 = vmatprep.subr.mxu0 0.0
  %1728 = vmatpush1.msra.mxu0 0.0
  %1729 = vmatprep.subr.mxu0 0.0
  %1730 = vmatpush1.msra.mxu0 0.0
  %1731 = vmatprep.subr.mxu0 0.0
  %1732 = vmatpush1.msra.mxu0 0.0
  %1733 = vmatprep.subr.mxu0 0.0
  %1734 = vmatpush1.msra.mxu0 0.0
  %1735 = vmatprep.subr.mxu0 0.0
  %1736 = vmatpush1.msra.mxu0 0.0
  %1737 = vmatprep.subr.mxu0 0.0
  %1738 = vmatpush1.msra.mxu0 0.0
  %1739 = vmatprep.subr.mxu0 0.0
  %1740 = vmatpush1.msra.mxu0 0.0
  %1741 = vmatprep.subr.mxu0 0.0
  %1742 = vmatpush1.msra.mxu0 0.0
  %1743 = vmatprep.subr.mxu0 0.0
  %1744 = vmatpush1.msra.mxu0 0.0
  %1745 = vmatprep.subr.mxu0 0.0
  %1746 = vmatpush1.msra.mxu0 0.0
  %1747 = vmatprep.subr.mxu0 0.0
  %1748 = vmatpush1.msra.mxu0 0.0
  %1749 = vmatprep.subr.mxu0 0.0
  %1750 = vmatpush1.msra.mxu0 0.0
  %1751 = vmatprep.subr.mxu0 0.0
  %1752 = vmatpush1.msra.mxu0 0.0
  %1753 = vmatprep.subr.mxu0 0.0
  %1754 = vmatpush1.msra.mxu0 0.0
  %1755 = vmatprep.mubr.f32.mxu0 0.0
  %1756 = vmatmul.mubr.f32.gmra.mrb[0].mxu0 %v1686
  %v1757 = vpop.f32.mrb[0].mxu0
  %v1758 = vadd.f32 %v1683, %v1757
  %v1759 = vpop.f32.mrb[0].mxu0
  %1760 = vmatprep.mubr.f32.mxu0 0.0
  %1761 = vmatmul.mubr.f32.gmra.mrb[0].mxu0 %v1689
  %v1762 = vpop.f32.mrb[0].mxu0
  %v1763 = vadd.f32 %v1683, %v1762
  %v1764 = vpop.f32.mrb[0].mxu0
  %1765 = vdwg.mxu0
  %s1766 = scalar_lea.vmem %s6, 32
  %v1767 = vld [vmem:[%s1766] sm:$0xff]
  %v1768 = vld [vmem:[%s1766 + $0x8] sm:$0xff]
  %v1769 = vld [vmem:[%s1766 + $0x10] sm:$0xff]
  %v1770 = vld [vmem:[%s1766 + $0x18] sm:$0xff]
  %v1771 = vmul.f32 %v1758, 0.35355338
  %v1772 = vmul.f32 %v1763, 0.35355338
  %1775 = vrot.lane.b32.xlu0 %v1758, 96
  %v1776 = vpop.permute.xlu0 %1775
  %1777 = vrot.lane.b32.xlu0 %v1763, 96
  %v1778 = vpop.permute.xlu0 %1777
  %v1780 = vsel %vm256, %v1771, 0
  %v1783 = vsel %vm256, %v1772, 0
  %v1785 = vsel %vm256, %v1776, 0
  %v1787 = vsel %vm256, %v1778, 0
  %1789 = vmatprep.subr.mxu0 0.0
  %1790 = vmatpush1.xpose.msra.mxu0 %v1785
  %1791 = vmatprep.subr.mxu0 0.0
  %1792 = vmatpush1.xpose.msra.mxu0 %v1787
  %1793 = vmatprep.subr.mxu0 0.0
  %1794 = vmatpush1.xpose.msra.mxu0 0.0
  %1795 = vmatprep.subr.mxu0 0.0
  %1796 = vmatpush1.xpose.msra.mxu0 0.0
  %1797 = vmatprep.subr.mxu0 0.0
  %1798 = vmatpush1.xpose.msra.mxu0 0.0
  %1799 = vmatprep.subr.mxu0 0.0
  %1800 = vmatpush1.xpose.msra.mxu0 0.0
  %1801 = vmatprep.subr.mxu0 0.0
  %1802 = vmatpush1.xpose.msra.mxu0 0.0
  %1803 = vmatprep.subr.mxu0 0.0
  %1804 = vmatpush1.xpose.msra.mxu0 0.0
  %1805 = vmatprep.subr.mxu0 0.0
  %1806 = vmatpush1.xpose.msra.mxu0 0.0
  %1807 = vmatprep.subr.mxu0 0.0
  %1808 = vmatpush1.xpose.msra.mxu0 0.0
  %1809 = vmatprep.subr.mxu0 0.0
  %1810 = vmatpush1.xpose.msra.mxu0 0.0
  %1811 = vmatprep.subr.mxu0 0.0
  %1812 = vmatpush1.xpose.msra.mxu0 0.0
  %1813 = vmatprep.subr.mxu0 0.0
  %1814 = vmatpush1.xpose.msra.mxu0 0.0
  %1815 = vmatprep.subr.mxu0 0.0
  %1816 = vmatpush1.xpose.msra.mxu0 0.0
  %1817 = vmatprep.subr.mxu0 0.0
  %1818 = vmatpush1.xpose.msra.mxu0 0.0
  %1819 = vmatprep.subr.mxu0 0.0
  %1820 = vmatpush1.xpose.msra.mxu0 0.0
  %1821 = vmatprep.subr.mxu0 0.0
  %1822 = vmatpush1.xpose.msra.mxu0 0.0
  %1823 = vmatprep.subr.mxu0 0.0
  %1824 = vmatpush1.xpose.msra.mxu0 0.0
  %1825 = vmatprep.subr.mxu0 0.0
  %1826 = vmatpush1.xpose.msra.mxu0 0.0
  %1827 = vmatprep.subr.mxu0 0.0
  %1828 = vmatpush1.xpose.msra.mxu0 0.0
  %1829 = vmatprep.subr.mxu0 0.0
  %1830 = vmatpush1.xpose.msra.mxu0 0.0
  %1831 = vmatprep.subr.mxu0 0.0
  %1832 = vmatpush1.xpose.msra.mxu0 0.0
  %1833 = vmatprep.subr.mxu0 0.0
  %1834 = vmatpush1.xpose.msra.mxu0 0.0
  %1835 = vmatprep.subr.mxu0 0.0
  %1836 = vmatpush1.xpose.msra.mxu0 0.0
  %1837 = vmatprep.subr.mxu0 0.0
  %1838 = vmatpush1.xpose.msra.mxu0 0.0
  %1839 = vmatprep.subr.mxu0 0.0
  %1840 = vmatpush1.xpose.msra.mxu0 0.0
  %1841 = vmatprep.subr.mxu0 0.0
  %1842 = vmatpush1.xpose.msra.mxu0 0.0
  %1843 = vmatprep.subr.mxu0 0.0
  %1844 = vmatpush1.xpose.msra.mxu0 0.0
  %1845 = vmatprep.subr.mxu0 0.0
  %1846 = vmatpush1.xpose.msra.mxu0 0.0
  %1847 = vmatprep.subr.mxu0 0.0
  %1848 = vmatpush1.xpose.msra.mxu0 0.0
  %1849 = vmatprep.subr.mxu0 0.0
  %1850 = vmatpush1.xpose.msra.mxu0 0.0
  %1851 = vmatprep.subr.mxu0 0.0
  %1852 = vmatpush1.xpose.msra.mxu0 0.0
  %1853 = vmatprep.mubr.f32.mxu0 0.0
  %1854 = vmatmul.mubr.f32.gmra.mrb[0].mxu0 %v1780
  %v1855 = vpop.f32.mrb[0].mxu0
  %v1856 = vadd.f32 %v149, %v1855
  %v1857 = vpop.f32.mrb[0].mxu0
  %1858 = vmatprep.mubr.f32.mxu0 0.0
  %1859 = vmatmul.mubr.f32.gmra.mrb[0].mxu0 %v1783
  %v1860 = vpop.f32.mrb[0].mxu0
  %v1861 = vadd.f32 %v150, %v1860
  %v1862 = vpop.f32.mrb[0].mxu0
  %1863 = vdwg.mxu0
  %v1864 = vsel %vm67, %v1856, -inf
  %1865 = vmax.xlane.f32.xlu0 %v1864
  %v1866 = vpop.xlane.xlu0 %1865
  %v1867 = vsel %vm67, %v1861, -inf
  %1868 = vmax.xlane.f32.xlu0 %v1867
  %v1869 = vpop.xlane.xlu0 %1868
  %v1870 = vsub.f32 %v1856, %v1866
  %v1871 = vsub.f32 %v1861, %v1869
  %v1872 = vmul.f32 %v1870, 1.442695
  %v1873 = vpow.pop %v1872
  %v1874 = vmul.f32 %v1871, 1.442695
  %v1875 = vpow.pop %v1874
  %v1876 = vsel %vm67, %v1873, 0.0
  %1877 = vadd.xlane.f32.xlu0 %v1876
  %v1878 = vpop.xlane.xlu0 %1877
  %v1879 = vsel %vm67, %v1875, 0.0
  %1880 = vadd.xlane.f32.xlu0 %v1879
  %v1881 = vpop.xlane.xlu0 %1880
  %v1882 = vrcp.pop %v1878
  %v1883 = vrcp.pop %v1881
  %v1884 = vmul.f32 %v1873, %v1882
  %v1885 = vmul.f32 %v1875, %v1883
  %1886 = vrot.lane.b32.xlu0 %v1758, 64
  %v1887 = vpop.permute.xlu0 %1886
  %1888 = vrot.lane.b32.xlu0 %v1763, 64
  %v1889 = vpop.permute.xlu0 %1888
  %v1893 = vsel %vm67, %v1884, 0
  %v1896 = vsel %vm67, %v1885, 0
  %1898 = vmatprep.subr.mxu0 0.0
  %1899 = vmatpush1.msra.mxu0 %v1887
  %1900 = vmatprep.subr.mxu0 0.0
  %1901 = vmatpush1.msra.mxu0 %v1889
  %1902 = vmatprep.subr.mxu0 0.0
  %1903 = vmatpush1.msra.mxu0 0.0
  %1904 = vmatprep.subr.mxu0 0.0
  %1905 = vmatpush1.msra.mxu0 0.0
  %1906 = vmatprep.subr.mxu0 0.0
  %1907 = vmatpush1.msra.mxu0 0.0
  %1908 = vmatprep.subr.mxu0 0.0
  %1909 = vmatpush1.msra.mxu0 0.0
  %1910 = vmatprep.subr.mxu0 0.0
  %1911 = vmatpush1.msra.mxu0 0.0
  %1912 = vmatprep.subr.mxu0 0.0
  %1913 = vmatpush1.msra.mxu0 0.0
  %1914 = vmatprep.subr.mxu0 0.0
  %1915 = vmatpush1.msra.mxu0 0.0
  %1916 = vmatprep.subr.mxu0 0.0
  %1917 = vmatpush1.msra.mxu0 0.0
  %1918 = vmatprep.subr.mxu0 0.0
  %1919 = vmatpush1.msra.mxu0 0.0
  %1920 = vmatprep.subr.mxu0 0.0
  %1921 = vmatpush1.msra.mxu0 0.0
  %1922 = vmatprep.subr.mxu0 0.0
  %1923 = vmatpush1.msra.mxu0 0.0
  %1924 = vmatprep.subr.mxu0 0.0
  %1925 = vmatpush1.msra.mxu0 0.0
  %1926 = vmatprep.subr.mxu0 0.0
  %1927 = vmatpush1.msra.mxu0 0.0
  %1928 = vmatprep.subr.mxu0 0.0
  %1929 = vmatpush1.msra.mxu0 0.0
  %1930 = vmatprep.subr.mxu0 0.0
  %1931 = vmatpush1.msra.mxu0 0.0
  %1932 = vmatprep.subr.mxu0 0.0
  %1933 = vmatpush1.msra.mxu0 0.0
  %1934 = vmatprep.subr.mxu0 0.0
  %1935 = vmatpush1.msra.mxu0 0.0
  %1936 = vmatprep.subr.mxu0 0.0
  %1937 = vmatpush1.msra.mxu0 0.0
  %1938 = vmatprep.subr.mxu0 0.0
  %1939 = vmatpush1.msra.mxu0 0.0
  %1940 = vmatprep.subr.mxu0 0.0
  %1941 = vmatpush1.msra.mxu0 0.0
  %1942 = vmatprep.subr.mxu0 0.0
  %1943 = vmatpush1.msra.mxu0 0.0
  %1944 = vmatprep.subr.mxu0 0.0
  %1945 = vmatpush1.msra.mxu0 0.0
  %1946 = vmatprep.subr.mxu0 0.0
  %1947 = vmatpush1.msra.mxu0 0.0
  %1948 = vmatprep.subr.mxu0 0.0
  %1949 = vmatpush1.msra.mxu0 0.0
  %1950 = vmatprep.subr.mxu0 0.0
  %1951 = vmatpush1.msra.mxu0 0.0
  %1952 = vmatprep.subr.mxu0 0.0
  %1953 = vmatpush1.msra.mxu0 0.0
  %1954 = vmatprep.subr.mxu0 0.0
  %1955 = vmatpush1.msra.mxu0 0.0
  %1956 = vmatprep.subr.mxu0 0.0
  %1957 = vmatpush1.msra.mxu0 0.0
  %1958 = vmatprep.subr.mxu0 0.0
  %1959 = vmatpush1.msra.mxu0 0.0
  %1960 = vmatprep.subr.mxu0 0.0
  %1961 = vmatpush1.msra.mxu0 0.0
  %1962 = vmatprep.mubr.f32.mxu0 0.0
  %1963 = vmatmul.mubr.f32.gmra.mrb[0].mxu0 %v1893
  %v1964 = vpop.f32.mrb[0].mxu0
  %v1965 = vadd.f32 0.0, %v1964
  %v1966 = vpop.f32.mrb[0].mxu0
  %1967 = vmatprep.mubr.f32.mxu0 0.0
  %1968 = vmatmul.mubr.f32.gmra.mrb[0].mxu0 %v1896
  %v1969 = vpop.f32.mrb[0].mxu0
  %v1970 = vadd.f32 0.0, %v1969
  %v1971 = vpop.f32.mrb[0].mxu0
  %1972 = vdwg.mxu0
  %1973 = vrot.lane.b32.xlu0 %v1771, 120
  %v1974 = vpop.permute.xlu0 %1973
  %1975 = vrot.lane.b32.xlu0 %v1772, 120
  %v1976 = vpop.permute.xlu0 %1975
  %1977 = vrot.lane.b32.xlu0 %v1758, 88
  %v1978 = vpop.permute.xlu0 %1977
  %1979 = vrot.lane.b32.xlu0 %v1763, 88
  %v1980 = vpop.permute.xlu0 %1979
  %v1981 = vsel %vm256, %v1974, 0
  %v1983 = vsel %vm256, %v1976, 0
  %v1985 = vsel %vm256, %v1978, 0
  %v1987 = vsel %vm256, %v1980, 0
  %1989 = vmatprep.subr.mxu0 0.0
  %1990 = vmatpush1.xpose.msra.mxu0 %v1985
  %1991 = vmatprep.subr.mxu0 0.0
  %1992 = vmatpush1.xpose.msra.mxu0 %v1987
  %1993 = vmatprep.subr.mxu0 0.0
  %1994 = vmatpush1.xpose.msra.mxu0 0.0
  %1995 = vmatprep.subr.mxu0 0.0
  %1996 = vmatpush1.xpose.msra.mxu0 0.0
  %1997 = vmatprep.subr.mxu0 0.0
  %1998 = vmatpush1.xpose.msra.mxu0 0.0
  %1999 = vmatprep.subr.mxu0 0.0
  %2000 = vmatpush1.xpose.msra.mxu0 0.0
  %2001 = vmatprep.subr.mxu0 0.0
  %2002 = vmatpush1.xpose.msra.mxu0 0.0
  %2003 = vmatprep.subr.mxu0 0.0
  %2004 = vmatpush1.xpose.msra.mxu0 0.0
  %2005 = vmatprep.subr.mxu0 0.0
  %2006 = vmatpush1.xpose.msra.mxu0 0.0
  %2007 = vmatprep.subr.mxu0 0.0
  %2008 = vmatpush1.xpose.msra.mxu0 0.0
  %2009 = vmatprep.subr.mxu0 0.0
  %2010 = vmatpush1.xpose.msra.mxu0 0.0
  %2011 = vmatprep.subr.mxu0 0.0
  %2012 = vmatpush1.xpose.msra.mxu0 0.0
  %2013 = vmatprep.subr.mxu0 0.0
  %2014 = vmatpush1.xpose.msra.mxu0 0.0
  %2015 = vmatprep.subr.mxu0 0.0
  %2016 = vmatpush1.xpose.msra.mxu0 0.0
  %2017 = vmatprep.subr.mxu0 0.0
  %2018 = vmatpush1.xpose.msra.mxu0 0.0
  %2019 = vmatprep.subr.mxu0 0.0
  %2020 = vmatpush1.xpose.msra.mxu0 0.0
  %2021 = vmatprep.subr.mxu0 0.0
  %2022 = vmatpush1.xpose.msra.mxu0 0.0
  %2023 = vmatprep.subr.mxu0 0.0
  %2024 = vmatpush1.xpose.msra.mxu0 0.0
  %2025 = vmatprep.subr.mxu0 0.0
  %2026 = vmatpush1.xpose.msra.mxu0 0.0
  %2027 = vmatprep.subr.mxu0 0.0
  %2028 = vmatpush1.xpose.msra.mxu0 0.0
  %2029 = vmatprep.subr.mxu0 0.0
  %2030 = vmatpush1.xpose.msra.mxu0 0.0
  %2031 = vmatprep.subr.mxu0 0.0
  %2032 = vmatpush1.xpose.msra.mxu0 0.0
  %2033 = vmatprep.subr.mxu0 0.0
  %2034 = vmatpush1.xpose.msra.mxu0 0.0
  %2035 = vmatprep.subr.mxu0 0.0
  %2036 = vmatpush1.xpose.msra.mxu0 0.0
  %2037 = vmatprep.subr.mxu0 0.0
  %2038 = vmatpush1.xpose.msra.mxu0 0.0
  %2039 = vmatprep.subr.mxu0 0.0
  %2040 = vmatpush1.xpose.msra.mxu0 0.0
  %2041 = vmatprep.subr.mxu0 0.0
  %2042 = vmatpush1.xpose.msra.mxu0 0.0
  %2043 = vmatprep.subr.mxu0 0.0
  %2044 = vmatpush1.xpose.msra.mxu0 0.0
  %2045 = vmatprep.subr.mxu0 0.0
  %2046 = vmatpush1.xpose.msra.mxu0 0.0
  %2047 = vmatprep.subr.mxu0 0.0
  %2048 = vmatpush1.xpose.msra.mxu0 0.0
  %2049 = vmatprep.subr.mxu0 0.0
  %2050 = vmatpush1.xpose.msra.mxu0 0.0
  %2051 = vmatprep.subr.mxu0 0.0
  %2052 = vmatpush1.xpose.msra.mxu0 0.0
  %2053 = vmatprep.mubr.f32.mxu0 0.0
  %2054 = vmatmul.mubr.f32.gmra.mrb[0].mxu0 %v1981
  %v2055 = vpop.f32.mrb[0].mxu0
  %v2056 = vadd.f32 %v149, %v2055
  %v2057 = vpop.f32.mrb[0].mxu0
  %2058 = vmatprep.mubr.f32.mxu0 0.0
  %2059 = vmatmul.mubr.f32.gmra.mrb[0].mxu0 %v1983
  %v2060 = vpop.f32.mrb[0].mxu0
  %v2061 = vadd.f32 %v150, %v2060
  %v2062 = vpop.f32.mrb[0].mxu0
  %2063 = vdwg.mxu0
  %v2064 = vsel %vm67, %v2056, -inf
  %2065 = vmax.xlane.f32.xlu0 %v2064
  %v2066 = vpop.xlane.xlu0 %2065
  %v2067 = vsel %vm67, %v2061, -inf
  %2068 = vmax.xlane.f32.xlu0 %v2067
  %v2069 = vpop.xlane.xlu0 %2068
  %v2070 = vsub.f32 %v2056, %v2066
  %v2071 = vsub.f32 %v2061, %v2069
  %v2072 = vmul.f32 %v2070, 1.442695
  %v2073 = vpow.pop %v2072
  %v2074 = vmul.f32 %v2071, 1.442695
  %v2075 = vpow.pop %v2074
  %v2076 = vsel %vm67, %v2073, 0.0
  %2077 = vadd.xlane.f32.xlu0 %v2076
  %v2078 = vpop.xlane.xlu0 %2077
  %v2079 = vsel %vm67, %v2075, 0.0
  %2080 = vadd.xlane.f32.xlu0 %v2079
  %v2081 = vpop.xlane.xlu0 %2080
  %v2082 = vrcp.pop %v2078
  %v2083 = vrcp.pop %v2081
  %v2084 = vmul.f32 %v2073, %v2082
  %v2085 = vmul.f32 %v2075, %v2083
  %2086 = vrot.lane.b32.xlu0 %v1758, 56
  %v2087 = vpop.permute.xlu0 %2086
  %2088 = vrot.lane.b32.xlu0 %v1763, 56
  %v2089 = vpop.permute.xlu0 %2088
  %v2093 = vsel %vm67, %v2084, 0
  %v2096 = vsel %vm67, %v2085, 0
  %2098 = vmatprep.subr.mxu0 0.0
  %2099 = vmatpush1.msra.mxu0 %v2087
  %2100 = vmatprep.subr.mxu0 0.0
  %2101 = vmatpush1.msra.mxu0 %v2089
  %2102 = vmatprep.subr.mxu0 0.0
  %2103 = vmatpush1.msra.mxu0 0.0
  %2104 = vmatprep.subr.mxu0 0.0
  %2105 = vmatpush1.msra.mxu0 0.0
  %2106 = vmatprep.subr.mxu0 0.0
  %2107 = vmatpush1.msra.mxu0 0.0
  %2108 = vmatprep.subr.mxu0 0.0
  %2109 = vmatpush1.msra.mxu0 0.0
  %2110 = vmatprep.subr.mxu0 0.0
  %2111 = vmatpush1.msra.mxu0 0.0
  %2112 = vmatprep.subr.mxu0 0.0
  %2113 = vmatpush1.msra.mxu0 0.0
  %2114 = vmatprep.subr.mxu0 0.0
  %2115 = vmatpush1.msra.mxu0 0.0
  %2116 = vmatprep.subr.mxu0 0.0
  %2117 = vmatpush1.msra.mxu0 0.0
  %2118 = vmatprep.subr.mxu0 0.0
  %2119 = vmatpush1.msra.mxu0 0.0
  %2120 = vmatprep.subr.mxu0 0.0
  %2121 = vmatpush1.msra.mxu0 0.0
  %2122 = vmatprep.subr.mxu0 0.0
  %2123 = vmatpush1.msra.mxu0 0.0
  %2124 = vmatprep.subr.mxu0 0.0
  %2125 = vmatpush1.msra.mxu0 0.0
  %2126 = vmatprep.subr.mxu0 0.0
  %2127 = vmatpush1.msra.mxu0 0.0
  %2128 = vmatprep.subr.mxu0 0.0
  %2129 = vmatpush1.msra.mxu0 0.0
  %2130 = vmatprep.subr.mxu0 0.0
  %2131 = vmatpush1.msra.mxu0 0.0
  %2132 = vmatprep.subr.mxu0 0.0
  %2133 = vmatpush1.msra.mxu0 0.0
  %2134 = vmatprep.subr.mxu0 0.0
  %2135 = vmatpush1.msra.mxu0 0.0
  %2136 = vmatprep.subr.mxu0 0.0
  %2137 = vmatpush1.msra.mxu0 0.0
  %2138 = vmatprep.subr.mxu0 0.0
  %2139 = vmatpush1.msra.mxu0 0.0
  %2140 = vmatprep.subr.mxu0 0.0
  %2141 = vmatpush1.msra.mxu0 0.0
  %2142 = vmatprep.subr.mxu0 0.0
  %2143 = vmatpush1.msra.mxu0 0.0
  %2144 = vmatprep.subr.mxu0 0.0
  %2145 = vmatpush1.msra.mxu0 0.0
  %2146 = vmatprep.subr.mxu0 0.0
  %2147 = vmatpush1.msra.mxu0 0.0
  %2148 = vmatprep.subr.mxu0 0.0
  %2149 = vmatpush1.msra.mxu0 0.0
  %2150 = vmatprep.subr.mxu0 0.0
  %2151 = vmatpush1.msra.mxu0 0.0
  %2152 = vmatprep.subr.mxu0 0.0
  %2153 = vmatpush1.msra.mxu0 0.0
  %2154 = vmatprep.subr.mxu0 0.0
  %2155 = vmatpush1.msra.mxu0 0.0
  %2156 = vmatprep.subr.mxu0 0.0
  %2157 = vmatpush1.msra.mxu0 0.0
  %2158 = vmatprep.subr.mxu0 0.0
  %2159 = vmatpush1.msra.mxu0 0.0
  %2160 = vmatprep.subr.mxu0 0.0
  %2161 = vmatpush1.msra.mxu0 0.0
  %2162 = vmatprep.mubr.f32.mxu0 0.0
  %2163 = vmatmul.mubr.f32.gmra.mrb[0].mxu0 %v2093
  %v2164 = vpop.f32.mrb[0].mxu0
  %v2165 = vadd.f32 0.0, %v2164
  %v2166 = vpop.f32.mrb[0].mxu0
  %2167 = vmatprep.mubr.f32.mxu0 0.0
  %2168 = vmatmul.mubr.f32.gmra.mrb[0].mxu0 %v2096
  %v2169 = vpop.f32.mrb[0].mxu0
  %v2170 = vadd.f32 0.0, %v2169
  %v2171 = vpop.f32.mrb[0].mxu0
  %2172 = vdwg.mxu0
  %v2174 = vsel %vm256, %v2165, 0
  %v2177 = vsel %vm256, %v2170, 0
  %2179 = vmatprep.subr.mxu0 0.0
  %2180 = vmatpush1.msra.mxu0 %v1768
  %2181 = vmatprep.subr.mxu0 0.0
  %2182 = vmatpush1.msra.mxu0 0.0
  %2183 = vmatprep.subr.mxu0 0.0
  %2184 = vmatpush1.msra.mxu0 0.0
  %2185 = vmatprep.subr.mxu0 0.0
  %2186 = vmatpush1.msra.mxu0 0.0
  %2187 = vmatprep.subr.mxu0 0.0
  %2188 = vmatpush1.msra.mxu0 0.0
  %2189 = vmatprep.subr.mxu0 0.0
  %2190 = vmatpush1.msra.mxu0 0.0
  %2191 = vmatprep.subr.mxu0 0.0
  %2192 = vmatpush1.msra.mxu0 0.0
  %2193 = vmatprep.subr.mxu0 0.0
  %2194 = vmatpush1.msra.mxu0 0.0
  %2195 = vmatprep.subr.mxu0 0.0
  %2196 = vmatpush1.msra.mxu0 0.0
  %2197 = vmatprep.subr.mxu0 0.0
  %2198 = vmatpush1.msra.mxu0 0.0
  %2199 = vmatprep.subr.mxu0 0.0
  %2200 = vmatpush1.msra.mxu0 0.0
  %2201 = vmatprep.subr.mxu0 0.0
  %2202 = vmatpush1.msra.mxu0 0.0
  %2203 = vmatprep.subr.mxu0 0.0
  %2204 = vmatpush1.msra.mxu0 0.0
  %2205 = vmatprep.subr.mxu0 0.0
  %2206 = vmatpush1.msra.mxu0 0.0
  %2207 = vmatprep.subr.mxu0 0.0
  %2208 = vmatpush1.msra.mxu0 0.0
  %2209 = vmatprep.subr.mxu0 0.0
  %2210 = vmatpush1.msra.mxu0 0.0
  %2211 = vmatprep.subr.mxu0 0.0
  %2212 = vmatpush1.msra.mxu0 0.0
  %2213 = vmatprep.subr.mxu0 0.0
  %2214 = vmatpush1.msra.mxu0 0.0
  %2215 = vmatprep.subr.mxu0 0.0
  %2216 = vmatpush1.msra.mxu0 0.0
  %2217 = vmatprep.subr.mxu0 0.0
  %2218 = vmatpush1.msra.mxu0 0.0
  %2219 = vmatprep.subr.mxu0 0.0
  %2220 = vmatpush1.msra.mxu0 0.0
  %2221 = vmatprep.subr.mxu0 0.0
  %2222 = vmatpush1.msra.mxu0 0.0
  %2223 = vmatprep.subr.mxu0 0.0
  %2224 = vmatpush1.msra.mxu0 0.0
  %2225 = vmatprep.subr.mxu0 0.0
  %2226 = vmatpush1.msra.mxu0 0.0
  %2227 = vmatprep.subr.mxu0 0.0
  %2228 = vmatpush1.msra.mxu0 0.0
  %2229 = vmatprep.subr.mxu0 0.0
  %2230 = vmatpush1.msra.mxu0 0.0
  %2231 = vmatprep.subr.mxu0 0.0
  %2232 = vmatpush1.msra.mxu0 0.0
  %2233 = vmatprep.subr.mxu0 0.0
  %2234 = vmatpush1.msra.mxu0 0.0
  %2235 = vmatprep.subr.mxu0 0.0
  %2236 = vmatpush1.msra.mxu0 0.0
  %2237 = vmatprep.subr.mxu0 0.0
  %2238 = vmatpush1.msra.mxu0 0.0
  %2239 = vmatprep.subr.mxu0 0.0
  %2240 = vmatpush1.msra.mxu0 0.0
  %2241 = vmatprep.subr.mxu0 0.0
  %2242 = vmatpush1.msra.mxu0 0.0
  %2243 = vmatprep.mubr.f32.mxu0 0.0
  %2244 = vmatmul.mubr.f32.gmra.mrb[0].mxu0 %v2174
  %v2245 = vpop.f32.mrb[0].mxu0
  %v2246 = vadd.f32 0.0, %v2245
  %v2247 = vpop.f32.mrb[0].mxu0
  %2248 = vmatprep.mubr.f32.mxu0 0.0
  %2249 = vmatmul.mubr.f32.gmra.mrb[0].mxu0 %v2177
  %v2250 = vpop.f32.mrb[0].mxu0
  %v2251 = vadd.f32 0.0, %v2250
  %v2252 = vpop.f32.mrb[0].mxu0
  %2253 = vdwg.mxu0
  %v2255 = vsel %vm256, %v1965, 0
  %v2258 = vsel %vm256, %v1970, 0
  %2260 = vmatprep.subr.mxu0 0.0
  %2261 = vmatpush1.msra.mxu0 %v1767
  %2262 = vmatprep.subr.mxu0 0.0
  %2263 = vmatpush1.msra.mxu0 0.0
  %2264 = vmatprep.subr.mxu0 0.0
  %2265 = vmatpush1.msra.mxu0 0.0
  %2266 = vmatprep.subr.mxu0 0.0
  %2267 = vmatpush1.msra.mxu0 0.0
  %2268 = vmatprep.subr.mxu0 0.0
  %2269 = vmatpush1.msra.mxu0 0.0
  %2270 = vmatprep.subr.mxu0 0.0
  %2271 = vmatpush1.msra.mxu0 0.0
  %2272 = vmatprep.subr.mxu0 0.0
  %2273 = vmatpush1.msra.mxu0 0.0
  %2274 = vmatprep.subr.mxu0 0.0
  %2275 = vmatpush1.msra.mxu0 0.0
  %2276 = vmatprep.subr.mxu0 0.0
  %2277 = vmatpush1.msra.mxu0 0.0
  %2278 = vmatprep.subr.mxu0 0.0
  %2279 = vmatpush1.msra.mxu0 0.0
  %2280 = vmatprep.subr.mxu0 0.0
  %2281 = vmatpush1.msra.mxu0 0.0
  %2282 = vmatprep.subr.mxu0 0.0
  %2283 = vmatpush1.msra.mxu0 0.0
  %2284 = vmatprep.subr.mxu0 0.0
  %2285 = vmatpush1.msra.mxu0 0.0
  %2286 = vmatprep.subr.mxu0 0.0
  %2287 = vmatpush1.msra.mxu0 0.0
  %2288 = vmatprep.subr.mxu0 0.0
  %2289 = vmatpush1.msra.mxu0 0.0
  %2290 = vmatprep.subr.mxu0 0.0
  %2291 = vmatpush1.msra.mxu0 0.0
  %2292 = vmatprep.subr.mxu0 0.0
  %2293 = vmatpush1.msra.mxu0 0.0
  %2294 = vmatprep.subr.mxu0 0.0
  %2295 = vmatpush1.msra.mxu0 0.0
  %2296 = vmatprep.subr.mxu0 0.0
  %2297 = vmatpush1.msra.mxu0 0.0
  %2298 = vmatprep.subr.mxu0 0.0
  %2299 = vmatpush1.msra.mxu0 0.0
  %2300 = vmatprep.subr.mxu0 0.0
  %2301 = vmatpush1.msra.mxu0 0.0
  %2302 = vmatprep.subr.mxu0 0.0
  %2303 = vmatpush1.msra.mxu0 0.0
  %2304 = vmatprep.subr.mxu0 0.0
  %2305 = vmatpush1.msra.mxu0 0.0
  %2306 = vmatprep.subr.mxu0 0.0
  %2307 = vmatpush1.msra.mxu0 0.0
  %2308 = vmatprep.subr.mxu0 0.0
  %2309 = vmatpush1.msra.mxu0 0.0
  %2310 = vmatprep.subr.mxu0 0.0
  %2311 = vmatpush1.msra.mxu0 0.0
  %2312 = vmatprep.subr.mxu0 0.0
  %2313 = vmatpush1.msra.mxu0 0.0
  %2314 = vmatprep.subr.mxu0 0.0
  %2315 = vmatpush1.msra.mxu0 0.0
  %2316 = vmatprep.subr.mxu0 0.0
  %2317 = vmatpush1.msra.mxu0 0.0
  %2318 = vmatprep.subr.mxu0 0.0
  %2319 = vmatpush1.msra.mxu0 0.0
  %2320 = vmatprep.subr.mxu0 0.0
  %2321 = vmatpush1.msra.mxu0 0.0
  %2322 = vmatprep.subr.mxu0 0.0
  %2323 = vmatpush1.msra.mxu0 0.0
  %2324 = vmatprep.mubr.f32.mxu0 0.0
  %2325 = vmatmul.mubr.f32.gmra.mrb[0].mxu0 %v2255
  %v2326 = vpop.f32.mrb[0].mxu0
  %v2327 = vadd.f32 %v2246, %v2326
  %v2328 = vpop.f32.mrb[0].mxu0
  %2329 = vmatprep.mubr.f32.mxu0 0.0
  %2330 = vmatmul.mubr.f32.gmra.mrb[0].mxu0 %v2258
  %v2331 = vpop.f32.mrb[0].mxu0
  %v2332 = vadd.f32 %v2251, %v2331
  %v2333 = vpop.f32.mrb[0].mxu0
  %2334 = vdwg.mxu0
  %2335 = vrot.lane.b32.xlu0 %v1771, 112
  %v2336 = vpop.permute.xlu0 %2335
  %2337 = vrot.lane.b32.xlu0 %v1772, 112
  %v2338 = vpop.permute.xlu0 %2337
  %2339 = vrot.lane.b32.xlu0 %v1758, 80
  %v2340 = vpop.permute.xlu0 %2339
  %2341 = vrot.lane.b32.xlu0 %v1763, 80
  %v2342 = vpop.permute.xlu0 %2341
  %v2343 = vsel %vm256, %v2336, 0
  %v2345 = vsel %vm256, %v2338, 0
  %v2347 = vsel %vm256, %v2340, 0
  %v2349 = vsel %vm256, %v2342, 0
  %2351 = vmatprep.subr.mxu0 0.0
  %2352 = vmatpush1.xpose.msra.mxu0 %v2347
  %2353 = vmatprep.subr.mxu0 0.0
  %2354 = vmatpush1.xpose.msra.mxu0 %v2349
  %2355 = vmatprep.subr.mxu0 0.0
  %2356 = vmatpush1.xpose.msra.mxu0 0.0
  %2357 = vmatprep.subr.mxu0 0.0
  %2358 = vmatpush1.xpose.msra.mxu0 0.0
  %2359 = vmatprep.subr.mxu0 0.0
  %2360 = vmatpush1.xpose.msra.mxu0 0.0
  %2361 = vmatprep.subr.mxu0 0.0
  %2362 = vmatpush1.xpose.msra.mxu0 0.0
  %2363 = vmatprep.subr.mxu0 0.0
  %2364 = vmatpush1.xpose.msra.mxu0 0.0
  %2365 = vmatprep.subr.mxu0 0.0
  %2366 = vmatpush1.xpose.msra.mxu0 0.0
  %2367 = vmatprep.subr.mxu0 0.0
  %2368 = vmatpush1.xpose.msra.mxu0 0.0
  %2369 = vmatprep.subr.mxu0 0.0
  %2370 = vmatpush1.xpose.msra.mxu0 0.0
  %2371 = vmatprep.subr.mxu0 0.0
  %2372 = vmatpush1.xpose.msra.mxu0 0.0
  %2373 = vmatprep.subr.mxu0 0.0
  %2374 = vmatpush1.xpose.msra.mxu0 0.0
  %2375 = vmatprep.subr.mxu0 0.0
  %2376 = vmatpush1.xpose.msra.mxu0 0.0
  %2377 = vmatprep.subr.mxu0 0.0
  %2378 = vmatpush1.xpose.msra.mxu0 0.0
  %2379 = vmatprep.subr.mxu0 0.0
  %2380 = vmatpush1.xpose.msra.mxu0 0.0
  %2381 = vmatprep.subr.mxu0 0.0
  %2382 = vmatpush1.xpose.msra.mxu0 0.0
  %2383 = vmatprep.subr.mxu0 0.0
  %2384 = vmatpush1.xpose.msra.mxu0 0.0
  %2385 = vmatprep.subr.mxu0 0.0
  %2386 = vmatpush1.xpose.msra.mxu0 0.0
  %2387 = vmatprep.subr.mxu0 0.0
  %2388 = vmatpush1.xpose.msra.mxu0 0.0
  %2389 = vmatprep.subr.mxu0 0.0
  %2390 = vmatpush1.xpose.msra.mxu0 0.0
  %2391 = vmatprep.subr.mxu0 0.0
  %2392 = vmatpush1.xpose.msra.mxu0 0.0
  %2393 = vmatprep.subr.mxu0 0.0
  %2394 = vmatpush1.xpose.msra.mxu0 0.0
  %2395 = vmatprep.subr.mxu0 0.0
  %2396 = vmatpush1.xpose.msra.mxu0 0.0
  %2397 = vmatprep.subr.mxu0 0.0
  %2398 = vmatpush1.xpose.msra.mxu0 0.0
  %2399 = vmatprep.subr.mxu0 0.0
  %2400 = vmatpush1.xpose.msra.mxu0 0.0
  %2401 = vmatprep.subr.mxu0 0.0
  %2402 = vmatpush1.xpose.msra.mxu0 0.0
  %2403 = vmatprep.subr.mxu0 0.0
  %2404 = vmatpush1.xpose.msra.mxu0 0.0
  %2405 = vmatprep.subr.mxu0 0.0
  %2406 = vmatpush1.xpose.msra.mxu0 0.0
  %2407 = vmatprep.subr.mxu0 0.0
  %2408 = vmatpush1.xpose.msra.mxu0 0.0
  %2409 = vmatprep.subr.mxu0 0.0
  %2410 = vmatpush1.xpose.msra.mxu0 0.0
  %2411 = vmatprep.subr.mxu0 0.0
  %2412 = vmatpush1.xpose.msra.mxu0 0.0
  %2413 = vmatprep.subr.mxu0 0.0
  %2414 = vmatpush1.xpose.msra.mxu0 0.0
  %2415 = vmatprep.mubr.f32.mxu0 0.0
  %2416 = vmatmul.mubr.f32.gmra.mrb[0].mxu0 %v2343
  %v2417 = vpop.f32.mrb[0].mxu0
  %v2418 = vadd.f32 %v149, %v2417
  %v2419 = vpop.f32.mrb[0].mxu0
  %2420 = vmatprep.mubr.f32.mxu0 0.0
  %2421 = vmatmul.mubr.f32.gmra.mrb[0].mxu0 %v2345
  %v2422 = vpop.f32.mrb[0].mxu0
  %v2423 = vadd.f32 %v150, %v2422
  %v2424 = vpop.f32.mrb[0].mxu0
  %2425 = vdwg.mxu0
  %v2426 = vsel %vm67, %v2418, -inf
  %2427 = vmax.xlane.f32.xlu0 %v2426
  %v2428 = vpop.xlane.xlu0 %2427
  %v2429 = vsel %vm67, %v2423, -inf
  %2430 = vmax.xlane.f32.xlu0 %v2429
  %v2431 = vpop.xlane.xlu0 %2430
  %v2432 = vsub.f32 %v2418, %v2428
  %v2433 = vsub.f32 %v2423, %v2431
  %v2434 = vmul.f32 %v2432, 1.442695
  %v2435 = vpow.pop %v2434
  %v2436 = vmul.f32 %v2433, 1.442695
  %v2437 = vpow.pop %v2436
  %v2438 = vsel %vm67, %v2435, 0.0
  %2439 = vadd.xlane.f32.xlu0 %v2438
  %v2440 = vpop.xlane.xlu0 %2439
  %v2441 = vsel %vm67, %v2437, 0.0
  %2442 = vadd.xlane.f32.xlu0 %v2441
  %v2443 = vpop.xlane.xlu0 %2442
  %v2444 = vrcp.pop %v2440
  %v2445 = vrcp.pop %v2443
  %v2446 = vmul.f32 %v2435, %v2444
  %v2447 = vmul.f32 %v2437, %v2445
  %2448 = vrot.lane.b32.xlu0 %v1758, 48
  %v2449 = vpop.permute.xlu0 %2448
  %2450 = vrot.lane.b32.xlu0 %v1763, 48
  %v2451 = vpop.permute.xlu0 %2450
  %v2455 = vsel %vm67, %v2446, 0
  %v2458 = vsel %vm67, %v2447, 0
  %2460 = vmatprep.subr.mxu0 0.0
  %2461 = vmatpush1.msra.mxu0 %v2449
  %2462 = vmatprep.subr.mxu0 0.0
  %2463 = vmatpush1.msra.mxu0 %v2451
  %2464 = vmatprep.subr.mxu0 0.0
  %2465 = vmatpush1.msra.mxu0 0.0
  %2466 = vmatprep.subr.mxu0 0.0
  %2467 = vmatpush1.msra.mxu0 0.0
  %2468 = vmatprep.subr.mxu0 0.0
  %2469 = vmatpush1.msra.mxu0 0.0
  %2470 = vmatprep.subr.mxu0 0.0
  %2471 = vmatpush1.msra.mxu0 0.0
  %2472 = vmatprep.subr.mxu0 0.0
  %2473 = vmatpush1.msra.mxu0 0.0
  %2474 = vmatprep.subr.mxu0 0.0
  %2475 = vmatpush1.msra.mxu0 0.0
  %2476 = vmatprep.subr.mxu0 0.0
  %2477 = vmatpush1.msra.mxu0 0.0
  %2478 = vmatprep.subr.mxu0 0.0
  %2479 = vmatpush1.msra.mxu0 0.0
  %2480 = vmatprep.subr.mxu0 0.0
  %2481 = vmatpush1.msra.mxu0 0.0
  %2482 = vmatprep.subr.mxu0 0.0
  %2483 = vmatpush1.msra.mxu0 0.0
  %2484 = vmatprep.subr.mxu0 0.0
  %2485 = vmatpush1.msra.mxu0 0.0
  %2486 = vmatprep.subr.mxu0 0.0
  %2487 = vmatpush1.msra.mxu0 0.0
  %2488 = vmatprep.subr.mxu0 0.0
  %2489 = vmatpush1.msra.mxu0 0.0
  %2490 = vmatprep.subr.mxu0 0.0
  %2491 = vmatpush1.msra.mxu0 0.0
  %2492 = vmatprep.subr.mxu0 0.0
  %2493 = vmatpush1.msra.mxu0 0.0
  %2494 = vmatprep.subr.mxu0 0.0
  %2495 = vmatpush1.msra.mxu0 0.0
  %2496 = vmatprep.subr.mxu0 0.0
  %2497 = vmatpush1.msra.mxu0 0.0
  %2498 = vmatprep.subr.mxu0 0.0
  %2499 = vmatpush1.msra.mxu0 0.0
  %2500 = vmatprep.subr.mxu0 0.0
  %2501 = vmatpush1.msra.mxu0 0.0
  %2502 = vmatprep.subr.mxu0 0.0
  %2503 = vmatpush1.msra.mxu0 0.0
  %2504 = vmatprep.subr.mxu0 0.0
  %2505 = vmatpush1.msra.mxu0 0.0
  %2506 = vmatprep.subr.mxu0 0.0
  %2507 = vmatpush1.msra.mxu0 0.0
  %2508 = vmatprep.subr.mxu0 0.0
  %2509 = vmatpush1.msra.mxu0 0.0
  %2510 = vmatprep.subr.mxu0 0.0
  %2511 = vmatpush1.msra.mxu0 0.0
  %2512 = vmatprep.subr.mxu0 0.0
  %2513 = vmatpush1.msra.mxu0 0.0
  %2514 = vmatprep.subr.mxu0 0.0
  %2515 = vmatpush1.msra.mxu0 0.0
  %2516 = vmatprep.subr.mxu0 0.0
  %2517 = vmatpush1.msra.mxu0 0.0
  %2518 = vmatprep.subr.mxu0 0.0
  %2519 = vmatpush1.msra.mxu0 0.0
  %2520 = vmatprep.subr.mxu0 0.0
  %2521 = vmatpush1.msra.mxu0 0.0
  %2522 = vmatprep.subr.mxu0 0.0
  %2523 = vmatpush1.msra.mxu0 0.0
  %2524 = vmatprep.mubr.f32.mxu0 0.0
  %2525 = vmatmul.mubr.f32.gmra.mrb[0].mxu0 %v2455
  %v2526 = vpop.f32.mrb[0].mxu0
  %v2527 = vadd.f32 0.0, %v2526
  %v2528 = vpop.f32.mrb[0].mxu0
  %2529 = vmatprep.mubr.f32.mxu0 0.0
  %2530 = vmatmul.mubr.f32.gmra.mrb[0].mxu0 %v2458
  %v2531 = vpop.f32.mrb[0].mxu0
  %v2532 = vadd.f32 0.0, %v2531
  %v2533 = vpop.f32.mrb[0].mxu0
  %2534 = vdwg.mxu0
  %v2536 = vsel %vm256, %v2527, 0
  %v2539 = vsel %vm256, %v2532, 0
  %2541 = vmatprep.subr.mxu0 0.0
  %2542 = vmatpush1.msra.mxu0 %v1769
  %2543 = vmatprep.subr.mxu0 0.0
  %2544 = vmatpush1.msra.mxu0 0.0
  %2545 = vmatprep.subr.mxu0 0.0
  %2546 = vmatpush1.msra.mxu0 0.0
  %2547 = vmatprep.subr.mxu0 0.0
  %2548 = vmatpush1.msra.mxu0 0.0
  %2549 = vmatprep.subr.mxu0 0.0
  %2550 = vmatpush1.msra.mxu0 0.0
  %2551 = vmatprep.subr.mxu0 0.0
  %2552 = vmatpush1.msra.mxu0 0.0
  %2553 = vmatprep.subr.mxu0 0.0
  %2554 = vmatpush1.msra.mxu0 0.0
  %2555 = vmatprep.subr.mxu0 0.0
  %2556 = vmatpush1.msra.mxu0 0.0
  %2557 = vmatprep.subr.mxu0 0.0
  %2558 = vmatpush1.msra.mxu0 0.0
  %2559 = vmatprep.subr.mxu0 0.0
  %2560 = vmatpush1.msra.mxu0 0.0
  %2561 = vmatprep.subr.mxu0 0.0
  %2562 = vmatpush1.msra.mxu0 0.0
  %2563 = vmatprep.subr.mxu0 0.0
  %2564 = vmatpush1.msra.mxu0 0.0
  %2565 = vmatprep.subr.mxu0 0.0
  %2566 = vmatpush1.msra.mxu0 0.0
  %2567 = vmatprep.subr.mxu0 0.0
  %2568 = vmatpush1.msra.mxu0 0.0
  %2569 = vmatprep.subr.mxu0 0.0
  %2570 = vmatpush1.msra.mxu0 0.0
  %2571 = vmatprep.subr.mxu0 0.0
  %2572 = vmatpush1.msra.mxu0 0.0
  %2573 = vmatprep.subr.mxu0 0.0
  %2574 = vmatpush1.msra.mxu0 0.0
  %2575 = vmatprep.subr.mxu0 0.0
  %2576 = vmatpush1.msra.mxu0 0.0
  %2577 = vmatprep.subr.mxu0 0.0
  %2578 = vmatpush1.msra.mxu0 0.0
  %2579 = vmatprep.subr.mxu0 0.0
  %2580 = vmatpush1.msra.mxu0 0.0
  %2581 = vmatprep.subr.mxu0 0.0
  %2582 = vmatpush1.msra.mxu0 0.0
  %2583 = vmatprep.subr.mxu0 0.0
  %2584 = vmatpush1.msra.mxu0 0.0
  %2585 = vmatprep.subr.mxu0 0.0
  %2586 = vmatpush1.msra.mxu0 0.0
  %2587 = vmatprep.subr.mxu0 0.0
  %2588 = vmatpush1.msra.mxu0 0.0
  %2589 = vmatprep.subr.mxu0 0.0
  %2590 = vmatpush1.msra.mxu0 0.0
  %2591 = vmatprep.subr.mxu0 0.0
  %2592 = vmatpush1.msra.mxu0 0.0
  %2593 = vmatprep.subr.mxu0 0.0
  %2594 = vmatpush1.msra.mxu0 0.0
  %2595 = vmatprep.subr.mxu0 0.0
  %2596 = vmatpush1.msra.mxu0 0.0
  %2597 = vmatprep.subr.mxu0 0.0
  %2598 = vmatpush1.msra.mxu0 0.0
  %2599 = vmatprep.subr.mxu0 0.0
  %2600 = vmatpush1.msra.mxu0 0.0
  %2601 = vmatprep.subr.mxu0 0.0
  %2602 = vmatpush1.msra.mxu0 0.0
  %2603 = vmatprep.subr.mxu0 0.0
  %2604 = vmatpush1.msra.mxu0 0.0
  %2605 = vmatprep.mubr.f32.mxu0 0.0
  %2606 = vmatmul.mubr.f32.gmra.mrb[0].mxu0 %v2536
  %v2607 = vpop.f32.mrb[0].mxu0
  %v2608 = vadd.f32 0.0, %v2607
  %v2609 = vpop.f32.mrb[0].mxu0
  %2610 = vmatprep.mubr.f32.mxu0 0.0
  %2611 = vmatmul.mubr.f32.gmra.mrb[0].mxu0 %v2539
  %v2612 = vpop.f32.mrb[0].mxu0
  %v2613 = vadd.f32 0.0, %v2612
  %v2614 = vpop.f32.mrb[0].mxu0
  %2615 = vdwg.mxu0
  %v2616 = vadd.f32 %v2327, %v2608
  %v2617 = vadd.f32 %v2332, %v2613
  %2618 = vrot.lane.b32.xlu0 %v1771, 104
  %v2619 = vpop.permute.xlu0 %2618
  %2620 = vrot.lane.b32.xlu0 %v1772, 104
  %v2621 = vpop.permute.xlu0 %2620
  %2622 = vrot.lane.b32.xlu0 %v1758, 72
  %v2623 = vpop.permute.xlu0 %2622
  %2624 = vrot.lane.b32.xlu0 %v1763, 72
  %v2625 = vpop.permute.xlu0 %2624
  %v2626 = vsel %vm256, %v2619, 0
  %v2628 = vsel %vm256, %v2621, 0
  %v2630 = vsel %vm256, %v2623, 0
  %v2632 = vsel %vm256, %v2625, 0
  %2634 = vmatprep.subr.mxu0 0.0
  %2635 = vmatpush1.xpose.msra.mxu0 %v2630
  %2636 = vmatprep.subr.mxu0 0.0
  %2637 = vmatpush1.xpose.msra.mxu0 %v2632
  %2638 = vmatprep.subr.mxu0 0.0
  %2639 = vmatpush1.xpose.msra.mxu0 0.0
  %2640 = vmatprep.subr.mxu0 0.0
  %2641 = vmatpush1.xpose.msra.mxu0 0.0
  %2642 = vmatprep.subr.mxu0 0.0
  %2643 = vmatpush1.xpose.msra.mxu0 0.0
  %2644 = vmatprep.subr.mxu0 0.0
  %2645 = vmatpush1.xpose.msra.mxu0 0.0
  %2646 = vmatprep.subr.mxu0 0.0
  %2647 = vmatpush1.xpose.msra.mxu0 0.0
  %2648 = vmatprep.subr.mxu0 0.0
  %2649 = vmatpush1.xpose.msra.mxu0 0.0
  %2650 = vmatprep.subr.mxu0 0.0
  %2651 = vmatpush1.xpose.msra.mxu0 0.0
  %2652 = vmatprep.subr.mxu0 0.0
  %2653 = vmatpush1.xpose.msra.mxu0 0.0
  %2654 = vmatprep.subr.mxu0 0.0
  %2655 = vmatpush1.xpose.msra.mxu0 0.0
  %2656 = vmatprep.subr.mxu0 0.0
  %2657 = vmatpush1.xpose.msra.mxu0 0.0
  %2658 = vmatprep.subr.mxu0 0.0
  %2659 = vmatpush1.xpose.msra.mxu0 0.0
  %2660 = vmatprep.subr.mxu0 0.0
  %2661 = vmatpush1.xpose.msra.mxu0 0.0
  %2662 = vmatprep.subr.mxu0 0.0
  %2663 = vmatpush1.xpose.msra.mxu0 0.0
  %2664 = vmatprep.subr.mxu0 0.0
  %2665 = vmatpush1.xpose.msra.mxu0 0.0
  %2666 = vmatprep.subr.mxu0 0.0
  %2667 = vmatpush1.xpose.msra.mxu0 0.0
  %2668 = vmatprep.subr.mxu0 0.0
  %2669 = vmatpush1.xpose.msra.mxu0 0.0
  %2670 = vmatprep.subr.mxu0 0.0
  %2671 = vmatpush1.xpose.msra.mxu0 0.0
  %2672 = vmatprep.subr.mxu0 0.0
  %2673 = vmatpush1.xpose.msra.mxu0 0.0
  %2674 = vmatprep.subr.mxu0 0.0
  %2675 = vmatpush1.xpose.msra.mxu0 0.0
  %2676 = vmatprep.subr.mxu0 0.0
  %2677 = vmatpush1.xpose.msra.mxu0 0.0
  %2678 = vmatprep.subr.mxu0 0.0
  %2679 = vmatpush1.xpose.msra.mxu0 0.0
  %2680 = vmatprep.subr.mxu0 0.0
  %2681 = vmatpush1.xpose.msra.mxu0 0.0
  %2682 = vmatprep.subr.mxu0 0.0
  %2683 = vmatpush1.xpose.msra.mxu0 0.0
  %2684 = vmatprep.subr.mxu0 0.0
  %2685 = vmatpush1.xpose.msra.mxu0 0.0
  %2686 = vmatprep.subr.mxu0 0.0
  %2687 = vmatpush1.xpose.msra.mxu0 0.0
  %2688 = vmatprep.subr.mxu0 0.0
  %2689 = vmatpush1.xpose.msra.mxu0 0.0
  %2690 = vmatprep.subr.mxu0 0.0
  %2691 = vmatpush1.xpose.msra.mxu0 0.0
  %2692 = vmatprep.subr.mxu0 0.0
  %2693 = vmatpush1.xpose.msra.mxu0 0.0
  %2694 = vmatprep.subr.mxu0 0.0
  %2695 = vmatpush1.xpose.msra.mxu0 0.0
  %2696 = vmatprep.subr.mxu0 0.0
  %2697 = vmatpush1.xpose.msra.mxu0 0.0
  %2698 = vmatprep.mubr.f32.mxu0 0.0
  %2699 = vmatmul.mubr.f32.gmra.mrb[0].mxu0 %v2626
  %v2700 = vpop.f32.mrb[0].mxu0
  %v2701 = vadd.f32 %v149, %v2700
  %v2702 = vpop.f32.mrb[0].mxu0
  %2703 = vmatprep.mubr.f32.mxu0 0.0
  %2704 = vmatmul.mubr.f32.gmra.mrb[0].mxu0 %v2628
  %v2705 = vpop.f32.mrb[0].mxu0
  %v2706 = vadd.f32 %v150, %v2705
  %v2707 = vpop.f32.mrb[0].mxu0
  %2708 = vdwg.mxu0
  %v2709 = vsel %vm67, %v2701, -inf
  %2710 = vmax.xlane.f32.xlu0 %v2709
  %v2711 = vpop.xlane.xlu0 %2710
  %v2712 = vsel %vm67, %v2706, -inf
  %2713 = vmax.xlane.f32.xlu0 %v2712
  %v2714 = vpop.xlane.xlu0 %2713
  %v2715 = vsub.f32 %v2701, %v2711
  %v2716 = vsub.f32 %v2706, %v2714
  %v2717 = vmul.f32 %v2715, 1.442695
  %v2718 = vpow.pop %v2717
  %v2719 = vmul.f32 %v2716, 1.442695
  %v2720 = vpow.pop %v2719
  %v2721 = vsel %vm67, %v2718, 0.0
  %2722 = vadd.xlane.f32.xlu0 %v2721
  %v2723 = vpop.xlane.xlu0 %2722
  %v2724 = vsel %vm67, %v2720, 0.0
  %2725 = vadd.xlane.f32.xlu0 %v2724
  %v2726 = vpop.xlane.xlu0 %2725
  %v2727 = vrcp.pop %v2723
  %v2728 = vrcp.pop %v2726
  %v2729 = vmul.f32 %v2718, %v2727
  %v2730 = vmul.f32 %v2720, %v2728
  %2731 = vrot.lane.b32.xlu0 %v1758, 40
  %v2732 = vpop.permute.xlu0 %2731
  %2733 = vrot.lane.b32.xlu0 %v1763, 40
  %v2734 = vpop.permute.xlu0 %2733
  %v2738 = vsel %vm67, %v2729, 0
  %v2741 = vsel %vm67, %v2730, 0
  %2743 = vmatprep.subr.mxu0 0.0
  %2744 = vmatpush1.msra.mxu0 %v2732
  %2745 = vmatprep.subr.mxu0 0.0
  %2746 = vmatpush1.msra.mxu0 %v2734
  %2747 = vmatprep.subr.mxu0 0.0
  %2748 = vmatpush1.msra.mxu0 0.0
  %2749 = vmatprep.subr.mxu0 0.0
  %2750 = vmatpush1.msra.mxu0 0.0
  %2751 = vmatprep.subr.mxu0 0.0
  %2752 = vmatpush1.msra.mxu0 0.0
  %2753 = vmatprep.subr.mxu0 0.0
  %2754 = vmatpush1.msra.mxu0 0.0
  %2755 = vmatprep.subr.mxu0 0.0
  %2756 = vmatpush1.msra.mxu0 0.0
  %2757 = vmatprep.subr.mxu0 0.0
  %2758 = vmatpush1.msra.mxu0 0.0
  %2759 = vmatprep.subr.mxu0 0.0
  %2760 = vmatpush1.msra.mxu0 0.0
  %2761 = vmatprep.subr.mxu0 0.0
  %2762 = vmatpush1.msra.mxu0 0.0
  %2763 = vmatprep.subr.mxu0 0.0
  %2764 = vmatpush1.msra.mxu0 0.0
  %2765 = vmatprep.subr.mxu0 0.0
  %2766 = vmatpush1.msra.mxu0 0.0
  %2767 = vmatprep.subr.mxu0 0.0
  %2768 = vmatpush1.msra.mxu0 0.0
  %2769 = vmatprep.subr.mxu0 0.0
  %2770 = vmatpush1.msra.mxu0 0.0
  %2771 = vmatprep.subr.mxu0 0.0
  %2772 = vmatpush1.msra.mxu0 0.0
  %2773 = vmatprep.subr.mxu0 0.0
  %2774 = vmatpush1.msra.mxu0 0.0
  %2775 = vmatprep.subr.mxu0 0.0
  %2776 = vmatpush1.msra.mxu0 0.0
  %2777 = vmatprep.subr.mxu0 0.0
  %2778 = vmatpush1.msra.mxu0 0.0
  %2779 = vmatprep.subr.mxu0 0.0
  %2780 = vmatpush1.msra.mxu0 0.0
  %2781 = vmatprep.subr.mxu0 0.0
  %2782 = vmatpush1.msra.mxu0 0.0
  %2783 = vmatprep.subr.mxu0 0.0
  %2784 = vmatpush1.msra.mxu0 0.0
  %2785 = vmatprep.subr.mxu0 0.0
  %2786 = vmatpush1.msra.mxu0 0.0
  %2787 = vmatprep.subr.mxu0 0.0
  %2788 = vmatpush1.msra.mxu0 0.0
  %2789 = vmatprep.subr.mxu0 0.0
  %2790 = vmatpush1.msra.mxu0 0.0
  %2791 = vmatprep.subr.mxu0 0.0
  %2792 = vmatpush1.msra.mxu0 0.0
  %2793 = vmatprep.subr.mxu0 0.0
  %2794 = vmatpush1.msra.mxu0 0.0
  %2795 = vmatprep.subr.mxu0 0.0
  %2796 = vmatpush1.msra.mxu0 0.0
  %2797 = vmatprep.subr.mxu0 0.0
  %2798 = vmatpush1.msra.mxu0 0.0
  %2799 = vmatprep.subr.mxu0 0.0
  %2800 = vmatpush1.msra.mxu0 0.0
  %2801 = vmatprep.subr.mxu0 0.0
  %2802 = vmatpush1.msra.mxu0 0.0
  %2803 = vmatprep.subr.mxu0 0.0
  %2804 = vmatpush1.msra.mxu0 0.0
  %2805 = vmatprep.subr.mxu0 0.0
  %2806 = vmatpush1.msra.mxu0 0.0
  %2807 = vmatprep.mubr.f32.mxu0 0.0
  %2808 = vmatmul.mubr.f32.gmra.mrb[0].mxu0 %v2738
  %v2809 = vpop.f32.mrb[0].mxu0
  %v2810 = vadd.f32 0.0, %v2809
  %v2811 = vpop.f32.mrb[0].mxu0
  %2812 = vmatprep.mubr.f32.mxu0 0.0
  %2813 = vmatmul.mubr.f32.gmra.mrb[0].mxu0 %v2741
  %v2814 = vpop.f32.mrb[0].mxu0
  %v2815 = vadd.f32 0.0, %v2814
  %v2816 = vpop.f32.mrb[0].mxu0
  %2817 = vdwg.mxu0
  %v2819 = vsel %vm256, %v2810, 0
  %v2822 = vsel %vm256, %v2815, 0
  %2824 = vmatprep.subr.mxu0 0.0
  %2825 = vmatpush1.msra.mxu0 %v1770
  %2826 = vmatprep.subr.mxu0 0.0
  %2827 = vmatpush1.msra.mxu0 0.0
  %2828 = vmatprep.subr.mxu0 0.0
  %2829 = vmatpush1.msra.mxu0 0.0
  %2830 = vmatprep.subr.mxu0 0.0
  %2831 = vmatpush1.msra.mxu0 0.0
  %2832 = vmatprep.subr.mxu0 0.0
  %2833 = vmatpush1.msra.mxu0 0.0
  %2834 = vmatprep.subr.mxu0 0.0
  %2835 = vmatpush1.msra.mxu0 0.0
  %2836 = vmatprep.subr.mxu0 0.0
  %2837 = vmatpush1.msra.mxu0 0.0
  %2838 = vmatprep.subr.mxu0 0.0
  %2839 = vmatpush1.msra.mxu0 0.0
  %2840 = vmatprep.subr.mxu0 0.0
  %2841 = vmatpush1.msra.mxu0 0.0
  %2842 = vmatprep.subr.mxu0 0.0
  %2843 = vmatpush1.msra.mxu0 0.0
  %2844 = vmatprep.subr.mxu0 0.0
  %2845 = vmatpush1.msra.mxu0 0.0
  %2846 = vmatprep.subr.mxu0 0.0
  %2847 = vmatpush1.msra.mxu0 0.0
  %2848 = vmatprep.subr.mxu0 0.0
  %2849 = vmatpush1.msra.mxu0 0.0
  %2850 = vmatprep.subr.mxu0 0.0
  %2851 = vmatpush1.msra.mxu0 0.0
  %2852 = vmatprep.subr.mxu0 0.0
  %2853 = vmatpush1.msra.mxu0 0.0
  %2854 = vmatprep.subr.mxu0 0.0
  %2855 = vmatpush1.msra.mxu0 0.0
  %2856 = vmatprep.subr.mxu0 0.0
  %2857 = vmatpush1.msra.mxu0 0.0
  %2858 = vmatprep.subr.mxu0 0.0
  %2859 = vmatpush1.msra.mxu0 0.0
  %2860 = vmatprep.subr.mxu0 0.0
  %2861 = vmatpush1.msra.mxu0 0.0
  %2862 = vmatprep.subr.mxu0 0.0
  %2863 = vmatpush1.msra.mxu0 0.0
  %2864 = vmatprep.subr.mxu0 0.0
  %2865 = vmatpush1.msra.mxu0 0.0
  %2866 = vmatprep.subr.mxu0 0.0
  %2867 = vmatpush1.msra.mxu0 0.0
  %2868 = vmatprep.subr.mxu0 0.0
  %2869 = vmatpush1.msra.mxu0 0.0
  %2870 = vmatprep.subr.mxu0 0.0
  %2871 = vmatpush1.msra.mxu0 0.0
  %2872 = vmatprep.subr.mxu0 0.0
  %2873 = vmatpush1.msra.mxu0 0.0
  %2874 = vmatprep.subr.mxu0 0.0
  %2875 = vmatpush1.msra.mxu0 0.0
  %2876 = vmatprep.subr.mxu0 0.0
  %2877 = vmatpush1.msra.mxu0 0.0
  %2878 = vmatprep.subr.mxu0 0.0
  %2879 = vmatpush1.msra.mxu0 0.0
  %2880 = vmatprep.subr.mxu0 0.0
  %2881 = vmatpush1.msra.mxu0 0.0
  %2882 = vmatprep.subr.mxu0 0.0
  %2883 = vmatpush1.msra.mxu0 0.0
  %2884 = vmatprep.subr.mxu0 0.0
  %2885 = vmatpush1.msra.mxu0 0.0
  %2886 = vmatprep.subr.mxu0 0.0
  %2887 = vmatpush1.msra.mxu0 0.0
  %2888 = vmatprep.mubr.f32.mxu0 0.0
  %2889 = vmatmul.mubr.f32.gmra.mrb[0].mxu0 %v2819
  %v2890 = vpop.f32.mrb[0].mxu0
  %v2891 = vadd.f32 0.0, %v2890
  %v2892 = vpop.f32.mrb[0].mxu0
  %2893 = vmatprep.mubr.f32.mxu0 0.0
  %2894 = vmatmul.mubr.f32.gmra.mrb[0].mxu0 %v2822
  %v2895 = vpop.f32.mrb[0].mxu0
  %v2896 = vadd.f32 0.0, %v2895
  %v2897 = vpop.f32.mrb[0].mxu0
  %2898 = vdwg.mxu0
  %v2899 = vadd.f32 %v2616, %v2891
  %v2900 = vadd.f32 %v2617, %v2896
  %s2901 = scalar_lea.vmem %s7, 1
  %v2902 = vld [vmem:[%s2901] sm:$0x1]
  %v2904 = vlaneseq
  %v2905 = vshrl.u32 %v2904, 7
  %v2906 = vsub.s32 0, %v2905
  %v2907 = vrot.slane %v2902, %v2906
  %v2909 = vadd.f32 %v2899, %v2907
  %v2910 = vadd.f32 %v2900, %v2907
  %v2911 = vadd.f32 %v1670, %v2909
  %v2912 = vadd.f32 %v1671, %v2910
  %s2913 = scalar_lea.vmem %s12, 1
  %v2914 = vld [vmem:[%s2913] sm:$0x1]
  %s2915 = scalar_lea.vmem %s13, 1
  %v2916 = vld [vmem:[%s2915] sm:$0x1]
  %v2917 = vsel %vm162, %v2911, 0.0
  %2918 = vadd.xlane.f32.xlu0 %v2917
  %v2919 = vpop.xlane.xlu0 %2918
  %v2920 = vsel %vm162, %v2912, 0.0
  %2921 = vadd.xlane.f32.xlu0 %v2920
  %v2922 = vpop.xlane.xlu0 %2921
  %v2923 = vmul.f32 %v2919, %v1398
  %v2924 = vmul.f32 %v2922, %v1398
  %v2925 = vsub.f32 %v2911, %v2923
  %v2926 = vsub.f32 %v2912, %v2924
  %v2927 = vmul.f32 %v2925, %v2925
  %v2928 = vmul.f32 %v2926, %v2926
  %v2929 = vsel %vm162, %v2927, 0.0
  %2930 = vadd.xlane.f32.xlu0 %v2929
  %v2931 = vpop.xlane.xlu0 %2930
  %v2932 = vsel %vm162, %v2928, 0.0
  %2933 = vadd.xlane.f32.xlu0 %v2932
  %v2934 = vpop.xlane.xlu0 %2933
  %v2935 = vmul.f32 %v2931, %v1398
  %v2936 = vmul.f32 %v2934, %v1398
  %v2937 = vadd.f32 %v2935, 1e-05
  %v2938 = vadd.f32 %v2936, 1e-05
  %v2939 = vrsqrt.pop %v2937
  %v2940 = vrsqrt.pop %v2938
  %v2941 = vmul.f32 %v2925, %v2939
  %v2942 = vmul.f32 %v2926, %v2940
  %v2944 = vlaneseq
  %v2945 = vshrl.u32 %v2944, 7
  %v2946 = vsub.s32 0, %v2945
  %v2947 = vrot.slane %v2914, %v2946
  %v2949 = vmul.f32 %v2941, %v2947
  %v2950 = vmul.f32 %v2942, %v2947
  %v2952 = vlaneseq
  %v2953 = vshrl.u32 %v2952, 7
  %v2954 = vsub.s32 0, %v2953
  %v2955 = vrot.slane %v2916, %v2954
  %v2957 = vadd.f32 %v2949, %v2955
  %v2958 = vadd.f32 %v2950, %v2955
  %s2959 = scalar_lea.vmem %s8, 32
  %v2960 = vld [vmem:[%s2959] sm:$0xff]
  %v2961 = vld [vmem:[%s2959 + $0x8] sm:$0xff]
  %v2962 = vld [vmem:[%s2959 + $0x10] sm:$0xff]
  %v2963 = vld [vmem:[%s2959 + $0x18] sm:$0xff]
  %s2964 = scalar_lea.vmem %s9, 1
  %v2965 = vld [vmem:[%s2964] sm:$0x1]
  %v2967 = vlaneseq
  %v2968 = vshrl.u32 %v2967, 7
  %v2969 = vsub.s32 0, %v2968
  %v2970 = vrot.slane %v2965, %v2969
  %v2973 = vsel %vm162, %v2957, 0
  %v2976 = vsel %vm162, %v2958, 0
  %2978 = vmatprep.subr.mxu0 0.0
  %2979 = vmatpush1.msra.mxu0 %v2960
  %2980 = vmatprep.subr.mxu0 0.0
  %2981 = vmatpush1.msra.mxu0 %v2961
  %2982 = vmatprep.subr.mxu0 0.0
  %2983 = vmatpush1.msra.mxu0 %v2962
  %2984 = vmatprep.subr.mxu0 0.0
  %2985 = vmatpush1.msra.mxu0 %v2963
  %2986 = vmatprep.subr.mxu0 0.0
  %2987 = vmatpush1.msra.mxu0 0.0
  %2988 = vmatprep.subr.mxu0 0.0
  %2989 = vmatpush1.msra.mxu0 0.0
  %2990 = vmatprep.subr.mxu0 0.0
  %2991 = vmatpush1.msra.mxu0 0.0
  %2992 = vmatprep.subr.mxu0 0.0
  %2993 = vmatpush1.msra.mxu0 0.0
  %2994 = vmatprep.subr.mxu0 0.0
  %2995 = vmatpush1.msra.mxu0 0.0
  %2996 = vmatprep.subr.mxu0 0.0
  %2997 = vmatpush1.msra.mxu0 0.0
  %2998 = vmatprep.subr.mxu0 0.0
  %2999 = vmatpush1.msra.mxu0 0.0
  %3000 = vmatprep.subr.mxu0 0.0
  %3001 = vmatpush1.msra.mxu0 0.0
  %3002 = vmatprep.subr.mxu0 0.0
  %3003 = vmatpush1.msra.mxu0 0.0
  %3004 = vmatprep.subr.mxu0 0.0
  %3005 = vmatpush1.msra.mxu0 0.0
  %3006 = vmatprep.subr.mxu0 0.0
  %3007 = vmatpush1.msra.mxu0 0.0
  %3008 = vmatprep.subr.mxu0 0.0
  %3009 = vmatpush1.msra.mxu0 0.0
  %3010 = vmatprep.subr.mxu0 0.0
  %3011 = vmatpush1.msra.mxu0 0.0
  %3012 = vmatprep.subr.mxu0 0.0
  %3013 = vmatpush1.msra.mxu0 0.0
  %3014 = vmatprep.subr.mxu0 0.0
  %3015 = vmatpush1.msra.mxu0 0.0
  %3016 = vmatprep.subr.mxu0 0.0
  %3017 = vmatpush1.msra.mxu0 0.0
  %3018 = vmatprep.subr.mxu0 0.0
  %3019 = vmatpush1.msra.mxu0 0.0
  %3020 = vmatprep.subr.mxu0 0.0
  %3021 = vmatpush1.msra.mxu0 0.0
  %3022 = vmatprep.subr.mxu0 0.0
  %3023 = vmatpush1.msra.mxu0 0.0
  %3024 = vmatprep.subr.mxu0 0.0
  %3025 = vmatpush1.msra.mxu0 0.0
  %3026 = vmatprep.subr.mxu0 0.0
  %3027 = vmatpush1.msra.mxu0 0.0
  %3028 = vmatprep.subr.mxu0 0.0
  %3029 = vmatpush1.msra.mxu0 0.0
  %3030 = vmatprep.subr.mxu0 0.0
  %3031 = vmatpush1.msra.mxu0 0.0
  %3032 = vmatprep.subr.mxu0 0.0
  %3033 = vmatpush1.msra.mxu0 0.0
  %3034 = vmatprep.subr.mxu0 0.0
  %3035 = vmatpush1.msra.mxu0 0.0
  %3036 = vmatprep.subr.mxu0 0.0
  %3037 = vmatpush1.msra.mxu0 0.0
  %3038 = vmatprep.subr.mxu0 0.0
  %3039 = vmatpush1.msra.mxu0 0.0
  %3040 = vmatprep.subr.mxu0 0.0
  %3041 = vmatpush1.msra.mxu0 0.0
  %3042 = vmatprep.mubr.f32.mxu0 0.0
  %3043 = vmatmul.mubr.f32.gmra.mrb[0].mxu0 %v2973
  %v3044 = vpop.f32.mrb[0].mxu0
  %v3045 = vadd.f32 %v2970, %v3044
  %v3046 = vpop.f32.mrb[0].mxu0
  %3047 = vmatprep.mubr.f32.mxu0 0.0
  %3048 = vmatmul.mubr.f32.gmra.mrb[0].mxu0 %v2976
  %v3049 = vpop.f32.mrb[0].mxu0
  %v3050 = vadd.f32 %v2970, %v3049
  %v3051 = vpop.f32.mrb[0].mxu0
  %3052 = vdwg.mxu0
  %v3053 = vmax.f32 %v3045, 0.0
  %v3054 = vmax.f32 %v3050, 0.0
  %s3055 = scalar_lea.vmem %s10, 64
  %v3056 = vld [vmem:[%s3055] sm:$0xff]
  %v3057 = vld [vmem:[%s3055 + $0x8] sm:$0xff]
  %v3058 = vld [vmem:[%s3055 + $0x10] sm:$0xff]
  %v3059 = vld [vmem:[%s3055 + $0x18] sm:$0xff]
  %v3060 = vld [vmem:[%s3055 + $0x20] sm:$0xff]
  %v3061 = vld [vmem:[%s3055 + $0x28] sm:$0xff]
  %v3062 = vld [vmem:[%s3055 + $0x30] sm:$0xff]
  %v3063 = vld [vmem:[%s3055 + $0x38] sm:$0xff]
  %s3064 = scalar_lea.vmem %s11, 1
  %v3065 = vld [vmem:[%s3064] sm:$0x1]
  %v3067 = vlaneseq
  %v3068 = vshrl.u32 %v3067, 7
  %v3069 = vsub.s32 0, %v3068
  %v3070 = vrot.slane %v3065, %v3069
  %v3073 = vsel %vm1544, %v3053, 0
  %v3076 = vsel %vm1544, %v3054, 0
  %3078 = vmatprep.subr.mxu0 0.0
  %3079 = vmatpush1.msra.mxu0 %v3056
  %3080 = vmatprep.subr.mxu0 0.0
  %3081 = vmatpush1.msra.mxu0 %v3057
  %3082 = vmatprep.subr.mxu0 0.0
  %3083 = vmatpush1.msra.mxu0 %v3058
  %3084 = vmatprep.subr.mxu0 0.0
  %3085 = vmatpush1.msra.mxu0 %v3059
  %3086 = vmatprep.subr.mxu0 0.0
  %3087 = vmatpush1.msra.mxu0 %v3060
  %3088 = vmatprep.subr.mxu0 0.0
  %3089 = vmatpush1.msra.mxu0 %v3061
  %3090 = vmatprep.subr.mxu0 0.0
  %3091 = vmatpush1.msra.mxu0 %v3062
  %3092 = vmatprep.subr.mxu0 0.0
  %3093 = vmatpush1.msra.mxu0 %v3063
  %3094 = vmatprep.subr.mxu0 0.0
  %3095 = vmatpush1.msra.mxu0 0.0
  %3096 = vmatprep.subr.mxu0 0.0
  %3097 = vmatpush1.msra.mxu0 0.0
  %3098 = vmatprep.subr.mxu0 0.0
  %3099 = vmatpush1.msra.mxu0 0.0
  %3100 = vmatprep.subr.mxu0 0.0
  %3101 = vmatpush1.msra.mxu0 0.0
  %3102 = vmatprep.subr.mxu0 0.0
  %3103 = vmatpush1.msra.mxu0 0.0
  %3104 = vmatprep.subr.mxu0 0.0
  %3105 = vmatpush1.msra.mxu0 0.0
  %3106 = vmatprep.subr.mxu0 0.0
  %3107 = vmatpush1.msra.mxu0 0.0
  %3108 = vmatprep.subr.mxu0 0.0
  %3109 = vmatpush1.msra.mxu0 0.0
  %3110 = vmatprep.subr.mxu0 0.0
  %3111 = vmatpush1.msra.mxu0 0.0
  %3112 = vmatprep.subr.mxu0 0.0
  %3113 = vmatpush1.msra.mxu0 0.0
  %3114 = vmatprep.subr.mxu0 0.0
  %3115 = vmatpush1.msra.mxu0 0.0
  %3116 = vmatprep.subr.mxu0 0.0
  %3117 = vmatpush1.msra.mxu0 0.0
  %3118 = vmatprep.subr.mxu0 0.0
  %3119 = vmatpush1.msra.mxu0 0.0
  %3120 = vmatprep.subr.mxu0 0.0
  %3121 = vmatpush1.msra.mxu0 0.0
  %3122 = vmatprep.subr.mxu0 0.0
  %3123 = vmatpush1.msra.mxu0 0.0
  %3124 = vmatprep.subr.mxu0 0.0
  %3125 = vmatpush1.msra.mxu0 0.0
  %3126 = vmatprep.subr.mxu0 0.0
  %3127 = vmatpush1.msra.mxu0 0.0
  %3128 = vmatprep.subr.mxu0 0.0
  %3129 = vmatpush1.msra.mxu0 0.0
  %3130 = vmatprep.subr.mxu0 0.0
  %3131 = vmatpush1.msra.mxu0 0.0
  %3132 = vmatprep.subr.mxu0 0.0
  %3133 = vmatpush1.msra.mxu0 0.0
  %3134 = vmatprep.subr.mxu0 0.0
  %3135 = vmatpush1.msra.mxu0 0.0
  %3136 = vmatprep.subr.mxu0 0.0
  %3137 = vmatpush1.msra.mxu0 0.0
  %3138 = vmatprep.subr.mxu0 0.0
  %3139 = vmatpush1.msra.mxu0 0.0
  %3140 = vmatprep.subr.mxu0 0.0
  %3141 = vmatpush1.msra.mxu0 0.0
  %3142 = vmatprep.mubr.f32.mxu0 0.0
  %3143 = vmatmul.mubr.f32.gmra.mrb[0].mxu0 %v3073
  %v3144 = vpop.f32.mrb[0].mxu0
  %v3145 = vpop.f32.mrb[0].mxu0
  %3146 = vmatprep.mubr.f32.mxu0 0.0
  %3147 = vmatmul.mubr.f32.gmra.mrb[0].mxu0 %v3076
  %v3148 = vpop.f32.mrb[0].mxu0
  %v3149 = vadd.f32 %v3070, %v3148
  %v3150 = vpop.f32.mrb[0].mxu0
  %3151 = vdwg.mxu0
  %v3152 = vadd.f32 %v2958, %v3149
  %s3153 = scalar_lea.vmem %s14, 1
  %v3154 = vld [vmem:[%s3153] sm:$0x1]
  %s3155 = scalar_lea.vmem %s15, 1
  %v3156 = vld [vmem:[%s3155] sm:$0x1]
  %v3157 = vsel %vm162, %v3152, 0.0
  %3158 = vadd.xlane.f32.xlu0 %v3157
  %v3159 = vpop.xlane.xlu0 %3158
  %v3160 = vmul.f32 %v3159, %v1398
  %v3161 = vsub.f32 %v3152, %v3160
  %v3162 = vmul.f32 %v3161, %v3161
  %v3163 = vsel %vm162, %v3162, 0.0
  %3164 = vadd.xlane.f32.xlu0 %v3163
  %v3165 = vpop.xlane.xlu0 %3164
  %v3166 = vmul.f32 %v3165, %v1398
  %v3167 = vadd.f32 %v3166, 1e-05
  %v3168 = vrsqrt.pop %v3167
  %v3169 = vmul.f32 %v3161, %v3168
  %v3171 = vlaneseq
  %v3172 = vshrl.u32 %v3171, 7
  %v3173 = vsub.s32 0, %v3172
  %v3174 = vrot.slane %v3154, %v3173
  %v3176 = vmul.f32 %v3169, %v3174
  %v3178 = vlaneseq
  %v3179 = vshrl.u32 %v3178, 7
  %v3180 = vsub.s32 0, %v3179
  %v3181 = vrot.slane %v3156, %v3180
  %v3183 = vadd.f32 %v3176, %v3181
  %v3184 = vld [vmem:[%s16] sm:$0xff]
  %v3185 = vld [vmem:[%s16 + $0x8] sm:$0xff]
  %v3186 = vld [vmem:[%s16 + $0x10] sm:$0xff]
  %v3187 = vld [vmem:[%s16 + $0x18] sm:$0xff]
  %v3188 = vld [vmem:[#allocation2] sm:$0x1]
  %v3190 = vlaneseq
  %v3191 = vshrl.u32 %v3190, 7
  %v3192 = vsub.s32 0, %v3191
  %v3193 = vrot.slane %v3188, %v3192
  %v3196 = vsel %vm162, %v3183, 0
  %3198 = vmatprep.subr.mxu0 0.0
  %3199 = vmatpush1.msra.mxu0 %v3184
  %3200 = vmatprep.subr.mxu0 0.0
  %3201 = vmatpush1.msra.mxu0 %v3185
  %3202 = vmatprep.subr.mxu0 0.0
  %3203 = vmatpush1.msra.mxu0 %v3186
  %3204 = vmatprep.subr.mxu0 0.0
  %3205 = vmatpush1.msra.mxu0 %v3187
  %3206 = vmatprep.subr.mxu0 0.0
  %3207 = vmatpush1.msra.mxu0 0.0
  %3208 = vmatprep.subr.mxu0 0.0
  %3209 = vmatpush1.msra.mxu0 0.0
  %3210 = vmatprep.subr.mxu0 0.0
  %3211 = vmatpush1.msra.mxu0 0.0
  %3212 = vmatprep.subr.mxu0 0.0
  %3213 = vmatpush1.msra.mxu0 0.0
  %3214 = vmatprep.subr.mxu0 0.0
  %3215 = vmatpush1.msra.mxu0 0.0
  %3216 = vmatprep.subr.mxu0 0.0
  %3217 = vmatpush1.msra.mxu0 0.0
  %3218 = vmatprep.subr.mxu0 0.0
  %3219 = vmatpush1.msra.mxu0 0.0
  %3220 = vmatprep.subr.mxu0 0.0
  %3221 = vmatpush1.msra.mxu0 0.0
  %3222 = vmatprep.subr.mxu0 0.0
  %3223 = vmatpush1.msra.mxu0 0.0
  %3224 = vmatprep.subr.mxu0 0.0
  %3225 = vmatpush1.msra.mxu0 0.0
  %3226 = vmatprep.subr.mxu0 0.0
  %3227 = vmatpush1.msra.mxu0 0.0
  %3228 = vmatprep.subr.mxu0 0.0
  %3229 = vmatpush1.msra.mxu0 0.0
  %3230 = vmatprep.subr.mxu0 0.0
  %3231 = vmatpush1.msra.mxu0 0.0
  %3232 = vmatprep.subr.mxu0 0.0
  %3233 = vmatpush1.msra.mxu0 0.0
  %3234 = vmatprep.subr.mxu0 0.0
  %3235 = vmatpush1.msra.mxu0 0.0
  %3236 = vmatprep.subr.mxu0 0.0
  %3237 = vmatpush1.msra.mxu0 0.0
  %3238 = vmatprep.subr.mxu0 0.0
  %3239 = vmatpush1.msra.mxu0 0.0
  %3240 = vmatprep.subr.mxu0 0.0
  %3241 = vmatpush1.msra.mxu0 0.0
  %3242 = vmatprep.subr.mxu0 0.0
  %3243 = vmatpush1.msra.mxu0 0.0
  %3244 = vmatprep.subr.mxu0 0.0
  %3245 = vmatpush1.msra.mxu0 0.0
  %3246 = vmatprep.subr.mxu0 0.0
  %3247 = vmatpush1.msra.mxu0 0.0
  %3248 = vmatprep.subr.mxu0 0.0
  %3249 = vmatpush1.msra.mxu0 0.0
  %3250 = vmatprep.subr.mxu0 0.0
  %3251 = vmatpush1.msra.mxu0 0.0
  %3252 = vmatprep.subr.mxu0 0.0
  %3253 = vmatpush1.msra.mxu0 0.0
  %3254 = vmatprep.subr.mxu0 0.0
  %3255 = vmatpush1.msra.mxu0 0.0
  %3256 = vmatprep.subr.mxu0 0.0
  %3257 = vmatpush1.msra.mxu0 0.0
  %3258 = vmatprep.subr.mxu0 0.0
  %3259 = vmatpush1.msra.mxu0 0.0
  %3260 = vmatprep.subr.mxu0 0.0
  %3261 = vmatpush1.msra.mxu0 0.0
  %3262 = vmatprep.mubr.f32.mxu0 0.0
  %3263 = vmatmul.mubr.f32.gmra.mrb[0].mxu0 %v3196
  %v3264 = vpop.f32.mrb[0].mxu0
  %v3265 = vadd.f32 %v3193, %v3264
  %v3266 = vpop.f32.mrb[0].mxu0
  %3267 = vdwg.mxu0
  %vm3268 = vcmask 7168
  %3269 = vst.msk [vmem:[%s18] sm:$0xff] %vm3268, %v3265
  // Predicated region
  $region74: #{transformer_forward.1} parent=0 // pred_check
    _
  $region75: #{transformer_forward.1} parent=0 // pred_check_branch
    %3271 = sbr.rel (0) target = $region77
  $region76: #{transformer_forward.1} parent=0 // pred_region
    _
  $region77: #{transformer_forward.1} parent=0 // pred_fallthru
    _
  // Predicated region
  $region78: #{transformer_forward.1} parent=0 // pred_check
    _
  $region79: #{transformer_forward.1} parent=0 // pred_check_branch
    %3273 = sbr.rel (0) target = $region81
  $region80: #{transformer_forward.1} parent=0 // pred_region
    _
  $region81: #{transformer_forward.1} parent=0 // pred_fallthru
    _

</llo_original>
